<compile_context>
chip_gen: v6e
topology: v6e:2x2x1
jax: 0.10.0
libtpu: 0.0.40
codegen_flags: <defaults>
</compile_context>

<pallas_src>
import functools

import jax
import jax.numpy as jnp
import numpy as np
from jax import lax
from jax.experimental import pallas as pl
from jax.experimental.pallas import tpu as pltpu


# ------------------------------ fused kernel --------------------------------

def _rdb_fused_kernel(x_ref, w_ref, b_ref, lffw_ref, lffb_ref, mask_ref,
                      o_ref, feat, *, G0, G, C, W):
    """One grid step = one fold of images.

    x_ref   : (1, G0, L) f32   input, channel-major, lanes = (image, pixel)
    w_ref   : (C, 9, G, Cmax)  conv weights, tap-major, zero-padded to Cmax,
                               already in the MXU operand dtype
    b_ref   : (C, G, 1) f32    conv biases
    lffw_ref: (G0, Ctot)       1x1 LFF weight (MXU operand dtype)
    lffb_ref: (G0, 1) f32      LFF bias
    mask_ref: (9, L) f32       per-tap edge-validity masks (host precomputed)
    o_ref   : (1, G0, L) f32
    feat    : VMEM (Ctot, L)   growing dense feature map (MXU operand dtype)
    """
    L = x_ref.shape[-1]

    x = x_ref[0]                                     # (G0, L) f32
    feat[0:G0, :] = x.astype(feat.dtype)

    # Hoisted once, reused by every layer (feedback #1): per-tap edge masks.
    # Tap 4 (center) is always valid -> never masked.
    mask_rows = [mask_ref[t:t + 1, :] for t in range(9)]    # each (1, L) f32

    for c in range(C):
        Cin = G0 + c * G
        f_in = feat[0:Cin, :]                        # one load per layer, rolled 8x
        acc = None
        for t in range(9):
            dy, dx = t // 3, t % 3
            s = (dy - 1) * W + (dx - 1)              # flat lane offset of this tap
            if t == 4:
                shifted = f_in
            else:
                shifted = pltpu.roll(f_in, shift=(-s) % L, axis=1)
            wl = w_ref[c, t, :, 0:Cin]               # (G, Cin), static slice
            contrib = jnp.dot(wl, shifted, preferred_element_type=jnp.float32)
            if t != 4:                               # zero halo / wrap-around lanes
                contrib = contrib * mask_rows[t]
            acc = contrib if acc is None else acc + contrib
        y = jnp.maximum(acc + b_ref[c], 0.0)         # f32 bias + ReLU epilogue
        feat[Cin:Cin + G, :] = y.astype(feat.dtype)

    # LFF 1x1 conv + bias + residual (residual uses the exact f32 input).
    out = jnp.dot(lffw_ref[...], feat[...], preferred_element_type=jnp.float32)
    o_ref[0] = out + lffb_ref[...] + x


# ----------------------------- device heuristics -----------------------------

def _device_kind() -> str:
    try:
        return jax.devices()[0].device_kind.lower()
    except Exception:
        return ""


def default_mxu_dtype():
    k = _device_kind()
    # bf16-native MXUs (v6e / v7x): bf16 operands, f32 accumulation.
    return jnp.bfloat16 if ("v6" in k or "v7" in k) else jnp.float32


def default_n_blocks(N):
    k = _device_kind()
    # v7x has 2 TensorCores/chip: keep a 'parallel' grid axis of extent 2.
    if "v7" in k and N % 2 == 0:
        return 2
    return 1  # single-TC v5e/v6e (or unknown): fold the whole batch into lanes


# ------------------------------ host-side packing ----------------------------

def pack_rdb_params(conv_params, lff_w, lff_b, G0, G, C, mxu_dtype):
    """Cheap, one-time re-layout of PyTorch-style params for the kernel."""
    Cmax = G0 + (C - 1) * G
    ws, bs = [], []
    for c, (w, b) in enumerate(conv_params):
        Cin = G0 + c * G
        # OIHW (G, Cin, 3, 3) -> (3, 3, G, Cin) -> (9, G, Cin) -> pad Cin->Cmax.
        wt = jnp.transpose(w, (2, 3, 0, 1)).reshape(9, G, Cin)
        wt = jnp.pad(wt, ((0, 0), (0, 0), (0, Cmax - Cin)))
        ws.append(wt)
        bs.append(b.reshape(G, 1))
    wcat = jnp.stack(ws, axis=0).astype(mxu_dtype)        # (C, 9, G, Cmax)
    bcat = jnp.stack(bs, axis=0).astype(jnp.float32)      # (C, G, 1)
    return (wcat, bcat,
            jnp.asarray(lff_w, mxu_dtype),                # (G0, Ctot)
            jnp.asarray(lff_b, jnp.float32).reshape(G0, 1))


def make_edge_masks(H, W, n_img):
    """(9, n_img*H*W) f32 validity masks, tiled across the folded images."""
    h = np.arange(H)[:, None]
    w = np.arange(W)[None, :]
    masks = np.empty((9, H, W), np.float32)
    for t in range(9):
        dy, dx = t // 3, t % 3
        m = np.ones((H, W), np.float32)
        if dy == 0:
            m *= (h >= 1)
        elif dy == 2:
            m *= (h <= H - 2)
        if dx == 0:
            m *= (w >= 1)
        elif dx == 2:
            m *= (w <= W - 2)
        masks[t] = m
    return jnp.asarray(np.tile(masks.reshape(9, H * W), (1, n_img)))


# --------------------------------- wrapper ------------------------------------

def rdb_forward(x_nchw, conv_params, lff_w, lff_b, *, G0, G, C,
                n_blocks=None, mxu_dtype=None):
    """RDB forward. x_nchw: (N, G0, H, W) like the PyTorch module."""
    N, Cx, H, W = x_nchw.shape
    assert Cx == G0
    HW = H * W
    Ctot = G0 + C * G
    Cmax = G0 + (C - 1) * G

    if mxu_dtype is None:
        mxu_dtype = default_mxu_dtype()
    if n_blocks is None:
        n_blocks = default_n_blocks(N)
    assert N % n_blocks == 0
    Nb = N // n_blocks
    L = Nb * HW

    wcat, bcat, lffw, lffb = pack_rdb_params(conv_params, lff_w, lff_b,
                                             G0, G, C, mxu_dtype)
    masks = make_edge_masks(H, W, Nb)                      # (9, L)

    # (N, G0, H, W) -> (n_blocks, G0, Nb*HW): fold Nb images into the lane axis.
    x_folded = (x_nchw.reshape(n_blocks, Nb, G0, HW)
                      .transpose(0, 2, 1, 3)
                      .reshape(n_blocks, G0, L))

    kernel = functools.partial(_rdb_fused_kernel, G0=G0, G=G, C=C, W=W)

    flops = N * (sum(2 * G * 9 * (G0 + c * G) * HW for c in range(C))
                 + 2 * G0 * Ctot * HW)
    bytes_accessed = int(
        x_folded.size * 4 + wcat.size * wcat.dtype.itemsize + bcat.size * 4
        + lffw.size * lffw.dtype.itemsize + lffb.size * 4 + masks.size * 4
        + N * G0 * HW * 4)

    out = pl.pallas_call(
        kernel,
        out_shape=jax.ShapeDtypeStruct((n_blocks, G0, L), jnp.float32),
        grid=(n_blocks,),
        in_specs=[
            pl.BlockSpec((1, G0, L), lambda i: (i, 0, 0)),
            pl.BlockSpec((C, 9, G, Cmax), lambda i: (0, 0, 0, 0)),
            pl.BlockSpec((C, G, 1), lambda i: (0, 0, 0)),
            pl.BlockSpec((G0, Ctot), lambda i: (0, 0)),
            pl.BlockSpec((G0, 1), lambda i: (0, 0)),
            pl.BlockSpec((9, L), lambda i: (0, 0)),
        ],
        out_specs=pl.BlockSpec((1, G0, L), lambda i: (i, 0, 0)),
        scratch_shapes=[pltpu.VMEM((Ctot, L), mxu_dtype)],  # dense feature map
        compiler_params=pltpu.CompilerParams(
            dimension_semantics=("parallel",)),
        cost_estimate=pl.CostEstimate(flops=flops, transcendentals=0,
                                      bytes_accessed=bytes_accessed),
    )(x_folded, wcat, bcat, lffw, lffb, masks)

    return (out.reshape(n_blocks, G0, Nb, HW)
               .transpose(0, 2, 1, 3)
               .reshape(N, G0, H, W))


# ----------------------------- parameter init --------------------------------

def init_rdb_params(key, G0, G, C, kSize=3):
    conv_params = []
    for c in range(C):
        Cin = G0 + c * G
        key, kw, kb = jax.random.split(key, 3)
        bound = 1.0 / np.sqrt(Cin * kSize * kSize)
        w = jax.random.uniform(kw, (G, Cin, kSize, kSize), jnp.float32,
                               -bound, bound)        # OIHW (PyTorch layout)
        b = jax.random.uniform(kb, (G,), jnp.float32, -bound, bound)
        conv_params.append((w, b))
    Ctot = G0 + C * G
    key, kw, kb = jax.random.split(key, 3)
    bound = 1.0 / np.sqrt(Ctot)
    lff_w = jax.random.uniform(kw, (G0, Ctot), jnp.float32, -bound, bound)
    lff_b = jax.random.uniform(kb, (G0,), jnp.float32, -bound, bound)
    return conv_params, lff_w, lff_b


# -------------------------------- reference ----------------------------------

def rdb_reference(x_nchw, conv_params, lff_w, lff_b):
    x = jnp.transpose(x_nchw, (0, 2, 3, 1))          # NHWC
    feat = x
    dn = ("NHWC", "HWIO", "NHWC")
    for (w, b) in conv_params:
        w_hwio = jnp.transpose(w, (2, 3, 1, 0))
        out = lax.conv_general_dilated(feat, w_hwio, (1, 1), "SAME",
                                       dimension_numbers=dn) + b
        out = jnp.maximum(out, 0.0)
        feat = jnp.concatenate([feat, out], axis=-1)
    y = lax.conv_general_dilated(feat, lff_w.T[None, None], (1, 1), "SAME",
                                 dimension_numbers=dn) + lff_b
    y = y + x
    return jnp.transpose(y, (0, 3, 1, 2))


# ---------------------------------- main --------------------------------------

if __name__ == "__main__":
    # RDB(growRate0=8, growRate=8, nConvLayers=3), input (N=2, G0=8, H=W=16)
    G0, G, C = 8, 8, 3
    N, H, W = 2, 16, 16

    key = jax.random.PRNGKey(0)
    key, kx = jax.random.split(key)
    x = jax.random.normal(kx, (N, G0, H, W), jnp.float32)   # NCHW like PyTorch

    conv_params, lff_w, lff_b = init_rdb_params(key, G0, G, C)

    out = jax.block_until_ready(
        rdb_forward(x, conv_params, lff_w, lff_b, G0=G0, G=G, C=C))
    ref = jax.block_until_ready(rdb_reference(x, conv_params, lff_w, lff_b))

    assert out.shape == (N, G0, H, W), out.shape
    if default_mxu_dtype() == jnp.bfloat16:
        rtol = atol = 2e-2       # bf16 MXU operands (v6e / v7x)
    else:
        rtol = atol = 1e-3       # f32 MXU operands (v5e / other)
    np.testing.assert_allclose(np.asarray(out), np.asarray(ref),
                               rtol=rtol, atol=atol)

    print("KERNEL_OK")
</pallas_src>

<mosaic_0001>
module attributes {stable_mosaic.version = 11 : i64} {
  func.func @_rdb_fused_kernel(%arg0: i32, %arg1: memref<1x8x512xf32, #tpu.memory_space<vmem>>, %arg2: memref<3x9x8x24xf32, #tpu.memory_space<vmem>>, %arg3: memref<3x8x1xf32, #tpu.memory_space<vmem>>, %arg4: memref<8x32xf32, #tpu.memory_space<vmem>>, %arg5: memref<8x1xf32, #tpu.memory_space<vmem>>, %arg6: memref<9x512xf32, #tpu.memory_space<vmem>>, %arg7: memref<1x8x512xf32, #tpu.memory_space<vmem>>, %arg8: memref<32x512xf32, #tpu.memory_space<vmem>>) attributes {dimension_semantics = [#tpu.dimension_semantics<parallel>], iteration_bounds = array<i64: 1>, scalar_prefetch = 0 : i64, scratch_operands = 1 : i64, tpu.core_type = #tpu.core_type<tc>, window_params = [{transform_indices = @transform_0, window_bounds = array<i64: 1, 8, 512>}, {pipeline_mode = #tpu.pipeline_mode<synchronous>, transform_indices = @transform_1, window_bounds = array<i64: 3, 9, 8, 24>}, {pipeline_mode = #tpu.pipeline_mode<synchronous>, transform_indices = @transform_2, window_bounds = array<i64: 3, 8, 1>}, {pipeline_mode = #tpu.pipeline_mode<synchronous>, transform_indices = @transform_3, window_bounds = array<i64: 8, 32>}, {pipeline_mode = #tpu.pipeline_mode<synchronous>, transform_indices = @transform_4, window_bounds = array<i64: 8, 1>}, {pipeline_mode = #tpu.pipeline_mode<synchronous>, transform_indices = @transform_5, window_bounds = array<i64: 9, 512>}, {transform_indices = @transform_6, window_bounds = array<i64: 1, 8, 512>}]} {
    %c0 = arith.constant 0 : index
    %c0_0 = arith.constant 0 : index
    %c0_1 = arith.constant 0 : index
    %0 = vector.load %arg1[%c0, %c0_0, %c0_1] : memref<1x8x512xf32, #tpu.memory_space<vmem>>, vector<1x8x512xf32>
    %1 = vector.shape_cast %0 : vector<1x8x512xf32> to vector<8x512xf32>
    %c0_2 = arith.constant 0 : index
    %c0_3 = arith.constant 0 : index
    %2 = vector.load %arg8[%c0_2, %c0_3] : memref<32x512xf32, #tpu.memory_space<vmem>>, vector<8x512xf32>
    tpu.vector_store %arg8[%c0_2, %c0_3], %1 {strides = array<i32>} : memref<32x512xf32, #tpu.memory_space<vmem>>, vector<8x512xf32>,
    %c0_4 = arith.constant 0 : index
    %c0_5 = arith.constant 0 : index
    %3 = vector.load %arg6[%c0_4, %c0_5] : memref<9x512xf32, #tpu.memory_space<vmem>>, vector<1x512xf32>
    %c1 = arith.constant 1 : index
    %c0_6 = arith.constant 0 : index
    %4 = vector.load %arg6[%c1, %c0_6] : memref<9x512xf32, #tpu.memory_space<vmem>>, vector<1x512xf32>
    %c2 = arith.constant 2 : index
    %c0_7 = arith.constant 0 : index
    %5 = vector.load %arg6[%c2, %c0_7] : memref<9x512xf32, #tpu.memory_space<vmem>>, vector<1x512xf32>
    %c3 = arith.constant 3 : index
    %c0_8 = arith.constant 0 : index
    %6 = vector.load %arg6[%c3, %c0_8] : memref<9x512xf32, #tpu.memory_space<vmem>>, vector<1x512xf32>
    %c5 = arith.constant 5 : index
    %c0_9 = arith.constant 0 : index
    %7 = vector.load %arg6[%c5, %c0_9] : memref<9x512xf32, #tpu.memory_space<vmem>>, vector<1x512xf32>
    %c6 = arith.constant 6 : index
    %c0_10 = arith.constant 0 : index
    %8 = vector.load %arg6[%c6, %c0_10] : memref<9x512xf32, #tpu.memory_space<vmem>>, vector<1x512xf32>
    %c7 = arith.constant 7 : index
    %c0_11 = arith.constant 0 : index
    %9 = vector.load %arg6[%c7, %c0_11] : memref<9x512xf32, #tpu.memory_space<vmem>>, vector<1x512xf32>
    %c8 = arith.constant 8 : index
    %c0_12 = arith.constant 0 : index
    %10 = vector.load %arg6[%c8, %c0_12] : memref<9x512xf32, #tpu.memory_space<vmem>>, vector<1x512xf32>
    %c0_13 = arith.constant 0 : index
    %c0_14 = arith.constant 0 : index
    %11 = vector.load %arg8[%c0_13, %c0_14] : memref<32x512xf32, #tpu.memory_space<vmem>>, vector<8x512xf32>
    %c17_i32 = arith.constant 17 : i32
    %12 = tpu.dynamic_rotate %11 by %c17_i32 dim 1 : vector<8x512xf32>, i32 -> vector<8x512xf32>
    %c0_15 = arith.constant 0 : index
    %c0_16 = arith.constant 0 : index
    %c0_17 = arith.constant 0 : index
    %c0_18 = arith.constant 0 : index
    %13 = vector.load %arg2[%c0_15, %c0_16, %c0_17, %c0_18] : memref<3x9x8x24xf32, #tpu.memory_space<vmem>>, vector<1x1x8x8xf32>
    %14 = vector.shape_cast %13 : vector<1x1x8x8xf32> to vector<8x8xf32>
    %cst = arith.constant dense<0.000000e+00> : vector<8x512xf32>
    %15 = tpu.matmul %14, %12, %cst {dimension_numbers = #tpu.dot_dimension_numbers<[1], [0], [0], [1], [0, 0, 1, 1], [], []>} : vector<8x8xf32>, vector<8x512xf32>, vector<8x512xf32> -> vector<8x512xf32>
    %16 = vector.broadcast %3 : vector<1x512xf32> to vector<8x512xf32>
    %17 = arith.mulf %15, %16 : vector<8x512xf32>
    %c16_i32 = arith.constant 16 : i32
    %18 = tpu.dynamic_rotate %11 by %c16_i32 dim 1 : vector<8x512xf32>, i32 -> vector<8x512xf32>
    %c0_19 = arith.constant 0 : index
    %c1_20 = arith.constant 1 : index
    %c0_21 = arith.constant 0 : index
    %c0_22 = arith.constant 0 : index
    %19 = vector.load %arg2[%c0_19, %c1_20, %c0_21, %c0_22] : memref<3x9x8x24xf32, #tpu.memory_space<vmem>>, vector<1x1x8x8xf32>
    %20 = vector.shape_cast %19 : vector<1x1x8x8xf32> to vector<8x8xf32>
    %cst_23 = arith.constant dense<0.000000e+00> : vector<8x512xf32>
    %21 = tpu.matmul %20, %18, %cst_23 {dimension_numbers = #tpu.dot_dimension_numbers<[1], [0], [0], [1], [0, 0, 1, 1], [], []>} : vector<8x8xf32>, vector<8x512xf32>, vector<8x512xf32> -> vector<8x512xf32>
    %22 = vector.broadcast %4 : vector<1x512xf32> to vector<8x512xf32>
    %23 = arith.mulf %21, %22 : vector<8x512xf32>
    %24 = arith.addf %17, %23 : vector<8x512xf32>
    %c15_i32 = arith.constant 15 : i32
    %25 = tpu.dynamic_rotate %11 by %c15_i32 dim 1 : vector<8x512xf32>, i32 -> vector<8x512xf32>
    %c0_24 = arith.constant 0 : index
    %c2_25 = arith.constant 2 : index
    %c0_26 = arith.constant 0 : index
    %c0_27 = arith.constant 0 : index
    %26 = vector.load %arg2[%c0_24, %c2_25, %c0_26, %c0_27] : memref<3x9x8x24xf32, #tpu.memory_space<vmem>>, vector<1x1x8x8xf32>
    %27 = vector.shape_cast %26 : vector<1x1x8x8xf32> to vector<8x8xf32>
    %cst_28 = arith.constant dense<0.000000e+00> : vector<8x512xf32>
    %28 = tpu.matmul %27, %25, %cst_28 {dimension_numbers = #tpu.dot_dimension_numbers<[1], [0], [0], [1], [0, 0, 1, 1], [], []>} : vector<8x8xf32>, vector<8x512xf32>, vector<8x512xf32> -> vector<8x512xf32>
    %29 = vector.broadcast %5 : vector<1x512xf32> to vector<8x512xf32>
    %30 = arith.mulf %28, %29 : vector<8x512xf32>
    %31 = arith.addf %24, %30 : vector<8x512xf32>
    %c1_i32 = arith.constant 1 : i32
    %32 = tpu.dynamic_rotate %11 by %c1_i32 dim 1 : vector<8x512xf32>, i32 -> vector<8x512xf32>
    %c0_29 = arith.constant 0 : index
    %c3_30 = arith.constant 3 : index
    %c0_31 = arith.constant 0 : index
    %c0_32 = arith.constant 0 : index
    %33 = vector.load %arg2[%c0_29, %c3_30, %c0_31, %c0_32] : memref<3x9x8x24xf32, #tpu.memory_space<vmem>>, vector<1x1x8x8xf32>
    %34 = vector.shape_cast %33 : vector<1x1x8x8xf32> to vector<8x8xf32>
    %cst_33 = arith.constant dense<0.000000e+00> : vector<8x512xf32>
    %35 = tpu.matmul %34, %32, %cst_33 {dimension_numbers = #tpu.dot_dimension_numbers<[1], [0], [0], [1], [0, 0, 1, 1], [], []>} : vector<8x8xf32>, vector<8x512xf32>, vector<8x512xf32> -> vector<8x512xf32>
    %36 = vector.broadcast %6 : vector<1x512xf32> to vector<8x512xf32>
    %37 = arith.mulf %35, %36 : vector<8x512xf32>
    %38 = arith.addf %31, %37 : vector<8x512xf32>
    %c0_34 = arith.constant 0 : index
    %c4 = arith.constant 4 : index
    %c0_35 = arith.constant 0 : index
    %c0_36 = arith.constant 0 : index
    %39 = vector.load %arg2[%c0_34, %c4, %c0_35, %c0_36] : memref<3x9x8x24xf32, #tpu.memory_space<vmem>>, vector<1x1x8x8xf32>
    %40 = vector.shape_cast %39 : vector<1x1x8x8xf32> to vector<8x8xf32>
    %cst_37 = arith.constant dense<0.000000e+00> : vector<8x512xf32>
    %41 = tpu.matmul %40, %11, %cst_37 {dimension_numbers = #tpu.dot_dimension_numbers<[1], [0], [0], [1], [0, 0, 1, 1], [], []>} : vector<8x8xf32>, vector<8x512xf32>, vector<8x512xf32> -> vector<8x512xf32>
    %42 = arith.addf %38, %41 : vector<8x512xf32>
    %c511_i32 = arith.constant 511 : i32
    %43 = tpu.dynamic_rotate %11 by %c511_i32 dim 1 : vector<8x512xf32>, i32 -> vector<8x512xf32>
    %c0_38 = arith.constant 0 : index
    %c5_39 = arith.constant 5 : index
    %c0_40 = arith.constant 0 : index
    %c0_41 = arith.constant 0 : index
    %44 = vector.load %arg2[%c0_38, %c5_39, %c0_40, %c0_41] : memref<3x9x8x24xf32, #tpu.memory_space<vmem>>, vector<1x1x8x8xf32>
    %45 = vector.shape_cast %44 : vector<1x1x8x8xf32> to vector<8x8xf32>
    %cst_42 = arith.constant dense<0.000000e+00> : vector<8x512xf32>
    %46 = tpu.matmul %45, %43, %cst_42 {dimension_numbers = #tpu.dot_dimension_numbers<[1], [0], [0], [1], [0, 0, 1, 1], [], []>} : vector<8x8xf32>, vector<8x512xf32>, vector<8x512xf32> -> vector<8x512xf32>
    %47 = vector.broadcast %7 : vector<1x512xf32> to vector<8x512xf32>
    %48 = arith.mulf %46, %47 : vector<8x512xf32>
    %49 = arith.addf %42, %48 : vector<8x512xf32>
    %c497_i32 = arith.constant 497 : i32
    %50 = tpu.dynamic_rotate %11 by %c497_i32 dim 1 : vector<8x512xf32>, i32 -> vector<8x512xf32>
    %c0_43 = arith.constant 0 : index
    %c6_44 = arith.constant 6 : index
    %c0_45 = arith.constant 0 : index
    %c0_46 = arith.constant 0 : index
    %51 = vector.load %arg2[%c0_43, %c6_44, %c0_45, %c0_46] : memref<3x9x8x24xf32, #tpu.memory_space<vmem>>, vector<1x1x8x8xf32>
    %52 = vector.shape_cast %51 : vector<1x1x8x8xf32> to vector<8x8xf32>
    %cst_47 = arith.constant dense<0.000000e+00> : vector<8x512xf32>
    %53 = tpu.matmul %52, %50, %cst_47 {dimension_numbers = #tpu.dot_dimension_numbers<[1], [0], [0], [1], [0, 0, 1, 1], [], []>} : vector<8x8xf32>, vector<8x512xf32>, vector<8x512xf32> -> vector<8x512xf32>
    %54 = vector.broadcast %8 : vector<1x512xf32> to vector<8x512xf32>
    %55 = arith.mulf %53, %54 : vector<8x512xf32>
    %56 = arith.addf %49, %55 : vector<8x512xf32>
    %c496_i32 = arith.constant 496 : i32
    %57 = tpu.dynamic_rotate %11 by %c496_i32 dim 1 : vector<8x512xf32>, i32 -> vector<8x512xf32>
    %c0_48 = arith.constant 0 : index
    %c7_49 = arith.constant 7 : index
    %c0_50 = arith.constant 0 : index
    %c0_51 = arith.constant 0 : index
    %58 = vector.load %arg2[%c0_48, %c7_49, %c0_50, %c0_51] : memref<3x9x8x24xf32, #tpu.memory_space<vmem>>, vector<1x1x8x8xf32>
    %59 = vector.shape_cast %58 : vector<1x1x8x8xf32> to vector<8x8xf32>
    %cst_52 = arith.constant dense<0.000000e+00> : vector<8x512xf32>
    %60 = tpu.matmul %59, %57, %cst_52 {dimension_numbers = #tpu.dot_dimension_numbers<[1], [0], [0], [1], [0, 0, 1, 1], [], []>} : vector<8x8xf32>, vector<8x512xf32>, vector<8x512xf32> -> vector<8x512xf32>
    %61 = vector.broadcast %9 : vector<1x512xf32> to vector<8x512xf32>
    %62 = arith.mulf %60, %61 : vector<8x512xf32>
    %63 = arith.addf %56, %62 : vector<8x512xf32>
    %c495_i32 = arith.constant 495 : i32
    %64 = tpu.dynamic_rotate %11 by %c495_i32 dim 1 : vector<8x512xf32>, i32 -> vector<8x512xf32>
    %c0_53 = arith.constant 0 : index
    %c8_54 = arith.constant 8 : index
    %c0_55 = arith.constant 0 : index
    %c0_56 = arith.constant 0 : index
    %65 = vector.load %arg2[%c0_53, %c8_54, %c0_55, %c0_56] : memref<3x9x8x24xf32, #tpu.memory_space<vmem>>, vector<1x1x8x8xf32>
    %66 = vector.shape_cast %65 : vector<1x1x8x8xf32> to vector<8x8xf32>
    %cst_57 = arith.constant dense<0.000000e+00> : vector<8x512xf32>
    %67 = tpu.matmul %66, %64, %cst_57 {dimension_numbers = #tpu.dot_dimension_numbers<[1], [0], [0], [1], [0, 0, 1, 1], [], []>} : vector<8x8xf32>, vector<8x512xf32>, vector<8x512xf32> -> vector<8x512xf32>
    %68 = vector.broadcast %10 : vector<1x512xf32> to vector<8x512xf32>
    %69 = arith.mulf %67, %68 : vector<8x512xf32>
    %70 = arith.addf %63, %69 : vector<8x512xf32>
    %c0_58 = arith.constant 0 : index
    %c0_59 = arith.constant 0 : index
    %c0_60 = arith.constant 0 : index
    %71 = vector.load %arg3[%c0_58, %c0_59, %c0_60] : memref<3x8x1xf32, #tpu.memory_space<vmem>>, vector<1x8x1xf32>
    %72 = vector.shape_cast %71 : vector<1x8x1xf32> to vector<8x1xf32>
    %73 = vector.broadcast %72 : vector<8x1xf32> to vector<8x512xf32>
    %74 = arith.addf %70, %73 : vector<8x512xf32>
    %cst_61 = arith.constant 0.000000e+00 : f32
    %75 = vector.broadcast %cst_61 : f32 to vector<8x512xf32>
    %76 = arith.maximumf %74, %75 : vector<8x512xf32>
    %c8_62 = arith.constant 8 : index
    %c0_63 = arith.constant 0 : index
    %77 = vector.load %arg8[%c8_62, %c0_63] : memref<32x512xf32, #tpu.memory_space<vmem>>, vector<8x512xf32>
    tpu.vector_store %arg8[%c8_62, %c0_63], %76 {strides = array<i32>} : memref<32x512xf32, #tpu.memory_space<vmem>>, vector<8x512xf32>,
    %c0_64 = arith.constant 0 : index
    %c0_65 = arith.constant 0 : index
    %78 = vector.load %arg8[%c0_64, %c0_65] : memref<32x512xf32, #tpu.memory_space<vmem>>, vector<16x512xf32>
    %c17_i32_66 = arith.constant 17 : i32
    %79 = tpu.dynamic_rotate %78 by %c17_i32_66 dim 1 : vector<16x512xf32>, i32 -> vector<16x512xf32>
    %c1_67 = arith.constant 1 : index
    %c0_68 = arith.constant 0 : index
    %c0_69 = arith.constant 0 : index
    %c0_70 = arith.constant 0 : index
    %80 = vector.load %arg2[%c1_67, %c0_68, %c0_69, %c0_70] : memref<3x9x8x24xf32, #tpu.memory_space<vmem>>, vector<1x1x8x16xf32>
    %81 = vector.shape_cast %80 : vector<1x1x8x16xf32> to vector<8x16xf32>
    %cst_71 = arith.constant dense<0.000000e+00> : vector<8x512xf32>
    %82 = tpu.matmul %81, %79, %cst_71 {dimension_numbers = #tpu.dot_dimension_numbers<[1], [0], [0], [1], [0, 0, 1, 1], [], []>} : vector<8x16xf32>, vector<16x512xf32>, vector<8x512xf32> -> vector<8x512xf32>
    %83 = vector.broadcast %3 : vector<1x512xf32> to vector<8x512xf32>
    %84 = arith.mulf %82, %83 : vector<8x512xf32>
    %c16_i32_72 = arith.constant 16 : i32
    %85 = tpu.dynamic_rotate %78 by %c16_i32_72 dim 1 : vector<16x512xf32>, i32 -> vector<16x512xf32>
    %c1_73 = arith.constant 1 : index
    %c1_74 = arith.constant 1 : index
    %c0_75 = arith.constant 0 : index
    %c0_76 = arith.constant 0 : index
    %86 = vector.load %arg2[%c1_73, %c1_74, %c0_75, %c0_76] : memref<3x9x8x24xf32, #tpu.memory_space<vmem>>, vector<1x1x8x16xf32>
    %87 = vector.shape_cast %86 : vector<1x1x8x16xf32> to vector<8x16xf32>
    %cst_77 = arith.constant dense<0.000000e+00> : vector<8x512xf32>
    %88 = tpu.matmul %87, %85, %cst_77 {dimension_numbers = #tpu.dot_dimension_numbers<[1], [0], [0], [1], [0, 0, 1, 1], [], []>} : vector<8x16xf32>, vector<16x512xf32>, vector<8x512xf32> -> vector<8x512xf32>
    %89 = vector.broadcast %4 : vector<1x512xf32> to vector<8x512xf32>
    %90 = arith.mulf %88, %89 : vector<8x512xf32>
    %91 = arith.addf %84, %90 : vector<8x512xf32>
    %c15_i32_78 = arith.constant 15 : i32
    %92 = tpu.dynamic_rotate %78 by %c15_i32_78 dim 1 : vector<16x512xf32>, i32 -> vector<16x512xf32>
    %c1_79 = arith.constant 1 : index
    %c2_80 = arith.constant 2 : index
    %c0_81 = arith.constant 0 : index
    %c0_82 = arith.constant 0 : index
    %93 = vector.load %arg2[%c1_79, %c2_80, %c0_81, %c0_82] : memref<3x9x8x24xf32, #tpu.memory_space<vmem>>, vector<1x1x8x16xf32>
    %94 = vector.shape_cast %93 : vector<1x1x8x16xf32> to vector<8x16xf32>
    %cst_83 = arith.constant dense<0.000000e+00> : vector<8x512xf32>
    %95 = tpu.matmul %94, %92, %cst_83 {dimension_numbers = #tpu.dot_dimension_numbers<[1], [0], [0], [1], [0, 0, 1, 1], [], []>} : vector<8x16xf32>, vector<16x512xf32>, vector<8x512xf32> -> vector<8x512xf32>
    %96 = vector.broadcast %5 : vector<1x512xf32> to vector<8x512xf32>
    %97 = arith.mulf %95, %96 : vector<8x512xf32>
    %98 = arith.addf %91, %97 : vector<8x512xf32>
    %c1_i32_84 = arith.constant 1 : i32
    %99 = tpu.dynamic_rotate %78 by %c1_i32_84 dim 1 : vector<16x512xf32>, i32 -> vector<16x512xf32>
    %c1_85 = arith.constant 1 : index
    %c3_86 = arith.constant 3 : index
    %c0_87 = arith.constant 0 : index
    %c0_88 = arith.constant 0 : index
    %100 = vector.load %arg2[%c1_85, %c3_86, %c0_87, %c0_88] : memref<3x9x8x24xf32, #tpu.memory_space<vmem>>, vector<1x1x8x16xf32>
    %101 = vector.shape_cast %100 : vector<1x1x8x16xf32> to vector<8x16xf32>
    %cst_89 = arith.constant dense<0.000000e+00> : vector<8x512xf32>
    %102 = tpu.matmul %101, %99, %cst_89 {dimension_numbers = #tpu.dot_dimension_numbers<[1], [0], [0], [1], [0, 0, 1, 1], [], []>} : vector<8x16xf32>, vector<16x512xf32>, vector<8x512xf32> -> vector<8x512xf32>
    %103 = vector.broadcast %6 : vector<1x512xf32> to vector<8x512xf32>
    %104 = arith.mulf %102, %103 : vector<8x512xf32>
    %105 = arith.addf %98, %104 : vector<8x512xf32>
    %c1_90 = arith.constant 1 : index
    %c4_91 = arith.constant 4 : index
    %c0_92 = arith.constant 0 : index
    %c0_93 = arith.constant 0 : index
    %106 = vector.load %arg2[%c1_90, %c4_91, %c0_92, %c0_93] : memref<3x9x8x24xf32, #tpu.memory_space<vmem>>, vector<1x1x8x16xf32>
    %107 = vector.shape_cast %106 : vector<1x1x8x16xf32> to vector<8x16xf32>
    %cst_94 = arith.constant dense<0.000000e+00> : vector<8x512xf32>
    %108 = tpu.matmul %107, %78, %cst_94 {dimension_numbers = #tpu.dot_dimension_numbers<[1], [0], [0], [1], [0, 0, 1, 1], [], []>} : vector<8x16xf32>, vector<16x512xf32>, vector<8x512xf32> -> vector<8x512xf32>
    %109 = arith.addf %105, %108 : vector<8x512xf32>
    %c511_i32_95 = arith.constant 511 : i32
    %110 = tpu.dynamic_rotate %78 by %c511_i32_95 dim 1 : vector<16x512xf32>, i32 -> vector<16x512xf32>
    %c1_96 = arith.constant 1 : index
    %c5_97 = arith.constant 5 : index
    %c0_98 = arith.constant 0 : index
    %c0_99 = arith.constant 0 : index
    %111 = vector.load %arg2[%c1_96, %c5_97, %c0_98, %c0_99] : memref<3x9x8x24xf32, #tpu.memory_space<vmem>>, vector<1x1x8x16xf32>
    %112 = vector.shape_cast %111 : vector<1x1x8x16xf32> to vector<8x16xf32>
    %cst_100 = arith.constant dense<0.000000e+00> : vector<8x512xf32>
    %113 = tpu.matmul %112, %110, %cst_100 {dimension_numbers = #tpu.dot_dimension_numbers<[1], [0], [0], [1], [0, 0, 1, 1], [], []>} : vector<8x16xf32>, vector<16x512xf32>, vector<8x512xf32> -> vector<8x512xf32>
    %114 = vector.broadcast %7 : vector<1x512xf32> to vector<8x512xf32>
    %115 = arith.mulf %113, %114 : vector<8x512xf32>
    %116 = arith.addf %109, %115 : vector<8x512xf32>
    %c497_i32_101 = arith.constant 497 : i32
    %117 = tpu.dynamic_rotate %78 by %c497_i32_101 dim 1 : vector<16x512xf32>, i32 -> vector<16x512xf32>
    %c1_102 = arith.constant 1 : index
    %c6_103 = arith.constant 6 : index
    %c0_104 = arith.constant 0 : index
    %c0_105 = arith.constant 0 : index
    %118 = vector.load %arg2[%c1_102, %c6_103, %c0_104, %c0_105] : memref<3x9x8x24xf32, #tpu.memory_space<vmem>>, vector<1x1x8x16xf32>
    %119 = vector.shape_cast %118 : vector<1x1x8x16xf32> to vector<8x16xf32>
    %cst_106 = arith.constant dense<0.000000e+00> : vector<8x512xf32>
    %120 = tpu.matmul %119, %117, %cst_106 {dimension_numbers = #tpu.dot_dimension_numbers<[1], [0], [0], [1], [0, 0, 1, 1], [], []>} : vector<8x16xf32>, vector<16x512xf32>, vector<8x512xf32> -> vector<8x512xf32>
    %121 = vector.broadcast %8 : vector<1x512xf32> to vector<8x512xf32>
    %122 = arith.mulf %120, %121 : vector<8x512xf32>
    %123 = arith.addf %116, %122 : vector<8x512xf32>
    %c496_i32_107 = arith.constant 496 : i32
    %124 = tpu.dynamic_rotate %78 by %c496_i32_107 dim 1 : vector<16x512xf32>, i32 -> vector<16x512xf32>
    %c1_108 = arith.constant 1 : index
    %c7_109 = arith.constant 7 : index
    %c0_110 = arith.constant 0 : index
    %c0_111 = arith.constant 0 : index
    %125 = vector.load %arg2[%c1_108, %c7_109, %c0_110, %c0_111] : memref<3x9x8x24xf32, #tpu.memory_space<vmem>>, vector<1x1x8x16xf32>
    %126 = vector.shape_cast %125 : vector<1x1x8x16xf32> to vector<8x16xf32>
    %cst_112 = arith.constant dense<0.000000e+00> : vector<8x512xf32>
    %127 = tpu.matmul %126, %124, %cst_112 {dimension_numbers = #tpu.dot_dimension_numbers<[1], [0], [0], [1], [0, 0, 1, 1], [], []>} : vector<8x16xf32>, vector<16x512xf32>, vector<8x512xf32> -> vector<8x512xf32>
    %128 = vector.broadcast %9 : vector<1x512xf32> to vector<8x512xf32>
    %129 = arith.mulf %127, %128 : vector<8x512xf32>
    %130 = arith.addf %123, %129 : vector<8x512xf32>
    %c495_i32_113 = arith.constant 495 : i32
    %131 = tpu.dynamic_rotate %78 by %c495_i32_113 dim 1 : vector<16x512xf32>, i32 -> vector<16x512xf32>
    %c1_114 = arith.constant 1 : index
    %c8_115 = arith.constant 8 : index
    %c0_116 = arith.constant 0 : index
    %c0_117 = arith.constant 0 : index
    %132 = vector.load %arg2[%c1_114, %c8_115, %c0_116, %c0_117] : memref<3x9x8x24xf32, #tpu.memory_space<vmem>>, vector<1x1x8x16xf32>
    %133 = vector.shape_cast %132 : vector<1x1x8x16xf32> to vector<8x16xf32>
    %cst_118 = arith.constant dense<0.000000e+00> : vector<8x512xf32>
    %134 = tpu.matmul %133, %131, %cst_118 {dimension_numbers = #tpu.dot_dimension_numbers<[1], [0], [0], [1], [0, 0, 1, 1], [], []>} : vector<8x16xf32>, vector<16x512xf32>, vector<8x512xf32> -> vector<8x512xf32>
    %135 = vector.broadcast %10 : vector<1x512xf32> to vector<8x512xf32>
    %136 = arith.mulf %134, %135 : vector<8x512xf32>
    %137 = arith.addf %130, %136 : vector<8x512xf32>
    %c1_119 = arith.constant 1 : index
    %c0_120 = arith.constant 0 : index
    %c0_121 = arith.constant 0 : index
    %138 = vector.load %arg3[%c1_119, %c0_120, %c0_121] : memref<3x8x1xf32, #tpu.memory_space<vmem>>, vector<1x8x1xf32>
    %139 = vector.shape_cast %138 : vector<1x8x1xf32> to vector<8x1xf32>
    %140 = vector.broadcast %139 : vector<8x1xf32> to vector<8x512xf32>
    %141 = arith.addf %137, %140 : vector<8x512xf32>
    %cst_122 = arith.constant 0.000000e+00 : f32
    %142 = vector.broadcast %cst_122 : f32 to vector<8x512xf32>
    %143 = arith.maximumf %141, %142 : vector<8x512xf32>
    %c16 = arith.constant 16 : index
    %c0_123 = arith.constant 0 : index
    %144 = vector.load %arg8[%c16, %c0_123] : memref<32x512xf32, #tpu.memory_space<vmem>>, vector<8x512xf32>
    tpu.vector_store %arg8[%c16, %c0_123], %143 {strides = array<i32>} : memref<32x512xf32, #tpu.memory_space<vmem>>, vector<8x512xf32>,
    %c0_124 = arith.constant 0 : index
    %c0_125 = arith.constant 0 : index
    %145 = vector.load %arg8[%c0_124, %c0_125] : memref<32x512xf32, #tpu.memory_space<vmem>>, vector<24x512xf32>
    %c17_i32_126 = arith.constant 17 : i32
    %146 = tpu.dynamic_rotate %145 by %c17_i32_126 dim 1 : vector<24x512xf32>, i32 -> vector<24x512xf32>
    %c2_127 = arith.constant 2 : index
    %c0_128 = arith.constant 0 : index
    %c0_129 = arith.constant 0 : index
    %c0_130 = arith.constant 0 : index
    %147 = vector.load %arg2[%c2_127, %c0_128, %c0_129, %c0_130] : memref<3x9x8x24xf32, #tpu.memory_space<vmem>>, vector<1x1x8x24xf32>
    %148 = vector.shape_cast %147 : vector<1x1x8x24xf32> to vector<8x24xf32>
    %cst_131 = arith.constant dense<0.000000e+00> : vector<8x512xf32>
    %149 = tpu.matmul %148, %146, %cst_131 {dimension_numbers = #tpu.dot_dimension_numbers<[1], [0], [0], [1], [0, 0, 1, 1], [], []>} : vector<8x24xf32>, vector<24x512xf32>, vector<8x512xf32> -> vector<8x512xf32>
    %150 = vector.broadcast %3 : vector<1x512xf32> to vector<8x512xf32>
    %151 = arith.mulf %149, %150 : vector<8x512xf32>
    %c16_i32_132 = arith.constant 16 : i32
    %152 = tpu.dynamic_rotate %145 by %c16_i32_132 dim 1 : vector<24x512xf32>, i32 -> vector<24x512xf32>
    %c2_133 = arith.constant 2 : index
    %c1_134 = arith.constant 1 : index
    %c0_135 = arith.constant 0 : index
    %c0_136 = arith.constant 0 : index
    %153 = vector.load %arg2[%c2_133, %c1_134, %c0_135, %c0_136] : memref<3x9x8x24xf32, #tpu.memory_space<vmem>>, vector<1x1x8x24xf32>
    %154 = vector.shape_cast %153 : vector<1x1x8x24xf32> to vector<8x24xf32>
    %cst_137 = arith.constant dense<0.000000e+00> : vector<8x512xf32>
    %155 = tpu.matmul %154, %152, %cst_137 {dimension_numbers = #tpu.dot_dimension_numbers<[1], [0], [0], [1], [0, 0, 1, 1], [], []>} : vector<8x24xf32>, vector<24x512xf32>, vector<8x512xf32> -> vector<8x512xf32>
    %156 = vector.broadcast %4 : vector<1x512xf32> to vector<8x512xf32>
    %157 = arith.mulf %155, %156 : vector<8x512xf32>
    %158 = arith.addf %151, %157 : vector<8x512xf32>
    %c15_i32_138 = arith.constant 15 : i32
    %159 = tpu.dynamic_rotate %145 by %c15_i32_138 dim 1 : vector<24x512xf32>, i32 -> vector<24x512xf32>
    %c2_139 = arith.constant 2 : index
    %c2_140 = arith.constant 2 : index
    %c0_141 = arith.constant 0 : index
    %c0_142 = arith.constant 0 : index
    %160 = vector.load %arg2[%c2_139, %c2_140, %c0_141, %c0_142] : memref<3x9x8x24xf32, #tpu.memory_space<vmem>>, vector<1x1x8x24xf32>
    %161 = vector.shape_cast %160 : vector<1x1x8x24xf32> to vector<8x24xf32>
    %cst_143 = arith.constant dense<0.000000e+00> : vector<8x512xf32>
    %162 = tpu.matmul %161, %159, %cst_143 {dimension_numbers = #tpu.dot_dimension_numbers<[1], [0], [0], [1], [0, 0, 1, 1], [], []>} : vector<8x24xf32>, vector<24x512xf32>, vector<8x512xf32> -> vector<8x512xf32>
    %163 = vector.broadcast %5 : vector<1x512xf32> to vector<8x512xf32>
    %164 = arith.mulf %162, %163 : vector<8x512xf32>
    %165 = arith.addf %158, %164 : vector<8x512xf32>
    %c1_i32_144 = arith.constant 1 : i32
    %166 = tpu.dynamic_rotate %145 by %c1_i32_144 dim 1 : vector<24x512xf32>, i32 -> vector<24x512xf32>
    %c2_145 = arith.constant 2 : index
    %c3_146 = arith.constant 3 : index
    %c0_147 = arith.constant 0 : index
    %c0_148 = arith.constant 0 : index
    %167 = vector.load %arg2[%c2_145, %c3_146, %c0_147, %c0_148] : memref<3x9x8x24xf32, #tpu.memory_space<vmem>>, vector<1x1x8x24xf32>
    %168 = vector.shape_cast %167 : vector<1x1x8x24xf32> to vector<8x24xf32>
    %cst_149 = arith.constant dense<0.000000e+00> : vector<8x512xf32>
    %169 = tpu.matmul %168, %166, %cst_149 {dimension_numbers = #tpu.dot_dimension_numbers<[1], [0], [0], [1], [0, 0, 1, 1], [], []>} : vector<8x24xf32>, vector<24x512xf32>, vector<8x512xf32> -> vector<8x512xf32>
    %170 = vector.broadcast %6 : vector<1x512xf32> to vector<8x512xf32>
    %171 = arith.mulf %169, %170 : vector<8x512xf32>
    %172 = arith.addf %165, %171 : vector<8x512xf32>
    %c2_150 = arith.constant 2 : index
    %c4_151 = arith.constant 4 : index
    %c0_152 = arith.constant 0 : index
    %c0_153 = arith.constant 0 : index
    %173 = vector.load %arg2[%c2_150, %c4_151, %c0_152, %c0_153] : memref<3x9x8x24xf32, #tpu.memory_space<vmem>>, vector<1x1x8x24xf32>
    %174 = vector.shape_cast %173 : vector<1x1x8x24xf32> to vector<8x24xf32>
    %cst_154 = arith.constant dense<0.000000e+00> : vector<8x512xf32>
    %175 = tpu.matmul %174, %145, %cst_154 {dimension_numbers = #tpu.dot_dimension_numbers<[1], [0], [0], [1], [0, 0, 1, 1], [], []>} : vector<8x24xf32>, vector<24x512xf32>, vector<8x512xf32> -> vector<8x512xf32>
    %176 = arith.addf %172, %175 : vector<8x512xf32>
    %c511_i32_155 = arith.constant 511 : i32
    %177 = tpu.dynamic_rotate %145 by %c511_i32_155 dim 1 : vector<24x512xf32>, i32 -> vector<24x512xf32>
    %c2_156 = arith.constant 2 : index
    %c5_157 = arith.constant 5 : index
    %c0_158 = arith.constant 0 : index
    %c0_159 = arith.constant 0 : index
    %178 = vector.load %arg2[%c2_156, %c5_157, %c0_158, %c0_159] : memref<3x9x8x24xf32, #tpu.memory_space<vmem>>, vector<1x1x8x24xf32>
    %179 = vector.shape_cast %178 : vector<1x1x8x24xf32> to vector<8x24xf32>
    %cst_160 = arith.constant dense<0.000000e+00> : vector<8x512xf32>
    %180 = tpu.matmul %179, %177, %cst_160 {dimension_numbers = #tpu.dot_dimension_numbers<[1], [0], [0], [1], [0, 0, 1, 1], [], []>} : vector<8x24xf32>, vector<24x512xf32>, vector<8x512xf32> -> vector<8x512xf32>
    %181 = vector.broadcast %7 : vector<1x512xf32> to vector<8x512xf32>
    %182 = arith.mulf %180, %181 : vector<8x512xf32>
    %183 = arith.addf %176, %182 : vector<8x512xf32>
    %c497_i32_161 = arith.constant 497 : i32
    %184 = tpu.dynamic_rotate %145 by %c497_i32_161 dim 1 : vector<24x512xf32>, i32 -> vector<24x512xf32>
    %c2_162 = arith.constant 2 : index
    %c6_163 = arith.constant 6 : index
    %c0_164 = arith.constant 0 : index
    %c0_165 = arith.constant 0 : index
    %185 = vector.load %arg2[%c2_162, %c6_163, %c0_164, %c0_165] : memref<3x9x8x24xf32, #tpu.memory_space<vmem>>, vector<1x1x8x24xf32>
    %186 = vector.shape_cast %185 : vector<1x1x8x24xf32> to vector<8x24xf32>
    %cst_166 = arith.constant dense<0.000000e+00> : vector<8x512xf32>
    %187 = tpu.matmul %186, %184, %cst_166 {dimension_numbers = #tpu.dot_dimension_numbers<[1], [0], [0], [1], [0, 0, 1, 1], [], []>} : vector<8x24xf32>, vector<24x512xf32>, vector<8x512xf32> -> vector<8x512xf32>
    %188 = vector.broadcast %8 : vector<1x512xf32> to vector<8x512xf32>
    %189 = arith.mulf %187, %188 : vector<8x512xf32>
    %190 = arith.addf %183, %189 : vector<8x512xf32>
    %c496_i32_167 = arith.constant 496 : i32
    %191 = tpu.dynamic_rotate %145 by %c496_i32_167 dim 1 : vector<24x512xf32>, i32 -> vector<24x512xf32>
    %c2_168 = arith.constant 2 : index
    %c7_169 = arith.constant 7 : index
    %c0_170 = arith.constant 0 : index
    %c0_171 = arith.constant 0 : index
    %192 = vector.load %arg2[%c2_168, %c7_169, %c0_170, %c0_171] : memref<3x9x8x24xf32, #tpu.memory_space<vmem>>, vector<1x1x8x24xf32>
    %193 = vector.shape_cast %192 : vector<1x1x8x24xf32> to vector<8x24xf32>
    %cst_172 = arith.constant dense<0.000000e+00> : vector<8x512xf32>
    %194 = tpu.matmul %193, %191, %cst_172 {dimension_numbers = #tpu.dot_dimension_numbers<[1], [0], [0], [1], [0, 0, 1, 1], [], []>} : vector<8x24xf32>, vector<24x512xf32>, vector<8x512xf32> -> vector<8x512xf32>
    %195 = vector.broadcast %9 : vector<1x512xf32> to vector<8x512xf32>
    %196 = arith.mulf %194, %195 : vector<8x512xf32>
    %197 = arith.addf %190, %196 : vector<8x512xf32>
    %c495_i32_173 = arith.constant 495 : i32
    %198 = tpu.dynamic_rotate %145 by %c495_i32_173 dim 1 : vector<24x512xf32>, i32 -> vector<24x512xf32>
    %c2_174 = arith.constant 2 : index
    %c8_175 = arith.constant 8 : index
    %c0_176 = arith.constant 0 : index
    %c0_177 = arith.constant 0 : index
    %199 = vector.load %arg2[%c2_174, %c8_175, %c0_176, %c0_177] : memref<3x9x8x24xf32, #tpu.memory_space<vmem>>, vector<1x1x8x24xf32>
    %200 = vector.shape_cast %199 : vector<1x1x8x24xf32> to vector<8x24xf32>
    %cst_178 = arith.constant dense<0.000000e+00> : vector<8x512xf32>
    %201 = tpu.matmul %200, %198, %cst_178 {dimension_numbers = #tpu.dot_dimension_numbers<[1], [0], [0], [1], [0, 0, 1, 1], [], []>} : vector<8x24xf32>, vector<24x512xf32>, vector<8x512xf32> -> vector<8x512xf32>
    %202 = vector.broadcast %10 : vector<1x512xf32> to vector<8x512xf32>
    %203 = arith.mulf %201, %202 : vector<8x512xf32>
    %204 = arith.addf %197, %203 : vector<8x512xf32>
    %c2_179 = arith.constant 2 : index
    %c0_180 = arith.constant 0 : index
    %c0_181 = arith.constant 0 : index
    %205 = vector.load %arg3[%c2_179, %c0_180, %c0_181] : memref<3x8x1xf32, #tpu.memory_space<vmem>>, vector<1x8x1xf32>
    %206 = vector.shape_cast %205 : vector<1x8x1xf32> to vector<8x1xf32>
    %207 = vector.broadcast %206 : vector<8x1xf32> to vector<8x512xf32>
    %208 = arith.addf %204, %207 : vector<8x512xf32>
    %cst_182 = arith.constant 0.000000e+00 : f32
    %209 = vector.broadcast %cst_182 : f32 to vector<8x512xf32>
    %210 = arith.maximumf %208, %209 : vector<8x512xf32>
    %c24 = arith.constant 24 : index
    %c0_183 = arith.constant 0 : index
    %211 = vector.load %arg8[%c24, %c0_183] : memref<32x512xf32, #tpu.memory_space<vmem>>, vector<8x512xf32>
    tpu.vector_store %arg8[%c24, %c0_183], %210 {strides = array<i32>} : memref<32x512xf32, #tpu.memory_space<vmem>>, vector<8x512xf32>,
    %c0_184 = arith.constant 0 : index
    %c0_185 = arith.constant 0 : index
    %212 = vector.load %arg4[%c0_184, %c0_185] : memref<8x32xf32, #tpu.memory_space<vmem>>, vector<8x32xf32>
    %c0_186 = arith.constant 0 : index
    %c0_187 = arith.constant 0 : index
    %213 = vector.load %arg8[%c0_186, %c0_187] : memref<32x512xf32, #tpu.memory_space<vmem>>, vector<32x512xf32>
    %cst_188 = arith.constant dense<0.000000e+00> : vector<8x512xf32>
    %214 = tpu.matmul %212, %213, %cst_188 {dimension_numbers = #tpu.dot_dimension_numbers<[1], [0], [0], [1], [0, 0, 1, 1], [], []>} : vector<8x32xf32>, vector<32x512xf32>, vector<8x512xf32> -> vector<8x512xf32>
    %c0_189 = arith.constant 0 : index
    %c0_190 = arith.constant 0 : index
    %215 = vector.load %arg5[%c0_189, %c0_190] : memref<8x1xf32, #tpu.memory_space<vmem>>, vector<8x1xf32>
    %216 = vector.broadcast %215 : vector<8x1xf32> to vector<8x512xf32>
    %217 = arith.addf %214, %216 : vector<8x512xf32>
    %218 = arith.addf %217, %1 : vector<8x512xf32>
    %c0_191 = arith.constant 0 : index
    %c0_192 = arith.constant 0 : index
    %c0_193 = arith.constant 0 : index
    %219 = vector.load %arg7[%c0_191, %c0_192, %c0_193] : memref<1x8x512xf32, #tpu.memory_space<vmem>>, vector<1x8x512xf32>
    %220 = vector.shape_cast %219 : vector<1x8x512xf32> to vector<8x512xf32>
    %221 = vector.shape_cast %218 : vector<8x512xf32> to vector<1x8x512xf32>
    tpu.vector_store %arg7[%c0_191, %c0_192, %c0_193], %221 {strides = array<i32>} : memref<1x8x512xf32, #tpu.memory_space<vmem>>, vector<1x8x512xf32>,
    return
  }
  func.func @transform_0(%arg0: i32) -> (i32, i32, i32) {
    %c0_i32 = arith.constant 0 : i32
    %c0_i32_0 = arith.constant 0 : i32
    %c0_i32_1 = arith.constant 0 : i32
    return %arg0, %c0_i32, %c0_i32_0 : i32, i32, i32
  }
  func.func @transform_1(%arg0: i32) -> (i32, i32, i32, i32) {
    %c0_i32 = arith.constant 0 : i32
    %c0_i32_0 = arith.constant 0 : i32
    %c0_i32_1 = arith.constant 0 : i32
    %c0_i32_2 = arith.constant 0 : i32
    %c0_i32_3 = arith.constant 0 : i32
    return %c0_i32, %c0_i32_0, %c0_i32_1, %c0_i32_2 : i32, i32, i32, i32
  }
  func.func @transform_2(%arg0: i32) -> (i32, i32, i32) {
    %c0_i32 = arith.constant 0 : i32
    %c0_i32_0 = arith.constant 0 : i32
    %c0_i32_1 = arith.constant 0 : i32
    %c0_i32_2 = arith.constant 0 : i32
    return %c0_i32, %c0_i32_0, %c0_i32_1 : i32, i32, i32
  }
  func.func @transform_3(%arg0: i32) -> (i32, i32) {
    %c0_i32 = arith.constant 0 : i32
    %c0_i32_0 = arith.constant 0 : i32
    %c0_i32_1 = arith.constant 0 : i32
    return %c0_i32, %c0_i32_0 : i32, i32
  }
  func.func @transform_4(%arg0: i32) -> (i32, i32) {
    %c0_i32 = arith.constant 0 : i32
    %c0_i32_0 = arith.constant 0 : i32
    %c0_i32_1 = arith.constant 0 : i32
    return %c0_i32, %c0_i32_0 : i32, i32
  }
  func.func @transform_5(%arg0: i32) -> (i32, i32) {
    %c0_i32 = arith.constant 0 : i32
    %c0_i32_0 = arith.constant 0 : i32
    %c0_i32_1 = arith.constant 0 : i32
    return %c0_i32, %c0_i32_0 : i32, i32
  }
  func.func @transform_6(%arg0: i32) -> (i32, i32, i32) {
    %c0_i32 = arith.constant 0 : i32
    %c0_i32_0 = arith.constant 0 : i32
    %c0_i32_1 = arith.constant 0 : i32
    return %arg0, %c0_i32, %c0_i32_0 : i32, i32, i32
  }
}

</mosaic_0001>

<llo_original>
// kernel: tpu_custom_call.1
$region0: #{tpu_custom_call.1}
  #allocation0 [shape = 'u32[]', space=smem, size = 0x4, offset = 0x4, fixed_abs, tag = 'smem constant byte address 0x4 - core index']
  #allocation1 [shape = 'u32[144,128]{1,0:T(1,128)}', space=vmem, size = 0x12000, scoped, tag = 'internal scratch']
  #allocation2 [shape = 'f32[32,512]{1,0:T(8,128)}', space=vmem, size = 0x10000, scoped, tag = 'scratch operand']
  %s0 = inlined_call_operand.vmem [shape: f32[1,8,512], index: 0, kind: input, shape index: {}]
  %s1 = inlined_call_operand.hbm [shape: f32[3,9,8,24], index: 1, kind: input, shape index: {}]
  %s2 = inlined_call_operand.vmem [shape: f32[3,8,1], index: 2, kind: input, shape index: {}]
  %s3 = inlined_call_operand.vmem [shape: f32[8,32], index: 3, kind: input, shape index: {}]
  %s4 = inlined_call_operand.vmem [shape: f32[8,1], index: 4, kind: input, shape index: {}]
  %s5 = inlined_call_operand.hbm [shape: f32[9,512], index: 5, kind: input, shape index: {}]
  %s6 = inlined_call_operand.hbm [shape: f32[1,8,512], index: 6, kind: output, shape index: {}]
  %s7 = sld [smem:[#allocation0]]
  $region42: #{tpu_custom_call.1} parent=0
    _
  %s9 = ssub.s32 1, %s7
  %s10 = scalar_select 0, %s9, %s7
  $region1: #{tpu_custom_call.1} parent=0
    #allocation3 [shape = 'u8[110592]{0}', space=vmem, size = 0x1b000, scoped, tag = 'input window, operand 1, single buffered']
    #allocation4 [shape = 's32[1]{0}', space=sflag, size = 0x4, scoped, tag = 'scoped memory for tpu_custom_call.1']
    #allocation5 [shape = 's32[1]{0}', space=sflag, size = 0x4, scoped, tag = 'scoped memory for tpu_custom_call.1']
    #allocation6 [shape = 'u8[32768]{0}', space=vmem, size = 0x8000, scoped, tag = 'input window, operand 5, single buffered']
    #allocation7 [shape = 's32[1]{0}', space=sflag, size = 0x4, scoped, tag = 'scoped memory for tpu_custom_call.1']
    #allocation8 [shape = 'u8[16384]{0}', space=vmem, size = 0x4000, scoped, tag = 'output window, operand 0, single buffered']
    %11 = vsyncpa [#allocation4], 0
    %12 = vsyncpa [#allocation7], 0
    %13 = vsyncpa [#allocation5], 0
    // Predicated region
    $region2: #{tpu_custom_call.1} parent=1 // pred_check
      _
    $region3: #{tpu_custom_call.1} parent=1 // pred_check_branch
      %15 = sbr.rel (0) target = $region5
    $region4: #{tpu_custom_call.1} parent=1 // pred_region
      _
    $region5: #{tpu_custom_call.1} parent=1 // pred_fallthru
      _
    // Predicated region
    $region6: #{tpu_custom_call.1} parent=1 // pred_check
      _
    $region7: #{tpu_custom_call.1} parent=1 // pred_check_branch
      %17 = sbr.rel (0) target = $region9
    $region8: #{tpu_custom_call.1} parent=1 // pred_region
      %s19 = ssub.s32 3456, 3456
      %20 = vsyncadd [#allocation4], %s19
      %s21 = sshll.u32 [#allocation3], 4
      %s22 = int_to_ptr.vmem [resolvable:$true] %s21
      %27 = dma.hbm_to_vmem [thread:$0]  %s1, 3456, %s22, [#allocation4], 128, 128, 8
    $region9: #{tpu_custom_call.1} parent=1 // pred_fallthru
      _
    // Predicated region
    $region10: #{tpu_custom_call.1} parent=1 // pred_check
      _
    $region11: #{tpu_custom_call.1} parent=1 // pred_check_branch
      %29 = sbr.rel (0) target = $region13
    $region12: #{tpu_custom_call.1} parent=1 // pred_region
      _
    $region13: #{tpu_custom_call.1} parent=1 // pred_fallthru
      _
    // Predicated region
    $region14: #{tpu_custom_call.1} parent=1 // pred_check
      _
    $region15: #{tpu_custom_call.1} parent=1 // pred_check_branch
      %31 = sbr.rel (0) target = $region17
    $region16: #{tpu_custom_call.1} parent=1 // pred_region
      _
    $region17: #{tpu_custom_call.1} parent=1 // pred_fallthru
      _
    // Predicated region
    $region18: #{tpu_custom_call.1} parent=1 // pred_check
      _
    $region19: #{tpu_custom_call.1} parent=1 // pred_check_branch
      %33 = sbr.rel (0) target = $region21
    $region20: #{tpu_custom_call.1} parent=1 // pred_region
      _
    $region21: #{tpu_custom_call.1} parent=1 // pred_fallthru
      _
    // Predicated region
    $region22: #{tpu_custom_call.1} parent=1 // pred_check
      _
    $region23: #{tpu_custom_call.1} parent=1 // pred_check_branch
      %35 = sbr.rel (0) target = $region25
    $region24: #{tpu_custom_call.1} parent=1 // pred_region
      %s37 = ssub.s32 1024, 1024
      %38 = vsyncadd [#allocation7], %s37
      %s39 = sshll.u32 [#allocation6], 4
      %s40 = int_to_ptr.vmem [resolvable:$true] %s39
      %45 = dma.hbm_to_vmem [thread:$0]  %s5, 1024, %s40, [#allocation7], 512, 512, 32
    $region25: #{tpu_custom_call.1} parent=1 // pred_fallthru
      _
    // Predicated region
    $region26: #{tpu_custom_call.1} parent=1 // pred_check
      _
    $region27: #{tpu_custom_call.1} parent=1 // pred_check_branch
      %47 = sbr.rel (0) target = $region29
    $region28: #{tpu_custom_call.1} parent=1 // pred_region
      %48 = dma.done [#allocation4], 3456
    $region29: #{tpu_custom_call.1} parent=1 // pred_fallthru
      _
    // Predicated region
    $region30: #{tpu_custom_call.1} parent=1 // pred_check
      _
    $region31: #{tpu_custom_call.1} parent=1 // pred_check_branch
      %50 = sbr.rel (0) target = $region33
    $region32: #{tpu_custom_call.1} parent=1 // pred_region
      %51 = dma.done [#allocation7], 1024
    $region33: #{tpu_custom_call.1} parent=1 // pred_fallthru
      _
    %v52 = vld [vmem:[%s0] sm:$0xff]
    %v53 = vld [vmem:[%s0 + $0x8] sm:$0xff]
    %v54 = vld [vmem:[%s0 + $0x10] sm:$0xff]
    %v55 = vld [vmem:[%s0 + $0x18] sm:$0xff]
    %56 = vst [vmem:[#allocation2] sm:$0xff] %v52
    %57 = vst [vmem:[#allocation2 + $0x8] sm:$0xff] %v53
    %58 = vst [vmem:[#allocation2 + $0x10] sm:$0xff] %v54
    %59 = vst [vmem:[#allocation2 + $0x18] sm:$0xff] %v55
    %v60 = vld [vmem:[#allocation6] ss:$8 sm:$0xf]
    %s61 = scalar_lea.vmem [#allocation6], 1
    %v62 = vld [vmem:[%s61] ss:$8 sm:$0xf]
    %s63 = scalar_lea.vmem [#allocation6], 2
    %v64 = vld [vmem:[%s63] ss:$8 sm:$0xf]
    %s65 = scalar_lea.vmem [#allocation6], 3
    %v66 = vld [vmem:[%s65] ss:$8 sm:$0xf]
    %s67 = scalar_lea.vmem [#allocation6], 5
    %v68 = vld [vmem:[%s67] ss:$8 sm:$0xf]
    %s69 = scalar_lea.vmem [#allocation6], 6
    %v70 = vld [vmem:[%s69] ss:$8 sm:$0xf]
    %s71 = scalar_lea.vmem [#allocation6], 7
    %v72 = vld [vmem:[%s71] ss:$8 sm:$0xf]
    %s73 = scalar_lea.vmem [#allocation6], 32
    %v74 = vld [vmem:[%s73] ss:$8 sm:$0xf]
    %v75 = vld [vmem:[#allocation2] sm:$0xff]
    %v76 = vld [vmem:[#allocation2 + $0x8] sm:$0xff]
    %v77 = vld [vmem:[#allocation2 + $0x10] sm:$0xff]
    %v78 = vld [vmem:[#allocation2 + $0x18] sm:$0xff]
    %79 = vrot.lane.b32.xlu0 %v75, 17
    %v80 = vpop.permute.xlu0 %79
    %81 = vrot.lane.b32.xlu0 %v76, 17
    %v82 = vpop.permute.xlu0 %81
    %83 = vrot.lane.b32.xlu0 %v77, 17
    %v84 = vpop.permute.xlu0 %83
    %85 = vrot.lane.b32.xlu0 %v78, 17
    %v86 = vpop.permute.xlu0 %85
    %v87 = vlaneseq
    %v88 = vand.u32 %v87, 127
    %vm89 = vcmp.lt.s32.totalorder %v88, 17
    %v90 = vsel %vm89, %v84, %v86
    %v91 = vsel %vm89, %v82, %v84
    %v92 = vsel %vm89, %v80, %v82
    %v93 = vsel %vm89, %v86, %v80
    %v94 = vld [vmem:[#allocation3] sm:$0xff]
    %vm95 = vcmask 64512
    %v97 = vsel %vm95, %v94, 0
    %99 = vmatprep.subr.mxu0 0.0
    %100 = vmatpush1.msra.mxu0 0.0
    %101 = vmatprep.subr.mxu0 0.0
    %102 = vmatpush1.msra.mxu0 0.0
    %103 = vmatprep.subr.mxu0 0.0
    %104 = vmatpush1.msra.mxu0 0.0
    %105 = vmatprep.subr.mxu0 0.0
    %106 = vmatpush1.msra.mxu0 0.0
    %107 = vmatprep.subr.mxu0 0.0
    %108 = vmatpush1.msra.mxu0 0.0
    %109 = vmatprep.subr.mxu0 0.0
    %110 = vmatpush1.msra.mxu0 0.0
    %111 = vmatprep.subr.mxu0 0.0
    %112 = vmatpush1.msra.mxu0 0.0
    %113 = vmatprep.subr.mxu0 0.0
    %114 = vmatpush1.msra.mxu0 0.0
    %115 = vmatprep.subr.mxu0 0.0
    %116 = vmatpush1.msra.mxu0 0.0
    %117 = vmatprep.subr.mxu0 0.0
    %118 = vmatpush1.msra.mxu0 0.0
    %119 = vmatprep.subr.mxu0 0.0
    %120 = vmatpush1.msra.mxu0 0.0
    %121 = vmatprep.subr.mxu0 0.0
    %122 = vmatpush1.msra.mxu0 0.0
    %123 = vmatprep.subr.mxu0 0.0
    %124 = vmatpush1.msra.mxu0 0.0
    %125 = vmatprep.subr.mxu0 0.0
    %126 = vmatpush1.msra.mxu0 0.0
    %127 = vmatprep.subr.mxu0 0.0
    %128 = vmatpush1.msra.mxu0 0.0
    %129 = vmatprep.subr.mxu0 %v92
    %130 = vmatpush1.msra.mxu0 %v93
    %131 = vmatprep.subr.mxu0 0.0
    %132 = vmatpush2.msra.mxu0 0.0
    %133 = vmatprep.subr.mxu0 0.0
    %134 = vmatpush2.msra.mxu0 0.0
    %135 = vmatprep.subr.mxu0 0.0
    %136 = vmatpush2.msra.mxu0 0.0
    %137 = vmatprep.subr.mxu0 0.0
    %138 = vmatpush2.msra.mxu0 0.0
    %139 = vmatprep.subr.mxu0 0.0
    %140 = vmatpush2.msra.mxu0 0.0
    %141 = vmatprep.subr.mxu0 0.0
    %142 = vmatpush2.msra.mxu0 0.0
    %143 = vmatprep.subr.mxu0 0.0
    %144 = vmatpush2.msra.mxu0 0.0
    %145 = vmatprep.subr.mxu0 0.0
    %146 = vmatpush2.msra.mxu0 0.0
    %147 = vmatprep.subr.mxu0 0.0
    %148 = vmatpush2.msra.mxu0 0.0
    %149 = vmatprep.subr.mxu0 0.0
    %150 = vmatpush2.msra.mxu0 0.0
    %151 = vmatprep.subr.mxu0 0.0
    %152 = vmatpush2.msra.mxu0 0.0
    %153 = vmatprep.subr.mxu0 0.0
    %154 = vmatpush2.msra.mxu0 0.0
    %155 = vmatprep.subr.mxu0 0.0
    %156 = vmatpush2.msra.mxu0 0.0
    %157 = vmatprep.subr.mxu0 0.0
    %158 = vmatpush2.msra.mxu0 0.0
    %159 = vmatprep.subr.mxu0 0.0
    %160 = vmatpush2.msra.mxu0 0.0
    %161 = vmatprep.subr.mxu0 0.0
    %162 = vmatpush2.msra.mxu0 0.0
    %163 = vmatprep.mubr.f32.mxu0 0.0
    %164 = vmatmul.mubr.f32.gmra.mxu0 %v97
    %v165 = vpop.f32.mrf.mxu0
    %v166 = vadd.f32 0.0, %v165
    %v167 = vpop.f32.mrf.mxu0
    %v168 = vadd.f32 0.0, %v167
    %169 = vdwg.mxu0
    %170 = vmatprep.subr.mxu0 0.0
    %171 = vmatpush1.msra.mxu0 0.0
    %172 = vmatprep.subr.mxu0 0.0
    %173 = vmatpush1.msra.mxu0 0.0
    %174 = vmatprep.subr.mxu0 0.0
    %175 = vmatpush1.msra.mxu0 0.0
    %176 = vmatprep.subr.mxu0 0.0
    %177 = vmatpush1.msra.mxu0 0.0
    %178 = vmatprep.subr.mxu0 0.0
    %179 = vmatpush1.msra.mxu0 0.0
    %180 = vmatprep.subr.mxu0 0.0
    %181 = vmatpush1.msra.mxu0 0.0
    %182 = vmatprep.subr.mxu0 0.0
    %183 = vmatpush1.msra.mxu0 0.0
    %184 = vmatprep.subr.mxu0 0.0
    %185 = vmatpush1.msra.mxu0 0.0
    %186 = vmatprep.subr.mxu0 0.0
    %187 = vmatpush1.msra.mxu0 0.0
    %188 = vmatprep.subr.mxu0 0.0
    %189 = vmatpush1.msra.mxu0 0.0
    %190 = vmatprep.subr.mxu0 0.0
    %191 = vmatpush1.msra.mxu0 0.0
    %192 = vmatprep.subr.mxu0 0.0
    %193 = vmatpush1.msra.mxu0 0.0
    %194 = vmatprep.subr.mxu0 0.0
    %195 = vmatpush1.msra.mxu0 0.0
    %196 = vmatprep.subr.mxu0 0.0
    %197 = vmatpush1.msra.mxu0 0.0
    %198 = vmatprep.subr.mxu0 0.0
    %199 = vmatpush1.msra.mxu0 0.0
    %200 = vmatprep.subr.mxu0 %v90
    %201 = vmatpush1.msra.mxu0 %v91
    %202 = vmatprep.subr.mxu0 0.0
    %203 = vmatpush2.msra.mxu0 0.0
    %204 = vmatprep.subr.mxu0 0.0
    %205 = vmatpush2.msra.mxu0 0.0
    %206 = vmatprep.subr.mxu0 0.0
    %207 = vmatpush2.msra.mxu0 0.0
    %208 = vmatprep.subr.mxu0 0.0
    %209 = vmatpush2.msra.mxu0 0.0
    %210 = vmatprep.subr.mxu0 0.0
    %211 = vmatpush2.msra.mxu0 0.0
    %212 = vmatprep.subr.mxu0 0.0
    %213 = vmatpush2.msra.mxu0 0.0
    %214 = vmatprep.subr.mxu0 0.0
    %215 = vmatpush2.msra.mxu0 0.0
    %216 = vmatprep.subr.mxu0 0.0
    %217 = vmatpush2.msra.mxu0 0.0
    %218 = vmatprep.subr.mxu0 0.0
    %219 = vmatpush2.msra.mxu0 0.0
    %220 = vmatprep.subr.mxu0 0.0
    %221 = vmatpush2.msra.mxu0 0.0
    %222 = vmatprep.subr.mxu0 0.0
    %223 = vmatpush2.msra.mxu0 0.0
    %224 = vmatprep.subr.mxu0 0.0
    %225 = vmatpush2.msra.mxu0 0.0
    %226 = vmatprep.subr.mxu0 0.0
    %227 = vmatpush2.msra.mxu0 0.0
    %228 = vmatprep.subr.mxu0 0.0
    %229 = vmatpush2.msra.mxu0 0.0
    %230 = vmatprep.subr.mxu0 0.0
    %231 = vmatpush2.msra.mxu0 0.0
    %232 = vmatprep.subr.mxu0 0.0
    %233 = vmatpush2.msra.mxu0 0.0
    %234 = vmatprep.mubr.f32.mxu0 0.0
    %235 = vmatmul.mubr.f32.gmra.mxu0 %v97
    %v236 = vpop.f32.mrf.mxu0
    %v237 = vadd.f32 0.0, %v236
    %v238 = vpop.f32.mrf.mxu0
    %v239 = vadd.f32 0.0, %v238
    %240 = vdwg.mxu0
    %v242 = vlaneseq
    %v243 = vshrl.u32 %v242, 7
    %v244 = vsub.s32 0, %v243
    %v245 = vrot.slane %v60, %v244
    %v246 = vlaneseq
    %v247 = vshrl.u32 %v246, 7
    %v248 = vsub.s32 1, %v247
    %v249 = vrot.slane %v60, %v248
    %v250 = vlaneseq
    %v251 = vshrl.u32 %v250, 7
    %v252 = vsub.s32 2, %v251
    %v253 = vrot.slane %v60, %v252
    %v254 = vlaneseq
    %v255 = vshrl.u32 %v254, 7
    %v256 = vsub.s32 3, %v255
    %v257 = vrot.slane %v60, %v256
    %v262 = vmul.f32 %v166, %v245
    %v263 = vmul.f32 %v168, %v249
    %v264 = vmul.f32 %v237, %v253
    %v265 = vmul.f32 %v239, %v257
    %266 = vrot.lane.b32.xlu0 %v75, 16
    %v267 = vpop.permute.xlu0 %266
    %268 = vrot.lane.b32.xlu0 %v76, 16
    %v269 = vpop.permute.xlu0 %268
    %270 = vrot.lane.b32.xlu0 %v77, 16
    %v271 = vpop.permute.xlu0 %270
    %272 = vrot.lane.b32.xlu0 %v78, 16
    %v273 = vpop.permute.xlu0 %272
    %vm274 = vcmp.lt.s32.totalorder %v88, 16
    %v275 = vsel %vm274, %v271, %v273
    %v276 = vsel %vm274, %v269, %v271
    %v277 = vsel %vm274, %v267, %v269
    %v278 = vsel %vm274, %v273, %v267
    %s279 = scalar_lea.vmem [#allocation3], 8
    %v280 = vld [vmem:[%s279] sm:$0xff]
    %v282 = vsel %vm95, %v280, 0
    %284 = vmatprep.subr.mxu0 0.0
    %285 = vmatpush1.msra.mxu0 0.0
    %286 = vmatprep.subr.mxu0 0.0
    %287 = vmatpush1.msra.mxu0 0.0
    %288 = vmatprep.subr.mxu0 0.0
    %289 = vmatpush1.msra.mxu0 0.0
    %290 = vmatprep.subr.mxu0 0.0
    %291 = vmatpush1.msra.mxu0 0.0
    %292 = vmatprep.subr.mxu0 0.0
    %293 = vmatpush1.msra.mxu0 0.0
    %294 = vmatprep.subr.mxu0 0.0
    %295 = vmatpush1.msra.mxu0 0.0
    %296 = vmatprep.subr.mxu0 0.0
    %297 = vmatpush1.msra.mxu0 0.0
    %298 = vmatprep.subr.mxu0 0.0
    %299 = vmatpush1.msra.mxu0 0.0
    %300 = vmatprep.subr.mxu0 0.0
    %301 = vmatpush1.msra.mxu0 0.0
    %302 = vmatprep.subr.mxu0 0.0
    %303 = vmatpush1.msra.mxu0 0.0
    %304 = vmatprep.subr.mxu0 0.0
    %305 = vmatpush1.msra.mxu0 0.0
    %306 = vmatprep.subr.mxu0 0.0
    %307 = vmatpush1.msra.mxu0 0.0
    %308 = vmatprep.subr.mxu0 0.0
    %309 = vmatpush1.msra.mxu0 0.0
    %310 = vmatprep.subr.mxu0 0.0
    %311 = vmatpush1.msra.mxu0 0.0
    %312 = vmatprep.subr.mxu0 0.0
    %313 = vmatpush1.msra.mxu0 0.0
    %314 = vmatprep.subr.mxu0 %v277
    %315 = vmatpush1.msra.mxu0 %v278
    %316 = vmatprep.subr.mxu0 0.0
    %317 = vmatpush2.msra.mxu0 0.0
    %318 = vmatprep.subr.mxu0 0.0
    %319 = vmatpush2.msra.mxu0 0.0
    %320 = vmatprep.subr.mxu0 0.0
    %321 = vmatpush2.msra.mxu0 0.0
    %322 = vmatprep.subr.mxu0 0.0
    %323 = vmatpush2.msra.mxu0 0.0
    %324 = vmatprep.subr.mxu0 0.0
    %325 = vmatpush2.msra.mxu0 0.0
    %326 = vmatprep.subr.mxu0 0.0
    %327 = vmatpush2.msra.mxu0 0.0
    %328 = vmatprep.subr.mxu0 0.0
    %329 = vmatpush2.msra.mxu0 0.0
    %330 = vmatprep.subr.mxu0 0.0
    %331 = vmatpush2.msra.mxu0 0.0
    %332 = vmatprep.subr.mxu0 0.0
    %333 = vmatpush2.msra.mxu0 0.0
    %334 = vmatprep.subr.mxu0 0.0
    %335 = vmatpush2.msra.mxu0 0.0
    %336 = vmatprep.subr.mxu0 0.0
    %337 = vmatpush2.msra.mxu0 0.0
    %338 = vmatprep.subr.mxu0 0.0
    %339 = vmatpush2.msra.mxu0 0.0
    %340 = vmatprep.subr.mxu0 0.0
    %341 = vmatpush2.msra.mxu0 0.0
    %342 = vmatprep.subr.mxu0 0.0
    %343 = vmatpush2.msra.mxu0 0.0
    %344 = vmatprep.subr.mxu0 0.0
    %345 = vmatpush2.msra.mxu0 0.0
    %346 = vmatprep.subr.mxu0 0.0
    %347 = vmatpush2.msra.mxu0 0.0
    %348 = vmatprep.mubr.f32.mxu0 0.0
    %349 = vmatmul.mubr.f32.gmra.mxu0 %v282
    %v350 = vpop.f32.mrf.mxu0
    %v351 = vadd.f32 0.0, %v350
    %v352 = vpop.f32.mrf.mxu0
    %v353 = vadd.f32 0.0, %v352
    %354 = vdwg.mxu0
    %355 = vmatprep.subr.mxu0 0.0
    %356 = vmatpush1.msra.mxu0 0.0
    %357 = vmatprep.subr.mxu0 0.0
    %358 = vmatpush1.msra.mxu0 0.0
    %359 = vmatprep.subr.mxu0 0.0
    %360 = vmatpush1.msra.mxu0 0.0
    %361 = vmatprep.subr.mxu0 0.0
    %362 = vmatpush1.msra.mxu0 0.0
    %363 = vmatprep.subr.mxu0 0.0
    %364 = vmatpush1.msra.mxu0 0.0
    %365 = vmatprep.subr.mxu0 0.0
    %366 = vmatpush1.msra.mxu0 0.0
    %367 = vmatprep.subr.mxu0 0.0
    %368 = vmatpush1.msra.mxu0 0.0
    %369 = vmatprep.subr.mxu0 0.0
    %370 = vmatpush1.msra.mxu0 0.0
    %371 = vmatprep.subr.mxu0 0.0
    %372 = vmatpush1.msra.mxu0 0.0
    %373 = vmatprep.subr.mxu0 0.0
    %374 = vmatpush1.msra.mxu0 0.0
    %375 = vmatprep.subr.mxu0 0.0
    %376 = vmatpush1.msra.mxu0 0.0
    %377 = vmatprep.subr.mxu0 0.0
    %378 = vmatpush1.msra.mxu0 0.0
    %379 = vmatprep.subr.mxu0 0.0
    %380 = vmatpush1.msra.mxu0 0.0
    %381 = vmatprep.subr.mxu0 0.0
    %382 = vmatpush1.msra.mxu0 0.0
    %383 = vmatprep.subr.mxu0 0.0
    %384 = vmatpush1.msra.mxu0 0.0
    %385 = vmatprep.subr.mxu0 %v275
    %386 = vmatpush1.msra.mxu0 %v276
    %387 = vmatprep.subr.mxu0 0.0
    %388 = vmatpush2.msra.mxu0 0.0
    %389 = vmatprep.subr.mxu0 0.0
    %390 = vmatpush2.msra.mxu0 0.0
    %391 = vmatprep.subr.mxu0 0.0
    %392 = vmatpush2.msra.mxu0 0.0
    %393 = vmatprep.subr.mxu0 0.0
    %394 = vmatpush2.msra.mxu0 0.0
    %395 = vmatprep.subr.mxu0 0.0
    %396 = vmatpush2.msra.mxu0 0.0
    %397 = vmatprep.subr.mxu0 0.0
    %398 = vmatpush2.msra.mxu0 0.0
    %399 = vmatprep.subr.mxu0 0.0
    %400 = vmatpush2.msra.mxu0 0.0
    %401 = vmatprep.subr.mxu0 0.0
    %402 = vmatpush2.msra.mxu0 0.0
    %403 = vmatprep.subr.mxu0 0.0
    %404 = vmatpush2.msra.mxu0 0.0
    %405 = vmatprep.subr.mxu0 0.0
    %406 = vmatpush2.msra.mxu0 0.0
    %407 = vmatprep.subr.mxu0 0.0
    %408 = vmatpush2.msra.mxu0 0.0
    %409 = vmatprep.subr.mxu0 0.0
    %410 = vmatpush2.msra.mxu0 0.0
    %411 = vmatprep.subr.mxu0 0.0
    %412 = vmatpush2.msra.mxu0 0.0
    %413 = vmatprep.subr.mxu0 0.0
    %414 = vmatpush2.msra.mxu0 0.0
    %415 = vmatprep.subr.mxu0 0.0
    %416 = vmatpush2.msra.mxu0 0.0
    %417 = vmatprep.subr.mxu0 0.0
    %418 = vmatpush2.msra.mxu0 0.0
    %419 = vmatprep.mubr.f32.mxu0 0.0
    %420 = vmatmul.mubr.f32.gmra.mxu0 %v282
    %v421 = vpop.f32.mrf.mxu0
    %v422 = vadd.f32 0.0, %v421
    %v423 = vpop.f32.mrf.mxu0
    %v424 = vadd.f32 0.0, %v423
    %425 = vdwg.mxu0
    %v427 = vlaneseq
    %v428 = vshrl.u32 %v427, 7
    %v429 = vsub.s32 0, %v428
    %v430 = vrot.slane %v62, %v429
    %v431 = vlaneseq
    %v432 = vshrl.u32 %v431, 7
    %v433 = vsub.s32 1, %v432
    %v434 = vrot.slane %v62, %v433
    %v435 = vlaneseq
    %v436 = vshrl.u32 %v435, 7
    %v437 = vsub.s32 2, %v436
    %v438 = vrot.slane %v62, %v437
    %v439 = vlaneseq
    %v440 = vshrl.u32 %v439, 7
    %v441 = vsub.s32 3, %v440
    %v442 = vrot.slane %v62, %v441
    %v447 = vmul.f32 %v351, %v430
    %v448 = vmul.f32 %v353, %v434
    %v449 = vmul.f32 %v422, %v438
    %v450 = vmul.f32 %v424, %v442
    %v451 = vadd.f32 %v262, %v447
    %v452 = vadd.f32 %v263, %v448
    %v453 = vadd.f32 %v264, %v449
    %v454 = vadd.f32 %v265, %v450
    %455 = vrot.lane.b32.xlu0 %v75, 15
    %v456 = vpop.permute.xlu0 %455
    %457 = vrot.lane.b32.xlu0 %v76, 15
    %v458 = vpop.permute.xlu0 %457
    %459 = vrot.lane.b32.xlu0 %v77, 15
    %v460 = vpop.permute.xlu0 %459
    %461 = vrot.lane.b32.xlu0 %v78, 15
    %v462 = vpop.permute.xlu0 %461
    %vm463 = vcmp.lt.s32.totalorder %v88, 15
    %v464 = vsel %vm463, %v460, %v462
    %v465 = vsel %vm463, %v458, %v460
    %v466 = vsel %vm463, %v456, %v458
    %v467 = vsel %vm463, %v462, %v456
    %s468 = scalar_lea.vmem [#allocation3], 16
    %v469 = vld [vmem:[%s468] sm:$0xff]
    %v471 = vsel %vm95, %v469, 0
    %473 = vmatprep.subr.mxu0 0.0
    %474 = vmatpush1.msra.mxu0 0.0
    %475 = vmatprep.subr.mxu0 0.0
    %476 = vmatpush1.msra.mxu0 0.0
    %477 = vmatprep.subr.mxu0 0.0
    %478 = vmatpush1.msra.mxu0 0.0
    %479 = vmatprep.subr.mxu0 0.0
    %480 = vmatpush1.msra.mxu0 0.0
    %481 = vmatprep.subr.mxu0 0.0
    %482 = vmatpush1.msra.mxu0 0.0
    %483 = vmatprep.subr.mxu0 0.0
    %484 = vmatpush1.msra.mxu0 0.0
    %485 = vmatprep.subr.mxu0 0.0
    %486 = vmatpush1.msra.mxu0 0.0
    %487 = vmatprep.subr.mxu0 0.0
    %488 = vmatpush1.msra.mxu0 0.0
    %489 = vmatprep.subr.mxu0 0.0
    %490 = vmatpush1.msra.mxu0 0.0
    %491 = vmatprep.subr.mxu0 0.0
    %492 = vmatpush1.msra.mxu0 0.0
    %493 = vmatprep.subr.mxu0 0.0
    %494 = vmatpush1.msra.mxu0 0.0
    %495 = vmatprep.subr.mxu0 0.0
    %496 = vmatpush1.msra.mxu0 0.0
    %497 = vmatprep.subr.mxu0 0.0
    %498 = vmatpush1.msra.mxu0 0.0
    %499 = vmatprep.subr.mxu0 0.0
    %500 = vmatpush1.msra.mxu0 0.0
    %501 = vmatprep.subr.mxu0 0.0
    %502 = vmatpush1.msra.mxu0 0.0
    %503 = vmatprep.subr.mxu0 %v466
    %504 = vmatpush1.msra.mxu0 %v467
    %505 = vmatprep.subr.mxu0 0.0
    %506 = vmatpush2.msra.mxu0 0.0
    %507 = vmatprep.subr.mxu0 0.0
    %508 = vmatpush2.msra.mxu0 0.0
    %509 = vmatprep.subr.mxu0 0.0
    %510 = vmatpush2.msra.mxu0 0.0
    %511 = vmatprep.subr.mxu0 0.0
    %512 = vmatpush2.msra.mxu0 0.0
    %513 = vmatprep.subr.mxu0 0.0
    %514 = vmatpush2.msra.mxu0 0.0
    %515 = vmatprep.subr.mxu0 0.0
    %516 = vmatpush2.msra.mxu0 0.0
    %517 = vmatprep.subr.mxu0 0.0
    %518 = vmatpush2.msra.mxu0 0.0
    %519 = vmatprep.subr.mxu0 0.0
    %520 = vmatpush2.msra.mxu0 0.0
    %521 = vmatprep.subr.mxu0 0.0
    %522 = vmatpush2.msra.mxu0 0.0
    %523 = vmatprep.subr.mxu0 0.0
    %524 = vmatpush2.msra.mxu0 0.0
    %525 = vmatprep.subr.mxu0 0.0
    %526 = vmatpush2.msra.mxu0 0.0
    %527 = vmatprep.subr.mxu0 0.0
    %528 = vmatpush2.msra.mxu0 0.0
    %529 = vmatprep.subr.mxu0 0.0
    %530 = vmatpush2.msra.mxu0 0.0
    %531 = vmatprep.subr.mxu0 0.0
    %532 = vmatpush2.msra.mxu0 0.0
    %533 = vmatprep.subr.mxu0 0.0
    %534 = vmatpush2.msra.mxu0 0.0
    %535 = vmatprep.subr.mxu0 0.0
    %536 = vmatpush2.msra.mxu0 0.0
    %537 = vmatprep.mubr.f32.mxu0 0.0
    %538 = vmatmul.mubr.f32.gmra.mxu0 %v471
    %v539 = vpop.f32.mrf.mxu0
    %v540 = vadd.f32 0.0, %v539
    %v541 = vpop.f32.mrf.mxu0
    %v542 = vadd.f32 0.0, %v541
    %543 = vdwg.mxu0
    %544 = vmatprep.subr.mxu0 0.0
    %545 = vmatpush1.msra.mxu0 0.0
    %546 = vmatprep.subr.mxu0 0.0
    %547 = vmatpush1.msra.mxu0 0.0
    %548 = vmatprep.subr.mxu0 0.0
    %549 = vmatpush1.msra.mxu0 0.0
    %550 = vmatprep.subr.mxu0 0.0
    %551 = vmatpush1.msra.mxu0 0.0
    %552 = vmatprep.subr.mxu0 0.0
    %553 = vmatpush1.msra.mxu0 0.0
    %554 = vmatprep.subr.mxu0 0.0
    %555 = vmatpush1.msra.mxu0 0.0
    %556 = vmatprep.subr.mxu0 0.0
    %557 = vmatpush1.msra.mxu0 0.0
    %558 = vmatprep.subr.mxu0 0.0
    %559 = vmatpush1.msra.mxu0 0.0
    %560 = vmatprep.subr.mxu0 0.0
    %561 = vmatpush1.msra.mxu0 0.0
    %562 = vmatprep.subr.mxu0 0.0
    %563 = vmatpush1.msra.mxu0 0.0
    %564 = vmatprep.subr.mxu0 0.0
    %565 = vmatpush1.msra.mxu0 0.0
    %566 = vmatprep.subr.mxu0 0.0
    %567 = vmatpush1.msra.mxu0 0.0
    %568 = vmatprep.subr.mxu0 0.0
    %569 = vmatpush1.msra.mxu0 0.0
    %570 = vmatprep.subr.mxu0 0.0
    %571 = vmatpush1.msra.mxu0 0.0
    %572 = vmatprep.subr.mxu0 0.0
    %573 = vmatpush1.msra.mxu0 0.0
    %574 = vmatprep.subr.mxu0 %v464
    %575 = vmatpush1.msra.mxu0 %v465
    %576 = vmatprep.subr.mxu0 0.0
    %577 = vmatpush2.msra.mxu0 0.0
    %578 = vmatprep.subr.mxu0 0.0
    %579 = vmatpush2.msra.mxu0 0.0
    %580 = vmatprep.subr.mxu0 0.0
    %581 = vmatpush2.msra.mxu0 0.0
    %582 = vmatprep.subr.mxu0 0.0
    %583 = vmatpush2.msra.mxu0 0.0
    %584 = vmatprep.subr.mxu0 0.0
    %585 = vmatpush2.msra.mxu0 0.0
    %586 = vmatprep.subr.mxu0 0.0
    %587 = vmatpush2.msra.mxu0 0.0
    %588 = vmatprep.subr.mxu0 0.0
    %589 = vmatpush2.msra.mxu0 0.0
    %590 = vmatprep.subr.mxu0 0.0
    %591 = vmatpush2.msra.mxu0 0.0
    %592 = vmatprep.subr.mxu0 0.0
    %593 = vmatpush2.msra.mxu0 0.0
    %594 = vmatprep.subr.mxu0 0.0
    %595 = vmatpush2.msra.mxu0 0.0
    %596 = vmatprep.subr.mxu0 0.0
    %597 = vmatpush2.msra.mxu0 0.0
    %598 = vmatprep.subr.mxu0 0.0
    %599 = vmatpush2.msra.mxu0 0.0
    %600 = vmatprep.subr.mxu0 0.0
    %601 = vmatpush2.msra.mxu0 0.0
    %602 = vmatprep.subr.mxu0 0.0
    %603 = vmatpush2.msra.mxu0 0.0
    %604 = vmatprep.subr.mxu0 0.0
    %605 = vmatpush2.msra.mxu0 0.0
    %606 = vmatprep.subr.mxu0 0.0
    %607 = vmatpush2.msra.mxu0 0.0
    %608 = vmatprep.mubr.f32.mxu0 0.0
    %609 = vmatmul.mubr.f32.gmra.mxu0 %v471
    %v610 = vpop.f32.mrf.mxu0
    %v611 = vadd.f32 0.0, %v610
    %v612 = vpop.f32.mrf.mxu0
    %v613 = vadd.f32 0.0, %v612
    %614 = vdwg.mxu0
    %v616 = vlaneseq
    %v617 = vshrl.u32 %v616, 7
    %v618 = vsub.s32 0, %v617
    %v619 = vrot.slane %v64, %v618
    %v620 = vlaneseq
    %v621 = vshrl.u32 %v620, 7
    %v622 = vsub.s32 1, %v621
    %v623 = vrot.slane %v64, %v622
    %v624 = vlaneseq
    %v625 = vshrl.u32 %v624, 7
    %v626 = vsub.s32 2, %v625
    %v627 = vrot.slane %v64, %v626
    %v628 = vlaneseq
    %v629 = vshrl.u32 %v628, 7
    %v630 = vsub.s32 3, %v629
    %v631 = vrot.slane %v64, %v630
    %v636 = vmul.f32 %v540, %v619
    %v637 = vmul.f32 %v542, %v623
    %v638 = vmul.f32 %v611, %v627
    %v639 = vmul.f32 %v613, %v631
    %v640 = vadd.f32 %v451, %v636
    %v641 = vadd.f32 %v452, %v637
    %v642 = vadd.f32 %v453, %v638
    %v643 = vadd.f32 %v454, %v639
    %644 = vrot.lane.b32.xlu0 %v75, 1
    %v645 = vpop.permute.xlu0 %644
    %646 = vrot.lane.b32.xlu0 %v76, 1
    %v647 = vpop.permute.xlu0 %646
    %648 = vrot.lane.b32.xlu0 %v77, 1
    %v649 = vpop.permute.xlu0 %648
    %650 = vrot.lane.b32.xlu0 %v78, 1
    %v651 = vpop.permute.xlu0 %650
    %vm652 = vcmp.lt.s32.totalorder %v88, 1
    %v653 = vsel %vm652, %v649, %v651
    %v654 = vsel %vm652, %v647, %v649
    %v655 = vsel %vm652, %v645, %v647
    %v656 = vsel %vm652, %v651, %v645
    %s657 = scalar_lea.vmem [#allocation3], 24
    %v658 = vld [vmem:[%s657] sm:$0xff]
    %v660 = vsel %vm95, %v658, 0
    %662 = vmatprep.subr.mxu0 0.0
    %663 = vmatpush1.msra.mxu0 0.0
    %664 = vmatprep.subr.mxu0 0.0
    %665 = vmatpush1.msra.mxu0 0.0
    %666 = vmatprep.subr.mxu0 0.0
    %667 = vmatpush1.msra.mxu0 0.0
    %668 = vmatprep.subr.mxu0 0.0
    %669 = vmatpush1.msra.mxu0 0.0
    %670 = vmatprep.subr.mxu0 0.0
    %671 = vmatpush1.msra.mxu0 0.0
    %672 = vmatprep.subr.mxu0 0.0
    %673 = vmatpush1.msra.mxu0 0.0
    %674 = vmatprep.subr.mxu0 0.0
    %675 = vmatpush1.msra.mxu0 0.0
    %676 = vmatprep.subr.mxu0 0.0
    %677 = vmatpush1.msra.mxu0 0.0
    %678 = vmatprep.subr.mxu0 0.0
    %679 = vmatpush1.msra.mxu0 0.0
    %680 = vmatprep.subr.mxu0 0.0
    %681 = vmatpush1.msra.mxu0 0.0
    %682 = vmatprep.subr.mxu0 0.0
    %683 = vmatpush1.msra.mxu0 0.0
    %684 = vmatprep.subr.mxu0 0.0
    %685 = vmatpush1.msra.mxu0 0.0
    %686 = vmatprep.subr.mxu0 0.0
    %687 = vmatpush1.msra.mxu0 0.0
    %688 = vmatprep.subr.mxu0 0.0
    %689 = vmatpush1.msra.mxu0 0.0
    %690 = vmatprep.subr.mxu0 0.0
    %691 = vmatpush1.msra.mxu0 0.0
    %692 = vmatprep.subr.mxu0 %v655
    %693 = vmatpush1.msra.mxu0 %v656
    %694 = vmatprep.subr.mxu0 0.0
    %695 = vmatpush2.msra.mxu0 0.0
    %696 = vmatprep.subr.mxu0 0.0
    %697 = vmatpush2.msra.mxu0 0.0
    %698 = vmatprep.subr.mxu0 0.0
    %699 = vmatpush2.msra.mxu0 0.0
    %700 = vmatprep.subr.mxu0 0.0
    %701 = vmatpush2.msra.mxu0 0.0
    %702 = vmatprep.subr.mxu0 0.0
    %703 = vmatpush2.msra.mxu0 0.0
    %704 = vmatprep.subr.mxu0 0.0
    %705 = vmatpush2.msra.mxu0 0.0
    %706 = vmatprep.subr.mxu0 0.0
    %707 = vmatpush2.msra.mxu0 0.0
    %708 = vmatprep.subr.mxu0 0.0
    %709 = vmatpush2.msra.mxu0 0.0
    %710 = vmatprep.subr.mxu0 0.0
    %711 = vmatpush2.msra.mxu0 0.0
    %712 = vmatprep.subr.mxu0 0.0
    %713 = vmatpush2.msra.mxu0 0.0
    %714 = vmatprep.subr.mxu0 0.0
    %715 = vmatpush2.msra.mxu0 0.0
    %716 = vmatprep.subr.mxu0 0.0
    %717 = vmatpush2.msra.mxu0 0.0
    %718 = vmatprep.subr.mxu0 0.0
    %719 = vmatpush2.msra.mxu0 0.0
    %720 = vmatprep.subr.mxu0 0.0
    %721 = vmatpush2.msra.mxu0 0.0
    %722 = vmatprep.subr.mxu0 0.0
    %723 = vmatpush2.msra.mxu0 0.0
    %724 = vmatprep.subr.mxu0 0.0
    %725 = vmatpush2.msra.mxu0 0.0
    %726 = vmatprep.mubr.f32.mxu0 0.0
    %727 = vmatmul.mubr.f32.gmra.mxu0 %v660
    %v728 = vpop.f32.mrf.mxu0
    %v729 = vadd.f32 0.0, %v728
    %v730 = vpop.f32.mrf.mxu0
    %v731 = vadd.f32 0.0, %v730
    %732 = vdwg.mxu0
    %733 = vmatprep.subr.mxu0 0.0
    %734 = vmatpush1.msra.mxu0 0.0
    %735 = vmatprep.subr.mxu0 0.0
    %736 = vmatpush1.msra.mxu0 0.0
    %737 = vmatprep.subr.mxu0 0.0
    %738 = vmatpush1.msra.mxu0 0.0
    %739 = vmatprep.subr.mxu0 0.0
    %740 = vmatpush1.msra.mxu0 0.0
    %741 = vmatprep.subr.mxu0 0.0
    %742 = vmatpush1.msra.mxu0 0.0
    %743 = vmatprep.subr.mxu0 0.0
    %744 = vmatpush1.msra.mxu0 0.0
    %745 = vmatprep.subr.mxu0 0.0
    %746 = vmatpush1.msra.mxu0 0.0
    %747 = vmatprep.subr.mxu0 0.0
    %748 = vmatpush1.msra.mxu0 0.0
    %749 = vmatprep.subr.mxu0 0.0
    %750 = vmatpush1.msra.mxu0 0.0
    %751 = vmatprep.subr.mxu0 0.0
    %752 = vmatpush1.msra.mxu0 0.0
    %753 = vmatprep.subr.mxu0 0.0
    %754 = vmatpush1.msra.mxu0 0.0
    %755 = vmatprep.subr.mxu0 0.0
    %756 = vmatpush1.msra.mxu0 0.0
    %757 = vmatprep.subr.mxu0 0.0
    %758 = vmatpush1.msra.mxu0 0.0
    %759 = vmatprep.subr.mxu0 0.0
    %760 = vmatpush1.msra.mxu0 0.0
    %761 = vmatprep.subr.mxu0 0.0
    %762 = vmatpush1.msra.mxu0 0.0
    %763 = vmatprep.subr.mxu0 %v653
    %764 = vmatpush1.msra.mxu0 %v654
    %765 = vmatprep.subr.mxu0 0.0
    %766 = vmatpush2.msra.mxu0 0.0
    %767 = vmatprep.subr.mxu0 0.0
    %768 = vmatpush2.msra.mxu0 0.0
    %769 = vmatprep.subr.mxu0 0.0
    %770 = vmatpush2.msra.mxu0 0.0
    %771 = vmatprep.subr.mxu0 0.0
    %772 = vmatpush2.msra.mxu0 0.0
    %773 = vmatprep.subr.mxu0 0.0
    %774 = vmatpush2.msra.mxu0 0.0
    %775 = vmatprep.subr.mxu0 0.0
    %776 = vmatpush2.msra.mxu0 0.0
    %777 = vmatprep.subr.mxu0 0.0
    %778 = vmatpush2.msra.mxu0 0.0
    %779 = vmatprep.subr.mxu0 0.0
    %780 = vmatpush2.msra.mxu0 0.0
    %781 = vmatprep.subr.mxu0 0.0
    %782 = vmatpush2.msra.mxu0 0.0
    %783 = vmatprep.subr.mxu0 0.0
    %784 = vmatpush2.msra.mxu0 0.0
    %785 = vmatprep.subr.mxu0 0.0
    %786 = vmatpush2.msra.mxu0 0.0
    %787 = vmatprep.subr.mxu0 0.0
    %788 = vmatpush2.msra.mxu0 0.0
    %789 = vmatprep.subr.mxu0 0.0
    %790 = vmatpush2.msra.mxu0 0.0
    %791 = vmatprep.subr.mxu0 0.0
    %792 = vmatpush2.msra.mxu0 0.0
    %793 = vmatprep.subr.mxu0 0.0
    %794 = vmatpush2.msra.mxu0 0.0
    %795 = vmatprep.subr.mxu0 0.0
    %796 = vmatpush2.msra.mxu0 0.0
    %797 = vmatprep.mubr.f32.mxu0 0.0
    %798 = vmatmul.mubr.f32.gmra.mxu0 %v660
    %v799 = vpop.f32.mrf.mxu0
    %v800 = vadd.f32 0.0, %v799
    %v801 = vpop.f32.mrf.mxu0
    %v802 = vadd.f32 0.0, %v801
    %803 = vdwg.mxu0
    %v805 = vlaneseq
    %v806 = vshrl.u32 %v805, 7
    %v807 = vsub.s32 0, %v806
    %v808 = vrot.slane %v66, %v807
    %v809 = vlaneseq
    %v810 = vshrl.u32 %v809, 7
    %v811 = vsub.s32 1, %v810
    %v812 = vrot.slane %v66, %v811
    %v813 = vlaneseq
    %v814 = vshrl.u32 %v813, 7
    %v815 = vsub.s32 2, %v814
    %v816 = vrot.slane %v66, %v815
    %v817 = vlaneseq
    %v818 = vshrl.u32 %v817, 7
    %v819 = vsub.s32 3, %v818
    %v820 = vrot.slane %v66, %v819
    %v825 = vmul.f32 %v729, %v808
    %v826 = vmul.f32 %v731, %v812
    %v827 = vmul.f32 %v800, %v816
    %v828 = vmul.f32 %v802, %v820
    %v829 = vadd.f32 %v640, %v825
    %v830 = vadd.f32 %v641, %v826
    %v831 = vadd.f32 %v642, %v827
    %v832 = vadd.f32 %v643, %v828
    %s833 = scalar_lea.vmem [#allocation3], 32
    %v834 = vld [vmem:[%s833] sm:$0xff]
    %v836 = vsel %vm95, %v834, 0
    %838 = vmatprep.subr.mxu0 0.0
    %839 = vmatpush1.msra.mxu0 0.0
    %840 = vmatprep.subr.mxu0 0.0
    %841 = vmatpush1.msra.mxu0 0.0
    %842 = vmatprep.subr.mxu0 0.0
    %843 = vmatpush1.msra.mxu0 0.0
    %844 = vmatprep.subr.mxu0 0.0
    %845 = vmatpush1.msra.mxu0 0.0
    %846 = vmatprep.subr.mxu0 0.0
    %847 = vmatpush1.msra.mxu0 0.0
    %848 = vmatprep.subr.mxu0 0.0
    %849 = vmatpush1.msra.mxu0 0.0
    %850 = vmatprep.subr.mxu0 0.0
    %851 = vmatpush1.msra.mxu0 0.0
    %852 = vmatprep.subr.mxu0 0.0
    %853 = vmatpush1.msra.mxu0 0.0
    %854 = vmatprep.subr.mxu0 0.0
    %855 = vmatpush1.msra.mxu0 0.0
    %856 = vmatprep.subr.mxu0 0.0
    %857 = vmatpush1.msra.mxu0 0.0
    %858 = vmatprep.subr.mxu0 0.0
    %859 = vmatpush1.msra.mxu0 0.0
    %860 = vmatprep.subr.mxu0 0.0
    %861 = vmatpush1.msra.mxu0 0.0
    %862 = vmatprep.subr.mxu0 0.0
    %863 = vmatpush1.msra.mxu0 0.0
    %864 = vmatprep.subr.mxu0 0.0
    %865 = vmatpush1.msra.mxu0 0.0
    %866 = vmatprep.subr.mxu0 0.0
    %867 = vmatpush1.msra.mxu0 0.0
    %868 = vmatprep.subr.mxu0 %v76
    %869 = vmatpush1.msra.mxu0 %v75
    %870 = vmatprep.subr.mxu0 0.0
    %871 = vmatpush2.msra.mxu0 0.0
    %872 = vmatprep.subr.mxu0 0.0
    %873 = vmatpush2.msra.mxu0 0.0
    %874 = vmatprep.subr.mxu0 0.0
    %875 = vmatpush2.msra.mxu0 0.0
    %876 = vmatprep.subr.mxu0 0.0
    %877 = vmatpush2.msra.mxu0 0.0
    %878 = vmatprep.subr.mxu0 0.0
    %879 = vmatpush2.msra.mxu0 0.0
    %880 = vmatprep.subr.mxu0 0.0
    %881 = vmatpush2.msra.mxu0 0.0
    %882 = vmatprep.subr.mxu0 0.0
    %883 = vmatpush2.msra.mxu0 0.0
    %884 = vmatprep.subr.mxu0 0.0
    %885 = vmatpush2.msra.mxu0 0.0
    %886 = vmatprep.subr.mxu0 0.0
    %887 = vmatpush2.msra.mxu0 0.0
    %888 = vmatprep.subr.mxu0 0.0
    %889 = vmatpush2.msra.mxu0 0.0
    %890 = vmatprep.subr.mxu0 0.0
    %891 = vmatpush2.msra.mxu0 0.0
    %892 = vmatprep.subr.mxu0 0.0
    %893 = vmatpush2.msra.mxu0 0.0
    %894 = vmatprep.subr.mxu0 0.0
    %895 = vmatpush2.msra.mxu0 0.0
    %896 = vmatprep.subr.mxu0 0.0
    %897 = vmatpush2.msra.mxu0 0.0
    %898 = vmatprep.subr.mxu0 0.0
    %899 = vmatpush2.msra.mxu0 0.0
    %900 = vmatprep.subr.mxu0 0.0
    %901 = vmatpush2.msra.mxu0 0.0
    %902 = vmatprep.mubr.f32.mxu0 0.0
    %903 = vmatmul.mubr.f32.gmra.mxu0 %v836
    %v904 = vpop.f32.mrf.mxu0
    %v905 = vadd.f32 0.0, %v904
    %v906 = vpop.f32.mrf.mxu0
    %v907 = vadd.f32 0.0, %v906
    %908 = vdwg.mxu0
    %909 = vmatprep.subr.mxu0 0.0
    %910 = vmatpush1.msra.mxu0 0.0
    %911 = vmatprep.subr.mxu0 0.0
    %912 = vmatpush1.msra.mxu0 0.0
    %913 = vmatprep.subr.mxu0 0.0
    %914 = vmatpush1.msra.mxu0 0.0
    %915 = vmatprep.subr.mxu0 0.0
    %916 = vmatpush1.msra.mxu0 0.0
    %917 = vmatprep.subr.mxu0 0.0
    %918 = vmatpush1.msra.mxu0 0.0
    %919 = vmatprep.subr.mxu0 0.0
    %920 = vmatpush1.msra.mxu0 0.0
    %921 = vmatprep.subr.mxu0 0.0
    %922 = vmatpush1.msra.mxu0 0.0
    %923 = vmatprep.subr.mxu0 0.0
    %924 = vmatpush1.msra.mxu0 0.0
    %925 = vmatprep.subr.mxu0 0.0
    %926 = vmatpush1.msra.mxu0 0.0
    %927 = vmatprep.subr.mxu0 0.0
    %928 = vmatpush1.msra.mxu0 0.0
    %929 = vmatprep.subr.mxu0 0.0
    %930 = vmatpush1.msra.mxu0 0.0
    %931 = vmatprep.subr.mxu0 0.0
    %932 = vmatpush1.msra.mxu0 0.0
    %933 = vmatprep.subr.mxu0 0.0
    %934 = vmatpush1.msra.mxu0 0.0
    %935 = vmatprep.subr.mxu0 0.0
    %936 = vmatpush1.msra.mxu0 0.0
    %937 = vmatprep.subr.mxu0 0.0
    %938 = vmatpush1.msra.mxu0 0.0
    %939 = vmatprep.subr.mxu0 %v78
    %940 = vmatpush1.msra.mxu0 %v77
    %941 = vmatprep.subr.mxu0 0.0
    %942 = vmatpush2.msra.mxu0 0.0
    %943 = vmatprep.subr.mxu0 0.0
    %944 = vmatpush2.msra.mxu0 0.0
    %945 = vmatprep.subr.mxu0 0.0
    %946 = vmatpush2.msra.mxu0 0.0
    %947 = vmatprep.subr.mxu0 0.0
    %948 = vmatpush2.msra.mxu0 0.0
    %949 = vmatprep.subr.mxu0 0.0
    %950 = vmatpush2.msra.mxu0 0.0
    %951 = vmatprep.subr.mxu0 0.0
    %952 = vmatpush2.msra.mxu0 0.0
    %953 = vmatprep.subr.mxu0 0.0
    %954 = vmatpush2.msra.mxu0 0.0
    %955 = vmatprep.subr.mxu0 0.0
    %956 = vmatpush2.msra.mxu0 0.0
    %957 = vmatprep.subr.mxu0 0.0
    %958 = vmatpush2.msra.mxu0 0.0
    %959 = vmatprep.subr.mxu0 0.0
    %960 = vmatpush2.msra.mxu0 0.0
    %961 = vmatprep.subr.mxu0 0.0
    %962 = vmatpush2.msra.mxu0 0.0
    %963 = vmatprep.subr.mxu0 0.0
    %964 = vmatpush2.msra.mxu0 0.0
    %965 = vmatprep.subr.mxu0 0.0
    %966 = vmatpush2.msra.mxu0 0.0
    %967 = vmatprep.subr.mxu0 0.0
    %968 = vmatpush2.msra.mxu0 0.0
    %969 = vmatprep.subr.mxu0 0.0
    %970 = vmatpush2.msra.mxu0 0.0
    %971 = vmatprep.subr.mxu0 0.0
    %972 = vmatpush2.msra.mxu0 0.0
    %973 = vmatprep.mubr.f32.mxu0 0.0
    %974 = vmatmul.mubr.f32.gmra.mxu0 %v836
    %v975 = vpop.f32.mrf.mxu0
    %v976 = vadd.f32 0.0, %v975
    %v977 = vpop.f32.mrf.mxu0
    %v978 = vadd.f32 0.0, %v977
    %979 = vdwg.mxu0
    %v980 = vadd.f32 %v829, %v905
    %v981 = vadd.f32 %v830, %v907
    %v982 = vadd.f32 %v831, %v976
    %v983 = vadd.f32 %v832, %v978
    %984 = vrot.lane.b32.xlu0 %v75, 127
    %v985 = vpop.permute.xlu0 %984
    %986 = vrot.lane.b32.xlu0 %v76, 127
    %v987 = vpop.permute.xlu0 %986
    %988 = vrot.lane.b32.xlu0 %v77, 127
    %v989 = vpop.permute.xlu0 %988
    %990 = vrot.lane.b32.xlu0 %v78, 127
    %v991 = vpop.permute.xlu0 %990
    %vm992 = vcmp.lt.s32.totalorder %v88, 127
    %v993 = vsel %vm992, %v989, %v991
    %v994 = vsel %vm992, %v987, %v989
    %v995 = vsel %vm992, %v985, %v987
    %v996 = vsel %vm992, %v991, %v985
    %s997 = scalar_lea.vmem [#allocation3], 40
    %v998 = vld [vmem:[%s997] sm:$0xff]
    %v1000 = vsel %vm95, %v998, 0
    %1002 = vmatprep.subr.mxu0 0.0
    %1003 = vmatpush1.msra.mxu0 0.0
    %1004 = vmatprep.subr.mxu0 0.0
    %1005 = vmatpush1.msra.mxu0 0.0
    %1006 = vmatprep.subr.mxu0 0.0
    %1007 = vmatpush1.msra.mxu0 0.0
    %1008 = vmatprep.subr.mxu0 0.0
    %1009 = vmatpush1.msra.mxu0 0.0
    %1010 = vmatprep.subr.mxu0 0.0
    %1011 = vmatpush1.msra.mxu0 0.0
    %1012 = vmatprep.subr.mxu0 0.0
    %1013 = vmatpush1.msra.mxu0 0.0
    %1014 = vmatprep.subr.mxu0 0.0
    %1015 = vmatpush1.msra.mxu0 0.0
    %1016 = vmatprep.subr.mxu0 0.0
    %1017 = vmatpush1.msra.mxu0 0.0
    %1018 = vmatprep.subr.mxu0 0.0
    %1019 = vmatpush1.msra.mxu0 0.0
    %1020 = vmatprep.subr.mxu0 0.0
    %1021 = vmatpush1.msra.mxu0 0.0
    %1022 = vmatprep.subr.mxu0 0.0
    %1023 = vmatpush1.msra.mxu0 0.0
    %1024 = vmatprep.subr.mxu0 0.0
    %1025 = vmatpush1.msra.mxu0 0.0
    %1026 = vmatprep.subr.mxu0 0.0
    %1027 = vmatpush1.msra.mxu0 0.0
    %1028 = vmatprep.subr.mxu0 0.0
    %1029 = vmatpush1.msra.mxu0 0.0
    %1030 = vmatprep.subr.mxu0 0.0
    %1031 = vmatpush1.msra.mxu0 0.0
    %1032 = vmatprep.subr.mxu0 %v994
    %1033 = vmatpush1.msra.mxu0 %v995
    %1034 = vmatprep.subr.mxu0 0.0
    %1035 = vmatpush2.msra.mxu0 0.0
    %1036 = vmatprep.subr.mxu0 0.0
    %1037 = vmatpush2.msra.mxu0 0.0
    %1038 = vmatprep.subr.mxu0 0.0
    %1039 = vmatpush2.msra.mxu0 0.0
    %1040 = vmatprep.subr.mxu0 0.0
    %1041 = vmatpush2.msra.mxu0 0.0
    %1042 = vmatprep.subr.mxu0 0.0
    %1043 = vmatpush2.msra.mxu0 0.0
    %1044 = vmatprep.subr.mxu0 0.0
    %1045 = vmatpush2.msra.mxu0 0.0
    %1046 = vmatprep.subr.mxu0 0.0
    %1047 = vmatpush2.msra.mxu0 0.0
    %1048 = vmatprep.subr.mxu0 0.0
    %1049 = vmatpush2.msra.mxu0 0.0
    %1050 = vmatprep.subr.mxu0 0.0
    %1051 = vmatpush2.msra.mxu0 0.0
    %1052 = vmatprep.subr.mxu0 0.0
    %1053 = vmatpush2.msra.mxu0 0.0
    %1054 = vmatprep.subr.mxu0 0.0
    %1055 = vmatpush2.msra.mxu0 0.0
    %1056 = vmatprep.subr.mxu0 0.0
    %1057 = vmatpush2.msra.mxu0 0.0
    %1058 = vmatprep.subr.mxu0 0.0
    %1059 = vmatpush2.msra.mxu0 0.0
    %1060 = vmatprep.subr.mxu0 0.0
    %1061 = vmatpush2.msra.mxu0 0.0
    %1062 = vmatprep.subr.mxu0 0.0
    %1063 = vmatpush2.msra.mxu0 0.0
    %1064 = vmatprep.subr.mxu0 0.0
    %1065 = vmatpush2.msra.mxu0 0.0
    %1066 = vmatprep.mubr.f32.mxu0 0.0
    %1067 = vmatmul.mubr.f32.gmra.mxu0 %v1000
    %v1068 = vpop.f32.mrf.mxu0
    %v1069 = vadd.f32 0.0, %v1068
    %v1070 = vpop.f32.mrf.mxu0
    %v1071 = vadd.f32 0.0, %v1070
    %1072 = vdwg.mxu0
    %1073 = vmatprep.subr.mxu0 0.0
    %1074 = vmatpush1.msra.mxu0 0.0
    %1075 = vmatprep.subr.mxu0 0.0
    %1076 = vmatpush1.msra.mxu0 0.0
    %1077 = vmatprep.subr.mxu0 0.0
    %1078 = vmatpush1.msra.mxu0 0.0
    %1079 = vmatprep.subr.mxu0 0.0
    %1080 = vmatpush1.msra.mxu0 0.0
    %1081 = vmatprep.subr.mxu0 0.0
    %1082 = vmatpush1.msra.mxu0 0.0
    %1083 = vmatprep.subr.mxu0 0.0
    %1084 = vmatpush1.msra.mxu0 0.0
    %1085 = vmatprep.subr.mxu0 0.0
    %1086 = vmatpush1.msra.mxu0 0.0
    %1087 = vmatprep.subr.mxu0 0.0
    %1088 = vmatpush1.msra.mxu0 0.0
    %1089 = vmatprep.subr.mxu0 0.0
    %1090 = vmatpush1.msra.mxu0 0.0
    %1091 = vmatprep.subr.mxu0 0.0
    %1092 = vmatpush1.msra.mxu0 0.0
    %1093 = vmatprep.subr.mxu0 0.0
    %1094 = vmatpush1.msra.mxu0 0.0
    %1095 = vmatprep.subr.mxu0 0.0
    %1096 = vmatpush1.msra.mxu0 0.0
    %1097 = vmatprep.subr.mxu0 0.0
    %1098 = vmatpush1.msra.mxu0 0.0
    %1099 = vmatprep.subr.mxu0 0.0
    %1100 = vmatpush1.msra.mxu0 0.0
    %1101 = vmatprep.subr.mxu0 0.0
    %1102 = vmatpush1.msra.mxu0 0.0
    %1103 = vmatprep.subr.mxu0 %v996
    %1104 = vmatpush1.msra.mxu0 %v993
    %1105 = vmatprep.subr.mxu0 0.0
    %1106 = vmatpush2.msra.mxu0 0.0
    %1107 = vmatprep.subr.mxu0 0.0
    %1108 = vmatpush2.msra.mxu0 0.0
    %1109 = vmatprep.subr.mxu0 0.0
    %1110 = vmatpush2.msra.mxu0 0.0
    %1111 = vmatprep.subr.mxu0 0.0
    %1112 = vmatpush2.msra.mxu0 0.0
    %1113 = vmatprep.subr.mxu0 0.0
    %1114 = vmatpush2.msra.mxu0 0.0
    %1115 = vmatprep.subr.mxu0 0.0
    %1116 = vmatpush2.msra.mxu0 0.0
    %1117 = vmatprep.subr.mxu0 0.0
    %1118 = vmatpush2.msra.mxu0 0.0
    %1119 = vmatprep.subr.mxu0 0.0
    %1120 = vmatpush2.msra.mxu0 0.0
    %1121 = vmatprep.subr.mxu0 0.0
    %1122 = vmatpush2.msra.mxu0 0.0
    %1123 = vmatprep.subr.mxu0 0.0
    %1124 = vmatpush2.msra.mxu0 0.0
    %1125 = vmatprep.subr.mxu0 0.0
    %1126 = vmatpush2.msra.mxu0 0.0
    %1127 = vmatprep.subr.mxu0 0.0
    %1128 = vmatpush2.msra.mxu0 0.0
    %1129 = vmatprep.subr.mxu0 0.0
    %1130 = vmatpush2.msra.mxu0 0.0
    %1131 = vmatprep.subr.mxu0 0.0
    %1132 = vmatpush2.msra.mxu0 0.0
    %1133 = vmatprep.subr.mxu0 0.0
    %1134 = vmatpush2.msra.mxu0 0.0
    %1135 = vmatprep.subr.mxu0 0.0
    %1136 = vmatpush2.msra.mxu0 0.0
    %1137 = vmatprep.mubr.f32.mxu0 0.0
    %1138 = vmatmul.mubr.f32.gmra.mxu0 %v1000
    %v1139 = vpop.f32.mrf.mxu0
    %v1140 = vadd.f32 0.0, %v1139
    %v1141 = vpop.f32.mrf.mxu0
    %v1142 = vadd.f32 0.0, %v1141
    %1143 = vdwg.mxu0
    %v1145 = vlaneseq
    %v1146 = vshrl.u32 %v1145, 7
    %v1147 = vsub.s32 0, %v1146
    %v1148 = vrot.slane %v68, %v1147
    %v1149 = vlaneseq
    %v1150 = vshrl.u32 %v1149, 7
    %v1151 = vsub.s32 1, %v1150
    %v1152 = vrot.slane %v68, %v1151
    %v1153 = vlaneseq
    %v1154 = vshrl.u32 %v1153, 7
    %v1155 = vsub.s32 2, %v1154
    %v1156 = vrot.slane %v68, %v1155
    %v1157 = vlaneseq
    %v1158 = vshrl.u32 %v1157, 7
    %v1159 = vsub.s32 3, %v1158
    %v1160 = vrot.slane %v68, %v1159
    %v1165 = vmul.f32 %v1069, %v1148
    %v1166 = vmul.f32 %v1071, %v1152
    %v1167 = vmul.f32 %v1140, %v1156
    %v1168 = vmul.f32 %v1142, %v1160
    %v1169 = vadd.f32 %v980, %v1165
    %v1170 = vadd.f32 %v981, %v1166
    %v1171 = vadd.f32 %v982, %v1167
    %v1172 = vadd.f32 %v983, %v1168
    %1173 = vrot.lane.b32.xlu0 %v75, 113
    %v1174 = vpop.permute.xlu0 %1173
    %1175 = vrot.lane.b32.xlu0 %v76, 113
    %v1176 = vpop.permute.xlu0 %1175
    %1177 = vrot.lane.b32.xlu0 %v77, 113
    %v1178 = vpop.permute.xlu0 %1177
    %1179 = vrot.lane.b32.xlu0 %v78, 113
    %v1180 = vpop.permute.xlu0 %1179
    %vm1181 = vcmp.lt.s32.totalorder %v88, 113
    %v1182 = vsel %vm1181, %v1178, %v1180
    %v1183 = vsel %vm1181, %v1176, %v1178
    %v1184 = vsel %vm1181, %v1174, %v1176
    %v1185 = vsel %vm1181, %v1180, %v1174
    %s1186 = scalar_lea.vmem [#allocation3], 48
    %v1187 = vld [vmem:[%s1186] sm:$0xff]
    %v1189 = vsel %vm95, %v1187, 0
    %1191 = vmatprep.subr.mxu0 0.0
    %1192 = vmatpush1.msra.mxu0 0.0
    %1193 = vmatprep.subr.mxu0 0.0
    %1194 = vmatpush1.msra.mxu0 0.0
    %1195 = vmatprep.subr.mxu0 0.0
    %1196 = vmatpush1.msra.mxu0 0.0
    %1197 = vmatprep.subr.mxu0 0.0
    %1198 = vmatpush1.msra.mxu0 0.0
    %1199 = vmatprep.subr.mxu0 0.0
    %1200 = vmatpush1.msra.mxu0 0.0
    %1201 = vmatprep.subr.mxu0 0.0
    %1202 = vmatpush1.msra.mxu0 0.0
    %1203 = vmatprep.subr.mxu0 0.0
    %1204 = vmatpush1.msra.mxu0 0.0
    %1205 = vmatprep.subr.mxu0 0.0
    %1206 = vmatpush1.msra.mxu0 0.0
    %1207 = vmatprep.subr.mxu0 0.0
    %1208 = vmatpush1.msra.mxu0 0.0
    %1209 = vmatprep.subr.mxu0 0.0
    %1210 = vmatpush1.msra.mxu0 0.0
    %1211 = vmatprep.subr.mxu0 0.0
    %1212 = vmatpush1.msra.mxu0 0.0
    %1213 = vmatprep.subr.mxu0 0.0
    %1214 = vmatpush1.msra.mxu0 0.0
    %1215 = vmatprep.subr.mxu0 0.0
    %1216 = vmatpush1.msra.mxu0 0.0
    %1217 = vmatprep.subr.mxu0 0.0
    %1218 = vmatpush1.msra.mxu0 0.0
    %1219 = vmatprep.subr.mxu0 0.0
    %1220 = vmatpush1.msra.mxu0 0.0
    %1221 = vmatprep.subr.mxu0 %v1183
    %1222 = vmatpush1.msra.mxu0 %v1184
    %1223 = vmatprep.subr.mxu0 0.0
    %1224 = vmatpush2.msra.mxu0 0.0
    %1225 = vmatprep.subr.mxu0 0.0
    %1226 = vmatpush2.msra.mxu0 0.0
    %1227 = vmatprep.subr.mxu0 0.0
    %1228 = vmatpush2.msra.mxu0 0.0
    %1229 = vmatprep.subr.mxu0 0.0
    %1230 = vmatpush2.msra.mxu0 0.0
    %1231 = vmatprep.subr.mxu0 0.0
    %1232 = vmatpush2.msra.mxu0 0.0
    %1233 = vmatprep.subr.mxu0 0.0
    %1234 = vmatpush2.msra.mxu0 0.0
    %1235 = vmatprep.subr.mxu0 0.0
    %1236 = vmatpush2.msra.mxu0 0.0
    %1237 = vmatprep.subr.mxu0 0.0
    %1238 = vmatpush2.msra.mxu0 0.0
    %1239 = vmatprep.subr.mxu0 0.0
    %1240 = vmatpush2.msra.mxu0 0.0
    %1241 = vmatprep.subr.mxu0 0.0
    %1242 = vmatpush2.msra.mxu0 0.0
    %1243 = vmatprep.subr.mxu0 0.0
    %1244 = vmatpush2.msra.mxu0 0.0
    %1245 = vmatprep.subr.mxu0 0.0
    %1246 = vmatpush2.msra.mxu0 0.0
    %1247 = vmatprep.subr.mxu0 0.0
    %1248 = vmatpush2.msra.mxu0 0.0
    %1249 = vmatprep.subr.mxu0 0.0
    %1250 = vmatpush2.msra.mxu0 0.0
    %1251 = vmatprep.subr.mxu0 0.0
    %1252 = vmatpush2.msra.mxu0 0.0
    %1253 = vmatprep.subr.mxu0 0.0
    %1254 = vmatpush2.msra.mxu0 0.0
    %1255 = vmatprep.mubr.f32.mxu0 0.0
    %1256 = vmatmul.mubr.f32.gmra.mxu0 %v1189
    %v1257 = vpop.f32.mrf.mxu0
    %v1258 = vadd.f32 0.0, %v1257
    %v1259 = vpop.f32.mrf.mxu0
    %v1260 = vadd.f32 0.0, %v1259
    %1261 = vdwg.mxu0
    %1262 = vmatprep.subr.mxu0 0.0
    %1263 = vmatpush1.msra.mxu0 0.0
    %1264 = vmatprep.subr.mxu0 0.0
    %1265 = vmatpush1.msra.mxu0 0.0
    %1266 = vmatprep.subr.mxu0 0.0
    %1267 = vmatpush1.msra.mxu0 0.0
    %1268 = vmatprep.subr.mxu0 0.0
    %1269 = vmatpush1.msra.mxu0 0.0
    %1270 = vmatprep.subr.mxu0 0.0
    %1271 = vmatpush1.msra.mxu0 0.0
    %1272 = vmatprep.subr.mxu0 0.0
    %1273 = vmatpush1.msra.mxu0 0.0
    %1274 = vmatprep.subr.mxu0 0.0
    %1275 = vmatpush1.msra.mxu0 0.0
    %1276 = vmatprep.subr.mxu0 0.0
    %1277 = vmatpush1.msra.mxu0 0.0
    %1278 = vmatprep.subr.mxu0 0.0
    %1279 = vmatpush1.msra.mxu0 0.0
    %1280 = vmatprep.subr.mxu0 0.0
    %1281 = vmatpush1.msra.mxu0 0.0
    %1282 = vmatprep.subr.mxu0 0.0
    %1283 = vmatpush1.msra.mxu0 0.0
    %1284 = vmatprep.subr.mxu0 0.0
    %1285 = vmatpush1.msra.mxu0 0.0
    %1286 = vmatprep.subr.mxu0 0.0
    %1287 = vmatpush1.msra.mxu0 0.0
    %1288 = vmatprep.subr.mxu0 0.0
    %1289 = vmatpush1.msra.mxu0 0.0
    %1290 = vmatprep.subr.mxu0 0.0
    %1291 = vmatpush1.msra.mxu0 0.0
    %1292 = vmatprep.subr.mxu0 %v1185
    %1293 = vmatpush1.msra.mxu0 %v1182
    %1294 = vmatprep.subr.mxu0 0.0
    %1295 = vmatpush2.msra.mxu0 0.0
    %1296 = vmatprep.subr.mxu0 0.0
    %1297 = vmatpush2.msra.mxu0 0.0
    %1298 = vmatprep.subr.mxu0 0.0
    %1299 = vmatpush2.msra.mxu0 0.0
    %1300 = vmatprep.subr.mxu0 0.0
    %1301 = vmatpush2.msra.mxu0 0.0
    %1302 = vmatprep.subr.mxu0 0.0
    %1303 = vmatpush2.msra.mxu0 0.0
    %1304 = vmatprep.subr.mxu0 0.0
    %1305 = vmatpush2.msra.mxu0 0.0
    %1306 = vmatprep.subr.mxu0 0.0
    %1307 = vmatpush2.msra.mxu0 0.0
    %1308 = vmatprep.subr.mxu0 0.0
    %1309 = vmatpush2.msra.mxu0 0.0
    %1310 = vmatprep.subr.mxu0 0.0
    %1311 = vmatpush2.msra.mxu0 0.0
    %1312 = vmatprep.subr.mxu0 0.0
    %1313 = vmatpush2.msra.mxu0 0.0
    %1314 = vmatprep.subr.mxu0 0.0
    %1315 = vmatpush2.msra.mxu0 0.0
    %1316 = vmatprep.subr.mxu0 0.0
    %1317 = vmatpush2.msra.mxu0 0.0
    %1318 = vmatprep.subr.mxu0 0.0
    %1319 = vmatpush2.msra.mxu0 0.0
    %1320 = vmatprep.subr.mxu0 0.0
    %1321 = vmatpush2.msra.mxu0 0.0
    %1322 = vmatprep.subr.mxu0 0.0
    %1323 = vmatpush2.msra.mxu0 0.0
    %1324 = vmatprep.subr.mxu0 0.0
    %1325 = vmatpush2.msra.mxu0 0.0
    %1326 = vmatprep.mubr.f32.mxu0 0.0
    %1327 = vmatmul.mubr.f32.gmra.mxu0 %v1189
    %v1328 = vpop.f32.mrf.mxu0
    %v1329 = vadd.f32 0.0, %v1328
    %v1330 = vpop.f32.mrf.mxu0
    %v1331 = vadd.f32 0.0, %v1330
    %1332 = vdwg.mxu0
    %v1334 = vlaneseq
    %v1335 = vshrl.u32 %v1334, 7
    %v1336 = vsub.s32 0, %v1335
    %v1337 = vrot.slane %v70, %v1336
    %v1338 = vlaneseq
    %v1339 = vshrl.u32 %v1338, 7
    %v1340 = vsub.s32 1, %v1339
    %v1341 = vrot.slane %v70, %v1340
    %v1342 = vlaneseq
    %v1343 = vshrl.u32 %v1342, 7
    %v1344 = vsub.s32 2, %v1343
    %v1345 = vrot.slane %v70, %v1344
    %v1346 = vlaneseq
    %v1347 = vshrl.u32 %v1346, 7
    %v1348 = vsub.s32 3, %v1347
    %v1349 = vrot.slane %v70, %v1348
    %v1354 = vmul.f32 %v1258, %v1337
    %v1355 = vmul.f32 %v1260, %v1341
    %v1356 = vmul.f32 %v1329, %v1345
    %v1357 = vmul.f32 %v1331, %v1349
    %v1358 = vadd.f32 %v1169, %v1354
    %v1359 = vadd.f32 %v1170, %v1355
    %v1360 = vadd.f32 %v1171, %v1356
    %v1361 = vadd.f32 %v1172, %v1357
    %1362 = vrot.lane.b32.xlu0 %v75, 112
    %v1363 = vpop.permute.xlu0 %1362
    %1364 = vrot.lane.b32.xlu0 %v76, 112
    %v1365 = vpop.permute.xlu0 %1364
    %1366 = vrot.lane.b32.xlu0 %v77, 112
    %v1367 = vpop.permute.xlu0 %1366
    %1368 = vrot.lane.b32.xlu0 %v78, 112
    %v1369 = vpop.permute.xlu0 %1368
    %vm1370 = vcmp.lt.s32.totalorder %v88, 112
    %v1371 = vsel %vm1370, %v1367, %v1369
    %v1372 = vsel %vm1370, %v1365, %v1367
    %v1373 = vsel %vm1370, %v1363, %v1365
    %v1374 = vsel %vm1370, %v1369, %v1363
    %s1375 = scalar_lea.vmem [#allocation3], 56
    %v1376 = vld [vmem:[%s1375] sm:$0xff]
    %v1378 = vsel %vm95, %v1376, 0
    %1380 = vmatprep.subr.mxu0 0.0
    %1381 = vmatpush1.msra.mxu0 0.0
    %1382 = vmatprep.subr.mxu0 0.0
    %1383 = vmatpush1.msra.mxu0 0.0
    %1384 = vmatprep.subr.mxu0 0.0
    %1385 = vmatpush1.msra.mxu0 0.0
    %1386 = vmatprep.subr.mxu0 0.0
    %1387 = vmatpush1.msra.mxu0 0.0
    %1388 = vmatprep.subr.mxu0 0.0
    %1389 = vmatpush1.msra.mxu0 0.0
    %1390 = vmatprep.subr.mxu0 0.0
    %1391 = vmatpush1.msra.mxu0 0.0
    %1392 = vmatprep.subr.mxu0 0.0
    %1393 = vmatpush1.msra.mxu0 0.0
    %1394 = vmatprep.subr.mxu0 0.0
    %1395 = vmatpush1.msra.mxu0 0.0
    %1396 = vmatprep.subr.mxu0 0.0
    %1397 = vmatpush1.msra.mxu0 0.0
    %1398 = vmatprep.subr.mxu0 0.0
    %1399 = vmatpush1.msra.mxu0 0.0
    %1400 = vmatprep.subr.mxu0 0.0
    %1401 = vmatpush1.msra.mxu0 0.0
    %1402 = vmatprep.subr.mxu0 0.0
    %1403 = vmatpush1.msra.mxu0 0.0
    %1404 = vmatprep.subr.mxu0 0.0
    %1405 = vmatpush1.msra.mxu0 0.0
    %1406 = vmatprep.subr.mxu0 0.0
    %1407 = vmatpush1.msra.mxu0 0.0
    %1408 = vmatprep.subr.mxu0 0.0
    %1409 = vmatpush1.msra.mxu0 0.0
    %1410 = vmatprep.subr.mxu0 %v1372
    %1411 = vmatpush1.msra.mxu0 %v1373
    %1412 = vmatprep.subr.mxu0 0.0
    %1413 = vmatpush2.msra.mxu0 0.0
    %1414 = vmatprep.subr.mxu0 0.0
    %1415 = vmatpush2.msra.mxu0 0.0
    %1416 = vmatprep.subr.mxu0 0.0
    %1417 = vmatpush2.msra.mxu0 0.0
    %1418 = vmatprep.subr.mxu0 0.0
    %1419 = vmatpush2.msra.mxu0 0.0
    %1420 = vmatprep.subr.mxu0 0.0
    %1421 = vmatpush2.msra.mxu0 0.0
    %1422 = vmatprep.subr.mxu0 0.0
    %1423 = vmatpush2.msra.mxu0 0.0
    %1424 = vmatprep.subr.mxu0 0.0
    %1425 = vmatpush2.msra.mxu0 0.0
    %1426 = vmatprep.subr.mxu0 0.0
    %1427 = vmatpush2.msra.mxu0 0.0
    %1428 = vmatprep.subr.mxu0 0.0
    %1429 = vmatpush2.msra.mxu0 0.0
    %1430 = vmatprep.subr.mxu0 0.0
    %1431 = vmatpush2.msra.mxu0 0.0
    %1432 = vmatprep.subr.mxu0 0.0
    %1433 = vmatpush2.msra.mxu0 0.0
    %1434 = vmatprep.subr.mxu0 0.0
    %1435 = vmatpush2.msra.mxu0 0.0
    %1436 = vmatprep.subr.mxu0 0.0
    %1437 = vmatpush2.msra.mxu0 0.0
    %1438 = vmatprep.subr.mxu0 0.0
    %1439 = vmatpush2.msra.mxu0 0.0
    %1440 = vmatprep.subr.mxu0 0.0
    %1441 = vmatpush2.msra.mxu0 0.0
    %1442 = vmatprep.subr.mxu0 0.0
    %1443 = vmatpush2.msra.mxu0 0.0
    %1444 = vmatprep.mubr.f32.mxu0 0.0
    %1445 = vmatmul.mubr.f32.gmra.mxu0 %v1378
    %v1446 = vpop.f32.mrf.mxu0
    %v1447 = vadd.f32 0.0, %v1446
    %v1448 = vpop.f32.mrf.mxu0
    %v1449 = vadd.f32 0.0, %v1448
    %1450 = vdwg.mxu0
    %1451 = vmatprep.subr.mxu0 0.0
    %1452 = vmatpush1.msra.mxu0 0.0
    %1453 = vmatprep.subr.mxu0 0.0
    %1454 = vmatpush1.msra.mxu0 0.0
    %1455 = vmatprep.subr.mxu0 0.0
    %1456 = vmatpush1.msra.mxu0 0.0
    %1457 = vmatprep.subr.mxu0 0.0
    %1458 = vmatpush1.msra.mxu0 0.0
    %1459 = vmatprep.subr.mxu0 0.0
    %1460 = vmatpush1.msra.mxu0 0.0
    %1461 = vmatprep.subr.mxu0 0.0
    %1462 = vmatpush1.msra.mxu0 0.0
    %1463 = vmatprep.subr.mxu0 0.0
    %1464 = vmatpush1.msra.mxu0 0.0
    %1465 = vmatprep.subr.mxu0 0.0
    %1466 = vmatpush1.msra.mxu0 0.0
    %1467 = vmatprep.subr.mxu0 0.0
    %1468 = vmatpush1.msra.mxu0 0.0
    %1469 = vmatprep.subr.mxu0 0.0
    %1470 = vmatpush1.msra.mxu0 0.0
    %1471 = vmatprep.subr.mxu0 0.0
    %1472 = vmatpush1.msra.mxu0 0.0
    %1473 = vmatprep.subr.mxu0 0.0
    %1474 = vmatpush1.msra.mxu0 0.0
    %1475 = vmatprep.subr.mxu0 0.0
    %1476 = vmatpush1.msra.mxu0 0.0
    %1477 = vmatprep.subr.mxu0 0.0
    %1478 = vmatpush1.msra.mxu0 0.0
    %1479 = vmatprep.subr.mxu0 0.0
    %1480 = vmatpush1.msra.mxu0 0.0
    %1481 = vmatprep.subr.mxu0 %v1374
    %1482 = vmatpush1.msra.mxu0 %v1371
    %1483 = vmatprep.subr.mxu0 0.0
    %1484 = vmatpush2.msra.mxu0 0.0
    %1485 = vmatprep.subr.mxu0 0.0
    %1486 = vmatpush2.msra.mxu0 0.0
    %1487 = vmatprep.subr.mxu0 0.0
    %1488 = vmatpush2.msra.mxu0 0.0
    %1489 = vmatprep.subr.mxu0 0.0
    %1490 = vmatpush2.msra.mxu0 0.0
    %1491 = vmatprep.subr.mxu0 0.0
    %1492 = vmatpush2.msra.mxu0 0.0
    %1493 = vmatprep.subr.mxu0 0.0
    %1494 = vmatpush2.msra.mxu0 0.0
    %1495 = vmatprep.subr.mxu0 0.0
    %1496 = vmatpush2.msra.mxu0 0.0
    %1497 = vmatprep.subr.mxu0 0.0
    %1498 = vmatpush2.msra.mxu0 0.0
    %1499 = vmatprep.subr.mxu0 0.0
    %1500 = vmatpush2.msra.mxu0 0.0
    %1501 = vmatprep.subr.mxu0 0.0
    %1502 = vmatpush2.msra.mxu0 0.0
    %1503 = vmatprep.subr.mxu0 0.0
    %1504 = vmatpush2.msra.mxu0 0.0
    %1505 = vmatprep.subr.mxu0 0.0
    %1506 = vmatpush2.msra.mxu0 0.0
    %1507 = vmatprep.subr.mxu0 0.0
    %1508 = vmatpush2.msra.mxu0 0.0
    %1509 = vmatprep.subr.mxu0 0.0
    %1510 = vmatpush2.msra.mxu0 0.0
    %1511 = vmatprep.subr.mxu0 0.0
    %1512 = vmatpush2.msra.mxu0 0.0
    %1513 = vmatprep.subr.mxu0 0.0
    %1514 = vmatpush2.msra.mxu0 0.0
    %1515 = vmatprep.mubr.f32.mxu0 0.0
    %1516 = vmatmul.mubr.f32.gmra.mxu0 %v1378
    %v1517 = vpop.f32.mrf.mxu0
    %v1518 = vadd.f32 0.0, %v1517
    %v1519 = vpop.f32.mrf.mxu0
    %v1520 = vadd.f32 0.0, %v1519
    %1521 = vdwg.mxu0
    %v1523 = vlaneseq
    %v1524 = vshrl.u32 %v1523, 7
    %v1525 = vsub.s32 0, %v1524
    %v1526 = vrot.slane %v72, %v1525
    %v1527 = vlaneseq
    %v1528 = vshrl.u32 %v1527, 7
    %v1529 = vsub.s32 1, %v1528
    %v1530 = vrot.slane %v72, %v1529
    %v1531 = vlaneseq
    %v1532 = vshrl.u32 %v1531, 7
    %v1533 = vsub.s32 2, %v1532
    %v1534 = vrot.slane %v72, %v1533
    %v1535 = vlaneseq
    %v1536 = vshrl.u32 %v1535, 7
    %v1537 = vsub.s32 3, %v1536
    %v1538 = vrot.slane %v72, %v1537
    %v1543 = vmul.f32 %v1447, %v1526
    %v1544 = vmul.f32 %v1449, %v1530
    %v1545 = vmul.f32 %v1518, %v1534
    %v1546 = vmul.f32 %v1520, %v1538
    %v1547 = vadd.f32 %v1358, %v1543
    %v1548 = vadd.f32 %v1359, %v1544
    %v1549 = vadd.f32 %v1360, %v1545
    %v1550 = vadd.f32 %v1361, %v1546
    %1551 = vrot.lane.b32.xlu0 %v75, 111
    %v1552 = vpop.permute.xlu0 %1551
    %1553 = vrot.lane.b32.xlu0 %v76, 111
    %v1554 = vpop.permute.xlu0 %1553
    %1555 = vrot.lane.b32.xlu0 %v77, 111
    %v1556 = vpop.permute.xlu0 %1555
    %1557 = vrot.lane.b32.xlu0 %v78, 111
    %v1558 = vpop.permute.xlu0 %1557
    %vm1559 = vcmp.lt.s32.totalorder %v88, 111
    %v1560 = vsel %vm1559, %v1556, %v1558
    %v1561 = vsel %vm1559, %v1554, %v1556
    %v1562 = vsel %vm1559, %v1552, %v1554
    %v1563 = vsel %vm1559, %v1558, %v1552
    %s1564 = scalar_lea.vmem [#allocation3], 64
    %v1565 = vld [vmem:[%s1564] sm:$0xff]
    %v1567 = vsel %vm95, %v1565, 0
    %1569 = vmatprep.subr.mxu0 0.0
    %1570 = vmatpush1.msra.mxu0 0.0
    %1571 = vmatprep.subr.mxu0 0.0
    %1572 = vmatpush1.msra.mxu0 0.0
    %1573 = vmatprep.subr.mxu0 0.0
    %1574 = vmatpush1.msra.mxu0 0.0
    %1575 = vmatprep.subr.mxu0 0.0
    %1576 = vmatpush1.msra.mxu0 0.0
    %1577 = vmatprep.subr.mxu0 0.0
    %1578 = vmatpush1.msra.mxu0 0.0
    %1579 = vmatprep.subr.mxu0 0.0
    %1580 = vmatpush1.msra.mxu0 0.0
    %1581 = vmatprep.subr.mxu0 0.0
    %1582 = vmatpush1.msra.mxu0 0.0
    %1583 = vmatprep.subr.mxu0 0.0
    %1584 = vmatpush1.msra.mxu0 0.0
    %1585 = vmatprep.subr.mxu0 0.0
    %1586 = vmatpush1.msra.mxu0 0.0
    %1587 = vmatprep.subr.mxu0 0.0
    %1588 = vmatpush1.msra.mxu0 0.0
    %1589 = vmatprep.subr.mxu0 0.0
    %1590 = vmatpush1.msra.mxu0 0.0
    %1591 = vmatprep.subr.mxu0 0.0
    %1592 = vmatpush1.msra.mxu0 0.0
    %1593 = vmatprep.subr.mxu0 0.0
    %1594 = vmatpush1.msra.mxu0 0.0
    %1595 = vmatprep.subr.mxu0 0.0
    %1596 = vmatpush1.msra.mxu0 0.0
    %1597 = vmatprep.subr.mxu0 0.0
    %1598 = vmatpush1.msra.mxu0 0.0
    %1599 = vmatprep.subr.mxu0 %v1561
    %1600 = vmatpush1.msra.mxu0 %v1562
    %1601 = vmatprep.subr.mxu0 0.0
    %1602 = vmatpush2.msra.mxu0 0.0
    %1603 = vmatprep.subr.mxu0 0.0
    %1604 = vmatpush2.msra.mxu0 0.0
    %1605 = vmatprep.subr.mxu0 0.0
    %1606 = vmatpush2.msra.mxu0 0.0
    %1607 = vmatprep.subr.mxu0 0.0
    %1608 = vmatpush2.msra.mxu0 0.0
    %1609 = vmatprep.subr.mxu0 0.0
    %1610 = vmatpush2.msra.mxu0 0.0
    %1611 = vmatprep.subr.mxu0 0.0
    %1612 = vmatpush2.msra.mxu0 0.0
    %1613 = vmatprep.subr.mxu0 0.0
    %1614 = vmatpush2.msra.mxu0 0.0
    %1615 = vmatprep.subr.mxu0 0.0
    %1616 = vmatpush2.msra.mxu0 0.0
    %1617 = vmatprep.subr.mxu0 0.0
    %1618 = vmatpush2.msra.mxu0 0.0
    %1619 = vmatprep.subr.mxu0 0.0
    %1620 = vmatpush2.msra.mxu0 0.0
    %1621 = vmatprep.subr.mxu0 0.0
    %1622 = vmatpush2.msra.mxu0 0.0
    %1623 = vmatprep.subr.mxu0 0.0
    %1624 = vmatpush2.msra.mxu0 0.0
    %1625 = vmatprep.subr.mxu0 0.0
    %1626 = vmatpush2.msra.mxu0 0.0
    %1627 = vmatprep.subr.mxu0 0.0
    %1628 = vmatpush2.msra.mxu0 0.0
    %1629 = vmatprep.subr.mxu0 0.0
    %1630 = vmatpush2.msra.mxu0 0.0
    %1631 = vmatprep.subr.mxu0 0.0
    %1632 = vmatpush2.msra.mxu0 0.0
    %1633 = vmatprep.mubr.f32.mxu0 0.0
    %1634 = vmatmul.mubr.f32.gmra.mxu0 %v1567
    %v1635 = vpop.f32.mrf.mxu0
    %v1636 = vadd.f32 0.0, %v1635
    %v1637 = vpop.f32.mrf.mxu0
    %v1638 = vadd.f32 0.0, %v1637
    %1639 = vdwg.mxu0
    %1640 = vmatprep.subr.mxu0 0.0
    %1641 = vmatpush1.msra.mxu0 0.0
    %1642 = vmatprep.subr.mxu0 0.0
    %1643 = vmatpush1.msra.mxu0 0.0
    %1644 = vmatprep.subr.mxu0 0.0
    %1645 = vmatpush1.msra.mxu0 0.0
    %1646 = vmatprep.subr.mxu0 0.0
    %1647 = vmatpush1.msra.mxu0 0.0
    %1648 = vmatprep.subr.mxu0 0.0
    %1649 = vmatpush1.msra.mxu0 0.0
    %1650 = vmatprep.subr.mxu0 0.0
    %1651 = vmatpush1.msra.mxu0 0.0
    %1652 = vmatprep.subr.mxu0 0.0
    %1653 = vmatpush1.msra.mxu0 0.0
    %1654 = vmatprep.subr.mxu0 0.0
    %1655 = vmatpush1.msra.mxu0 0.0
    %1656 = vmatprep.subr.mxu0 0.0
    %1657 = vmatpush1.msra.mxu0 0.0
    %1658 = vmatprep.subr.mxu0 0.0
    %1659 = vmatpush1.msra.mxu0 0.0
    %1660 = vmatprep.subr.mxu0 0.0
    %1661 = vmatpush1.msra.mxu0 0.0
    %1662 = vmatprep.subr.mxu0 0.0
    %1663 = vmatpush1.msra.mxu0 0.0
    %1664 = vmatprep.subr.mxu0 0.0
    %1665 = vmatpush1.msra.mxu0 0.0
    %1666 = vmatprep.subr.mxu0 0.0
    %1667 = vmatpush1.msra.mxu0 0.0
    %1668 = vmatprep.subr.mxu0 0.0
    %1669 = vmatpush1.msra.mxu0 0.0
    %1670 = vmatprep.subr.mxu0 %v1563
    %1671 = vmatpush1.msra.mxu0 %v1560
    %1672 = vmatprep.subr.mxu0 0.0
    %1673 = vmatpush2.msra.mxu0 0.0
    %1674 = vmatprep.subr.mxu0 0.0
    %1675 = vmatpush2.msra.mxu0 0.0
    %1676 = vmatprep.subr.mxu0 0.0
    %1677 = vmatpush2.msra.mxu0 0.0
    %1678 = vmatprep.subr.mxu0 0.0
    %1679 = vmatpush2.msra.mxu0 0.0
    %1680 = vmatprep.subr.mxu0 0.0
    %1681 = vmatpush2.msra.mxu0 0.0
    %1682 = vmatprep.subr.mxu0 0.0
    %1683 = vmatpush2.msra.mxu0 0.0
    %1684 = vmatprep.subr.mxu0 0.0
    %1685 = vmatpush2.msra.mxu0 0.0
    %1686 = vmatprep.subr.mxu0 0.0
    %1687 = vmatpush2.msra.mxu0 0.0
    %1688 = vmatprep.subr.mxu0 0.0
    %1689 = vmatpush2.msra.mxu0 0.0
    %1690 = vmatprep.subr.mxu0 0.0
    %1691 = vmatpush2.msra.mxu0 0.0
    %1692 = vmatprep.subr.mxu0 0.0
    %1693 = vmatpush2.msra.mxu0 0.0
    %1694 = vmatprep.subr.mxu0 0.0
    %1695 = vmatpush2.msra.mxu0 0.0
    %1696 = vmatprep.subr.mxu0 0.0
    %1697 = vmatpush2.msra.mxu0 0.0
    %1698 = vmatprep.subr.mxu0 0.0
    %1699 = vmatpush2.msra.mxu0 0.0
    %1700 = vmatprep.subr.mxu0 0.0
    %1701 = vmatpush2.msra.mxu0 0.0
    %1702 = vmatprep.subr.mxu0 0.0
    %1703 = vmatpush2.msra.mxu0 0.0
    %1704 = vmatprep.mubr.f32.mxu0 0.0
    %1705 = vmatmul.mubr.f32.gmra.mxu0 %v1567
    %v1706 = vpop.f32.mrf.mxu0
    %v1707 = vadd.f32 0.0, %v1706
    %v1708 = vpop.f32.mrf.mxu0
    %v1709 = vadd.f32 0.0, %v1708
    %1710 = vdwg.mxu0
    %v1712 = vlaneseq
    %v1713 = vshrl.u32 %v1712, 7
    %v1714 = vsub.s32 0, %v1713
    %v1715 = vrot.slane %v74, %v1714
    %v1716 = vlaneseq
    %v1717 = vshrl.u32 %v1716, 7
    %v1718 = vsub.s32 1, %v1717
    %v1719 = vrot.slane %v74, %v1718
    %v1720 = vlaneseq
    %v1721 = vshrl.u32 %v1720, 7
    %v1722 = vsub.s32 2, %v1721
    %v1723 = vrot.slane %v74, %v1722
    %v1724 = vlaneseq
    %v1725 = vshrl.u32 %v1724, 7
    %v1726 = vsub.s32 3, %v1725
    %v1727 = vrot.slane %v74, %v1726
    %v1732 = vmul.f32 %v1636, %v1715
    %v1733 = vmul.f32 %v1638, %v1719
    %v1734 = vmul.f32 %v1707, %v1723
    %v1735 = vmul.f32 %v1709, %v1727
    %v1736 = vadd.f32 %v1547, %v1732
    %v1737 = vadd.f32 %v1548, %v1733
    %v1738 = vadd.f32 %v1549, %v1734
    %v1739 = vadd.f32 %v1550, %v1735
    %v1740 = vld [vmem:[%s2] sm:$0xff]
    %1742 = vset.pattern.permute.xlu0 0
    %1743 = vperm.xlu0 %1742, %v1740
    %v1744 = vpop.permute.xlu0 %1743
    %v1746 = vadd.f32 %v1736, %v1744
    %v1747 = vadd.f32 %v1737, %v1744
    %v1748 = vadd.f32 %v1738, %v1744
    %v1749 = vadd.f32 %v1739, %v1744
    %v1750 = vmax.f32 %v1746, 0.0
    %v1751 = vmax.f32 %v1747, 0.0
    %v1752 = vmax.f32 %v1748, 0.0
    %v1753 = vmax.f32 %v1749, 0.0
    %1754 = vst [vmem:[#allocation2 + $0x20] sm:$0xff] %v1750
    %1755 = vst [vmem:[#allocation2 + $0x28] sm:$0xff] %v1751
    %1756 = vst [vmem:[#allocation2 + $0x30] sm:$0xff] %v1752
    %1757 = vst [vmem:[#allocation2 + $0x38] sm:$0xff] %v1753
    %v1758 = vld [vmem:[#allocation2] sm:$0xff]
    %v1759 = vld [vmem:[#allocation2 + $0x8] sm:$0xff]
    %v1760 = vld [vmem:[#allocation2 + $0x10] sm:$0xff]
    %v1761 = vld [vmem:[#allocation2 + $0x18] sm:$0xff]
    %v1762 = vld [vmem:[#allocation2 + $0x20] sm:$0xff]
    %v1763 = vld [vmem:[#allocation2 + $0x28] sm:$0xff]
    %v1764 = vld [vmem:[#allocation2 + $0x30] sm:$0xff]
    %v1765 = vld [vmem:[#allocation2 + $0x38] sm:$0xff]
    %1766 = vrot.lane.b32.xlu0 %v1758, 17
    %v1767 = vpop.permute.xlu0 %1766
    %1768 = vrot.lane.b32.xlu0 %v1762, 17
    %v1769 = vpop.permute.xlu0 %1768
    %1770 = vrot.lane.b32.xlu0 %v1759, 17
    %v1771 = vpop.permute.xlu0 %1770
    %1772 = vrot.lane.b32.xlu0 %v1763, 17
    %v1773 = vpop.permute.xlu0 %1772
    %1774 = vrot.lane.b32.xlu0 %v1760, 17
    %v1775 = vpop.permute.xlu0 %1774
    %1776 = vrot.lane.b32.xlu0 %v1764, 17
    %v1777 = vpop.permute.xlu0 %1776
    %1778 = vrot.lane.b32.xlu0 %v1761, 17
    %v1779 = vpop.permute.xlu0 %1778
    %1780 = vrot.lane.b32.xlu0 %v1765, 17
    %v1781 = vpop.permute.xlu0 %1780
    %v1782 = vsel %vm89, %v1775, %v1779
    %v1783 = vsel %vm89, %v1777, %v1781
    %v1784 = vsel %vm89, %v1771, %v1775
    %v1785 = vsel %vm89, %v1773, %v1777
    %v1786 = vsel %vm89, %v1767, %v1771
    %v1787 = vsel %vm89, %v1769, %v1773
    %v1788 = vsel %vm89, %v1779, %v1767
    %v1789 = vsel %vm89, %v1781, %v1769
    %s1790 = scalar_lea.vmem [#allocation3], 72
    %v1791 = vld [vmem:[%s1790] sm:$0xff]
    %vm1792 = vcmask 130048
    %v1794 = vsel %vm1792, %v1791, 0
    %1796 = vmatprep.subr.mxu0 0.0
    %1797 = vmatpush1.msra.mxu0 0.0
    %1798 = vmatprep.subr.mxu0 0.0
    %1799 = vmatpush1.msra.mxu0 0.0
    %1800 = vmatprep.subr.mxu0 0.0
    %1801 = vmatpush1.msra.mxu0 0.0
    %1802 = vmatprep.subr.mxu0 0.0
    %1803 = vmatpush1.msra.mxu0 0.0
    %1804 = vmatprep.subr.mxu0 0.0
    %1805 = vmatpush1.msra.mxu0 0.0
    %1806 = vmatprep.subr.mxu0 0.0
    %1807 = vmatpush1.msra.mxu0 0.0
    %1808 = vmatprep.subr.mxu0 0.0
    %1809 = vmatpush1.msra.mxu0 0.0
    %1810 = vmatprep.subr.mxu0 0.0
    %1811 = vmatpush1.msra.mxu0 0.0
    %1812 = vmatprep.subr.mxu0 0.0
    %1813 = vmatpush1.msra.mxu0 0.0
    %1814 = vmatprep.subr.mxu0 0.0
    %1815 = vmatpush1.msra.mxu0 0.0
    %1816 = vmatprep.subr.mxu0 0.0
    %1817 = vmatpush1.msra.mxu0 0.0
    %1818 = vmatprep.subr.mxu0 0.0
    %1819 = vmatpush1.msra.mxu0 0.0
    %1820 = vmatprep.subr.mxu0 0.0
    %1821 = vmatpush1.msra.mxu0 0.0
    %1822 = vmatprep.subr.mxu0 0.0
    %1823 = vmatpush1.msra.mxu0 0.0
    %1824 = vmatprep.subr.mxu0 %v1787
    %1825 = vmatpush1.msra.mxu0 %v1789
    %1826 = vmatprep.subr.mxu0 %v1786
    %1827 = vmatpush1.msra.mxu0 %v1788
    %1828 = vmatprep.subr.mxu0 0.0
    %1829 = vmatpush2.msra.mxu0 0.0
    %1830 = vmatprep.subr.mxu0 0.0
    %1831 = vmatpush2.msra.mxu0 0.0
    %1832 = vmatprep.subr.mxu0 0.0
    %1833 = vmatpush2.msra.mxu0 0.0
    %1834 = vmatprep.subr.mxu0 0.0
    %1835 = vmatpush2.msra.mxu0 0.0
    %1836 = vmatprep.subr.mxu0 0.0
    %1837 = vmatpush2.msra.mxu0 0.0
    %1838 = vmatprep.subr.mxu0 0.0
    %1839 = vmatpush2.msra.mxu0 0.0
    %1840 = vmatprep.subr.mxu0 0.0
    %1841 = vmatpush2.msra.mxu0 0.0
    %1842 = vmatprep.subr.mxu0 0.0
    %1843 = vmatpush2.msra.mxu0 0.0
    %1844 = vmatprep.subr.mxu0 0.0
    %1845 = vmatpush2.msra.mxu0 0.0
    %1846 = vmatprep.subr.mxu0 0.0
    %1847 = vmatpush2.msra.mxu0 0.0
    %1848 = vmatprep.subr.mxu0 0.0
    %1849 = vmatpush2.msra.mxu0 0.0
    %1850 = vmatprep.subr.mxu0 0.0
    %1851 = vmatpush2.msra.mxu0 0.0
    %1852 = vmatprep.subr.mxu0 0.0
    %1853 = vmatpush2.msra.mxu0 0.0
    %1854 = vmatprep.subr.mxu0 0.0
    %1855 = vmatpush2.msra.mxu0 0.0
    %1856 = vmatprep.subr.mxu0 0.0
    %1857 = vmatpush2.msra.mxu0 0.0
    %1858 = vmatprep.subr.mxu0 0.0
    %1859 = vmatpush2.msra.mxu0 0.0
    %1860 = vmatprep.mubr.f32.mxu0 0.0
    %1861 = vmatmul.mubr.f32.gmra.mxu0 %v1794
    %v1862 = vpop.f32.mrf.mxu0
    %v1863 = vadd.f32 0.0, %v1862
    %v1864 = vpop.f32.mrf.mxu0
    %v1865 = vadd.f32 0.0, %v1864
    %1866 = vdwg.mxu0
    %1867 = vmatprep.subr.mxu0 0.0
    %1868 = vmatpush1.msra.mxu0 0.0
    %1869 = vmatprep.subr.mxu0 0.0
    %1870 = vmatpush1.msra.mxu0 0.0
    %1871 = vmatprep.subr.mxu0 0.0
    %1872 = vmatpush1.msra.mxu0 0.0
    %1873 = vmatprep.subr.mxu0 0.0
    %1874 = vmatpush1.msra.mxu0 0.0
    %1875 = vmatprep.subr.mxu0 0.0
    %1876 = vmatpush1.msra.mxu0 0.0
    %1877 = vmatprep.subr.mxu0 0.0
    %1878 = vmatpush1.msra.mxu0 0.0
    %1879 = vmatprep.subr.mxu0 0.0
    %1880 = vmatpush1.msra.mxu0 0.0
    %1881 = vmatprep.subr.mxu0 0.0
    %1882 = vmatpush1.msra.mxu0 0.0
    %1883 = vmatprep.subr.mxu0 0.0
    %1884 = vmatpush1.msra.mxu0 0.0
    %1885 = vmatprep.subr.mxu0 0.0
    %1886 = vmatpush1.msra.mxu0 0.0
    %1887 = vmatprep.subr.mxu0 0.0
    %1888 = vmatpush1.msra.mxu0 0.0
    %1889 = vmatprep.subr.mxu0 0.0
    %1890 = vmatpush1.msra.mxu0 0.0
    %1891 = vmatprep.subr.mxu0 0.0
    %1892 = vmatpush1.msra.mxu0 0.0
    %1893 = vmatprep.subr.mxu0 0.0
    %1894 = vmatpush1.msra.mxu0 0.0
    %1895 = vmatprep.subr.mxu0 %v1783
    %1896 = vmatpush1.msra.mxu0 %v1785
    %1897 = vmatprep.subr.mxu0 %v1782
    %1898 = vmatpush1.msra.mxu0 %v1784
    %1899 = vmatprep.subr.mxu0 0.0
    %1900 = vmatpush2.msra.mxu0 0.0
    %1901 = vmatprep.subr.mxu0 0.0
    %1902 = vmatpush2.msra.mxu0 0.0
    %1903 = vmatprep.subr.mxu0 0.0
    %1904 = vmatpush2.msra.mxu0 0.0
    %1905 = vmatprep.subr.mxu0 0.0
    %1906 = vmatpush2.msra.mxu0 0.0
    %1907 = vmatprep.subr.mxu0 0.0
    %1908 = vmatpush2.msra.mxu0 0.0
    %1909 = vmatprep.subr.mxu0 0.0
    %1910 = vmatpush2.msra.mxu0 0.0
    %1911 = vmatprep.subr.mxu0 0.0
    %1912 = vmatpush2.msra.mxu0 0.0
    %1913 = vmatprep.subr.mxu0 0.0
    %1914 = vmatpush2.msra.mxu0 0.0
    %1915 = vmatprep.subr.mxu0 0.0
    %1916 = vmatpush2.msra.mxu0 0.0
    %1917 = vmatprep.subr.mxu0 0.0
    %1918 = vmatpush2.msra.mxu0 0.0
    %1919 = vmatprep.subr.mxu0 0.0
    %1920 = vmatpush2.msra.mxu0 0.0
    %1921 = vmatprep.subr.mxu0 0.0
    %1922 = vmatpush2.msra.mxu0 0.0
    %1923 = vmatprep.subr.mxu0 0.0
    %1924 = vmatpush2.msra.mxu0 0.0
    %1925 = vmatprep.subr.mxu0 0.0
    %1926 = vmatpush2.msra.mxu0 0.0
    %1927 = vmatprep.subr.mxu0 0.0
    %1928 = vmatpush2.msra.mxu0 0.0
    %1929 = vmatprep.subr.mxu0 0.0
    %1930 = vmatpush2.msra.mxu0 0.0
    %1931 = vmatprep.mubr.f32.mxu0 0.0
    %1932 = vmatmul.mubr.f32.gmra.mxu0 %v1794
    %v1933 = vpop.f32.mrf.mxu0
    %v1934 = vadd.f32 0.0, %v1933
    %v1935 = vpop.f32.mrf.mxu0
    %v1936 = vadd.f32 0.0, %v1935
    %1937 = vdwg.mxu0
    %v1938 = vmul.f32 %v1863, %v245
    %v1939 = vmul.f32 %v1865, %v249
    %v1940 = vmul.f32 %v1934, %v253
    %v1941 = vmul.f32 %v1936, %v257
    %1942 = vrot.lane.b32.xlu0 %v1758, 16
    %v1943 = vpop.permute.xlu0 %1942
    %1944 = vrot.lane.b32.xlu0 %v1762, 16
    %v1945 = vpop.permute.xlu0 %1944
    %1946 = vrot.lane.b32.xlu0 %v1759, 16
    %v1947 = vpop.permute.xlu0 %1946
    %1948 = vrot.lane.b32.xlu0 %v1763, 16
    %v1949 = vpop.permute.xlu0 %1948
    %1950 = vrot.lane.b32.xlu0 %v1760, 16
    %v1951 = vpop.permute.xlu0 %1950
    %1952 = vrot.lane.b32.xlu0 %v1764, 16
    %v1953 = vpop.permute.xlu0 %1952
    %1954 = vrot.lane.b32.xlu0 %v1761, 16
    %v1955 = vpop.permute.xlu0 %1954
    %1956 = vrot.lane.b32.xlu0 %v1765, 16
    %v1957 = vpop.permute.xlu0 %1956
    %v1958 = vsel %vm274, %v1951, %v1955
    %v1959 = vsel %vm274, %v1953, %v1957
    %v1960 = vsel %vm274, %v1947, %v1951
    %v1961 = vsel %vm274, %v1949, %v1953
    %v1962 = vsel %vm274, %v1943, %v1947
    %v1963 = vsel %vm274, %v1945, %v1949
    %v1964 = vsel %vm274, %v1955, %v1943
    %v1965 = vsel %vm274, %v1957, %v1945
    %s1966 = scalar_lea.vmem [#allocation3], 80
    %v1967 = vld [vmem:[%s1966] sm:$0xff]
    %v1969 = vsel %vm1792, %v1967, 0
    %1971 = vmatprep.subr.mxu0 0.0
    %1972 = vmatpush1.msra.mxu0 0.0
    %1973 = vmatprep.subr.mxu0 0.0
    %1974 = vmatpush1.msra.mxu0 0.0
    %1975 = vmatprep.subr.mxu0 0.0
    %1976 = vmatpush1.msra.mxu0 0.0
    %1977 = vmatprep.subr.mxu0 0.0
    %1978 = vmatpush1.msra.mxu0 0.0
    %1979 = vmatprep.subr.mxu0 0.0
    %1980 = vmatpush1.msra.mxu0 0.0
    %1981 = vmatprep.subr.mxu0 0.0
    %1982 = vmatpush1.msra.mxu0 0.0
    %1983 = vmatprep.subr.mxu0 0.0
    %1984 = vmatpush1.msra.mxu0 0.0
    %1985 = vmatprep.subr.mxu0 0.0
    %1986 = vmatpush1.msra.mxu0 0.0
    %1987 = vmatprep.subr.mxu0 0.0
    %1988 = vmatpush1.msra.mxu0 0.0
    %1989 = vmatprep.subr.mxu0 0.0
    %1990 = vmatpush1.msra.mxu0 0.0
    %1991 = vmatprep.subr.mxu0 0.0
    %1992 = vmatpush1.msra.mxu0 0.0
    %1993 = vmatprep.subr.mxu0 0.0
    %1994 = vmatpush1.msra.mxu0 0.0
    %1995 = vmatprep.subr.mxu0 0.0
    %1996 = vmatpush1.msra.mxu0 0.0
    %1997 = vmatprep.subr.mxu0 0.0
    %1998 = vmatpush1.msra.mxu0 0.0
    %1999 = vmatprep.subr.mxu0 %v1963
    %2000 = vmatpush1.msra.mxu0 %v1965
    %2001 = vmatprep.subr.mxu0 %v1962
    %2002 = vmatpush1.msra.mxu0 %v1964
    %2003 = vmatprep.subr.mxu0 0.0
    %2004 = vmatpush2.msra.mxu0 0.0
    %2005 = vmatprep.subr.mxu0 0.0
    %2006 = vmatpush2.msra.mxu0 0.0
    %2007 = vmatprep.subr.mxu0 0.0
    %2008 = vmatpush2.msra.mxu0 0.0
    %2009 = vmatprep.subr.mxu0 0.0
    %2010 = vmatpush2.msra.mxu0 0.0
    %2011 = vmatprep.subr.mxu0 0.0
    %2012 = vmatpush2.msra.mxu0 0.0
    %2013 = vmatprep.subr.mxu0 0.0
    %2014 = vmatpush2.msra.mxu0 0.0
    %2015 = vmatprep.subr.mxu0 0.0
    %2016 = vmatpush2.msra.mxu0 0.0
    %2017 = vmatprep.subr.mxu0 0.0
    %2018 = vmatpush2.msra.mxu0 0.0
    %2019 = vmatprep.subr.mxu0 0.0
    %2020 = vmatpush2.msra.mxu0 0.0
    %2021 = vmatprep.subr.mxu0 0.0
    %2022 = vmatpush2.msra.mxu0 0.0
    %2023 = vmatprep.subr.mxu0 0.0
    %2024 = vmatpush2.msra.mxu0 0.0
    %2025 = vmatprep.subr.mxu0 0.0
    %2026 = vmatpush2.msra.mxu0 0.0
    %2027 = vmatprep.subr.mxu0 0.0
    %2028 = vmatpush2.msra.mxu0 0.0
    %2029 = vmatprep.subr.mxu0 0.0
    %2030 = vmatpush2.msra.mxu0 0.0
    %2031 = vmatprep.subr.mxu0 0.0
    %2032 = vmatpush2.msra.mxu0 0.0
    %2033 = vmatprep.subr.mxu0 0.0
    %2034 = vmatpush2.msra.mxu0 0.0
    %2035 = vmatprep.mubr.f32.mxu0 0.0
    %2036 = vmatmul.mubr.f32.gmra.mxu0 %v1969
    %v2037 = vpop.f32.mrf.mxu0
    %v2038 = vadd.f32 0.0, %v2037
    %v2039 = vpop.f32.mrf.mxu0
    %v2040 = vadd.f32 0.0, %v2039
    %2041 = vdwg.mxu0
    %2042 = vmatprep.subr.mxu0 0.0
    %2043 = vmatpush1.msra.mxu0 0.0
    %2044 = vmatprep.subr.mxu0 0.0
    %2045 = vmatpush1.msra.mxu0 0.0
    %2046 = vmatprep.subr.mxu0 0.0
    %2047 = vmatpush1.msra.mxu0 0.0
    %2048 = vmatprep.subr.mxu0 0.0
    %2049 = vmatpush1.msra.mxu0 0.0
    %2050 = vmatprep.subr.mxu0 0.0
    %2051 = vmatpush1.msra.mxu0 0.0
    %2052 = vmatprep.subr.mxu0 0.0
    %2053 = vmatpush1.msra.mxu0 0.0
    %2054 = vmatprep.subr.mxu0 0.0
    %2055 = vmatpush1.msra.mxu0 0.0
    %2056 = vmatprep.subr.mxu0 0.0
    %2057 = vmatpush1.msra.mxu0 0.0
    %2058 = vmatprep.subr.mxu0 0.0
    %2059 = vmatpush1.msra.mxu0 0.0
    %2060 = vmatprep.subr.mxu0 0.0
    %2061 = vmatpush1.msra.mxu0 0.0
    %2062 = vmatprep.subr.mxu0 0.0
    %2063 = vmatpush1.msra.mxu0 0.0
    %2064 = vmatprep.subr.mxu0 0.0
    %2065 = vmatpush1.msra.mxu0 0.0
    %2066 = vmatprep.subr.mxu0 0.0
    %2067 = vmatpush1.msra.mxu0 0.0
    %2068 = vmatprep.subr.mxu0 0.0
    %2069 = vmatpush1.msra.mxu0 0.0
    %2070 = vmatprep.subr.mxu0 %v1959
    %2071 = vmatpush1.msra.mxu0 %v1961
    %2072 = vmatprep.subr.mxu0 %v1958
    %2073 = vmatpush1.msra.mxu0 %v1960
    %2074 = vmatprep.subr.mxu0 0.0
    %2075 = vmatpush2.msra.mxu0 0.0
    %2076 = vmatprep.subr.mxu0 0.0
    %2077 = vmatpush2.msra.mxu0 0.0
    %2078 = vmatprep.subr.mxu0 0.0
    %2079 = vmatpush2.msra.mxu0 0.0
    %2080 = vmatprep.subr.mxu0 0.0
    %2081 = vmatpush2.msra.mxu0 0.0
    %2082 = vmatprep.subr.mxu0 0.0
    %2083 = vmatpush2.msra.mxu0 0.0
    %2084 = vmatprep.subr.mxu0 0.0
    %2085 = vmatpush2.msra.mxu0 0.0
    %2086 = vmatprep.subr.mxu0 0.0
    %2087 = vmatpush2.msra.mxu0 0.0
    %2088 = vmatprep.subr.mxu0 0.0
    %2089 = vmatpush2.msra.mxu0 0.0
    %2090 = vmatprep.subr.mxu0 0.0
    %2091 = vmatpush2.msra.mxu0 0.0
    %2092 = vmatprep.subr.mxu0 0.0
    %2093 = vmatpush2.msra.mxu0 0.0
    %2094 = vmatprep.subr.mxu0 0.0
    %2095 = vmatpush2.msra.mxu0 0.0
    %2096 = vmatprep.subr.mxu0 0.0
    %2097 = vmatpush2.msra.mxu0 0.0
    %2098 = vmatprep.subr.mxu0 0.0
    %2099 = vmatpush2.msra.mxu0 0.0
    %2100 = vmatprep.subr.mxu0 0.0
    %2101 = vmatpush2.msra.mxu0 0.0
    %2102 = vmatprep.subr.mxu0 0.0
    %2103 = vmatpush2.msra.mxu0 0.0
    %2104 = vmatprep.subr.mxu0 0.0
    %2105 = vmatpush2.msra.mxu0 0.0
    %2106 = vmatprep.mubr.f32.mxu0 0.0
    %2107 = vmatmul.mubr.f32.gmra.mxu0 %v1969
    %v2108 = vpop.f32.mrf.mxu0
    %v2109 = vadd.f32 0.0, %v2108
    %v2110 = vpop.f32.mrf.mxu0
    %v2111 = vadd.f32 0.0, %v2110
    %2112 = vdwg.mxu0
    %v2113 = vmul.f32 %v2038, %v430
    %v2114 = vmul.f32 %v2040, %v434
    %v2115 = vmul.f32 %v2109, %v438
    %v2116 = vmul.f32 %v2111, %v442
    %v2117 = vadd.f32 %v1938, %v2113
    %v2118 = vadd.f32 %v1939, %v2114
    %v2119 = vadd.f32 %v1940, %v2115
    %v2120 = vadd.f32 %v1941, %v2116
    %2121 = vrot.lane.b32.xlu0 %v1758, 15
    %v2122 = vpop.permute.xlu0 %2121
    %2123 = vrot.lane.b32.xlu0 %v1762, 15
    %v2124 = vpop.permute.xlu0 %2123
    %2125 = vrot.lane.b32.xlu0 %v1759, 15
    %v2126 = vpop.permute.xlu0 %2125
    %2127 = vrot.lane.b32.xlu0 %v1763, 15
    %v2128 = vpop.permute.xlu0 %2127
    %2129 = vrot.lane.b32.xlu0 %v1760, 15
    %v2130 = vpop.permute.xlu0 %2129
    %2131 = vrot.lane.b32.xlu0 %v1764, 15
    %v2132 = vpop.permute.xlu0 %2131
    %2133 = vrot.lane.b32.xlu0 %v1761, 15
    %v2134 = vpop.permute.xlu0 %2133
    %2135 = vrot.lane.b32.xlu0 %v1765, 15
    %v2136 = vpop.permute.xlu0 %2135
    %v2137 = vsel %vm463, %v2130, %v2134
    %v2138 = vsel %vm463, %v2132, %v2136
    %v2139 = vsel %vm463, %v2126, %v2130
    %v2140 = vsel %vm463, %v2128, %v2132
    %v2141 = vsel %vm463, %v2122, %v2126
    %v2142 = vsel %vm463, %v2124, %v2128
    %v2143 = vsel %vm463, %v2134, %v2122
    %v2144 = vsel %vm463, %v2136, %v2124
    %s2145 = scalar_lea.vmem [#allocation3], 88
    %v2146 = vld [vmem:[%s2145] sm:$0xff]
    %v2148 = vsel %vm1792, %v2146, 0
    %2150 = vmatprep.subr.mxu0 0.0
    %2151 = vmatpush1.msra.mxu0 0.0
    %2152 = vmatprep.subr.mxu0 0.0
    %2153 = vmatpush1.msra.mxu0 0.0
    %2154 = vmatprep.subr.mxu0 0.0
    %2155 = vmatpush1.msra.mxu0 0.0
    %2156 = vmatprep.subr.mxu0 0.0
    %2157 = vmatpush1.msra.mxu0 0.0
    %2158 = vmatprep.subr.mxu0 0.0
    %2159 = vmatpush1.msra.mxu0 0.0
    %2160 = vmatprep.subr.mxu0 0.0
    %2161 = vmatpush1.msra.mxu0 0.0
    %2162 = vmatprep.subr.mxu0 0.0
    %2163 = vmatpush1.msra.mxu0 0.0
    %2164 = vmatprep.subr.mxu0 0.0
    %2165 = vmatpush1.msra.mxu0 0.0
    %2166 = vmatprep.subr.mxu0 0.0
    %2167 = vmatpush1.msra.mxu0 0.0
    %2168 = vmatprep.subr.mxu0 0.0
    %2169 = vmatpush1.msra.mxu0 0.0
    %2170 = vmatprep.subr.mxu0 0.0
    %2171 = vmatpush1.msra.mxu0 0.0
    %2172 = vmatprep.subr.mxu0 0.0
    %2173 = vmatpush1.msra.mxu0 0.0
    %2174 = vmatprep.subr.mxu0 0.0
    %2175 = vmatpush1.msra.mxu0 0.0
    %2176 = vmatprep.subr.mxu0 0.0
    %2177 = vmatpush1.msra.mxu0 0.0
    %2178 = vmatprep.subr.mxu0 %v2142
    %2179 = vmatpush1.msra.mxu0 %v2144
    %2180 = vmatprep.subr.mxu0 %v2141
    %2181 = vmatpush1.msra.mxu0 %v2143
    %2182 = vmatprep.subr.mxu0 0.0
    %2183 = vmatpush2.msra.mxu0 0.0
    %2184 = vmatprep.subr.mxu0 0.0
    %2185 = vmatpush2.msra.mxu0 0.0
    %2186 = vmatprep.subr.mxu0 0.0
    %2187 = vmatpush2.msra.mxu0 0.0
    %2188 = vmatprep.subr.mxu0 0.0
    %2189 = vmatpush2.msra.mxu0 0.0
    %2190 = vmatprep.subr.mxu0 0.0
    %2191 = vmatpush2.msra.mxu0 0.0
    %2192 = vmatprep.subr.mxu0 0.0
    %2193 = vmatpush2.msra.mxu0 0.0
    %2194 = vmatprep.subr.mxu0 0.0
    %2195 = vmatpush2.msra.mxu0 0.0
    %2196 = vmatprep.subr.mxu0 0.0
    %2197 = vmatpush2.msra.mxu0 0.0
    %2198 = vmatprep.subr.mxu0 0.0
    %2199 = vmatpush2.msra.mxu0 0.0
    %2200 = vmatprep.subr.mxu0 0.0
    %2201 = vmatpush2.msra.mxu0 0.0
    %2202 = vmatprep.subr.mxu0 0.0
    %2203 = vmatpush2.msra.mxu0 0.0
    %2204 = vmatprep.subr.mxu0 0.0
    %2205 = vmatpush2.msra.mxu0 0.0
    %2206 = vmatprep.subr.mxu0 0.0
    %2207 = vmatpush2.msra.mxu0 0.0
    %2208 = vmatprep.subr.mxu0 0.0
    %2209 = vmatpush2.msra.mxu0 0.0
    %2210 = vmatprep.subr.mxu0 0.0
    %2211 = vmatpush2.msra.mxu0 0.0
    %2212 = vmatprep.subr.mxu0 0.0
    %2213 = vmatpush2.msra.mxu0 0.0
    %2214 = vmatprep.mubr.f32.mxu0 0.0
    %2215 = vmatmul.mubr.f32.gmra.mxu0 %v2148
    %v2216 = vpop.f32.mrf.mxu0
    %v2217 = vadd.f32 0.0, %v2216
    %v2218 = vpop.f32.mrf.mxu0
    %v2219 = vadd.f32 0.0, %v2218
    %2220 = vdwg.mxu0
    %2221 = vmatprep.subr.mxu0 0.0
    %2222 = vmatpush1.msra.mxu0 0.0
    %2223 = vmatprep.subr.mxu0 0.0
    %2224 = vmatpush1.msra.mxu0 0.0
    %2225 = vmatprep.subr.mxu0 0.0
    %2226 = vmatpush1.msra.mxu0 0.0
    %2227 = vmatprep.subr.mxu0 0.0
    %2228 = vmatpush1.msra.mxu0 0.0
    %2229 = vmatprep.subr.mxu0 0.0
    %2230 = vmatpush1.msra.mxu0 0.0
    %2231 = vmatprep.subr.mxu0 0.0
    %2232 = vmatpush1.msra.mxu0 0.0
    %2233 = vmatprep.subr.mxu0 0.0
    %2234 = vmatpush1.msra.mxu0 0.0
    %2235 = vmatprep.subr.mxu0 0.0
    %2236 = vmatpush1.msra.mxu0 0.0
    %2237 = vmatprep.subr.mxu0 0.0
    %2238 = vmatpush1.msra.mxu0 0.0
    %2239 = vmatprep.subr.mxu0 0.0
    %2240 = vmatpush1.msra.mxu0 0.0
    %2241 = vmatprep.subr.mxu0 0.0
    %2242 = vmatpush1.msra.mxu0 0.0
    %2243 = vmatprep.subr.mxu0 0.0
    %2244 = vmatpush1.msra.mxu0 0.0
    %2245 = vmatprep.subr.mxu0 0.0
    %2246 = vmatpush1.msra.mxu0 0.0
    %2247 = vmatprep.subr.mxu0 0.0
    %2248 = vmatpush1.msra.mxu0 0.0
    %2249 = vmatprep.subr.mxu0 %v2138
    %2250 = vmatpush1.msra.mxu0 %v2140
    %2251 = vmatprep.subr.mxu0 %v2137
    %2252 = vmatpush1.msra.mxu0 %v2139
    %2253 = vmatprep.subr.mxu0 0.0
    %2254 = vmatpush2.msra.mxu0 0.0
    %2255 = vmatprep.subr.mxu0 0.0
    %2256 = vmatpush2.msra.mxu0 0.0
    %2257 = vmatprep.subr.mxu0 0.0
    %2258 = vmatpush2.msra.mxu0 0.0
    %2259 = vmatprep.subr.mxu0 0.0
    %2260 = vmatpush2.msra.mxu0 0.0
    %2261 = vmatprep.subr.mxu0 0.0
    %2262 = vmatpush2.msra.mxu0 0.0
    %2263 = vmatprep.subr.mxu0 0.0
    %2264 = vmatpush2.msra.mxu0 0.0
    %2265 = vmatprep.subr.mxu0 0.0
    %2266 = vmatpush2.msra.mxu0 0.0
    %2267 = vmatprep.subr.mxu0 0.0
    %2268 = vmatpush2.msra.mxu0 0.0
    %2269 = vmatprep.subr.mxu0 0.0
    %2270 = vmatpush2.msra.mxu0 0.0
    %2271 = vmatprep.subr.mxu0 0.0
    %2272 = vmatpush2.msra.mxu0 0.0
    %2273 = vmatprep.subr.mxu0 0.0
    %2274 = vmatpush2.msra.mxu0 0.0
    %2275 = vmatprep.subr.mxu0 0.0
    %2276 = vmatpush2.msra.mxu0 0.0
    %2277 = vmatprep.subr.mxu0 0.0
    %2278 = vmatpush2.msra.mxu0 0.0
    %2279 = vmatprep.subr.mxu0 0.0
    %2280 = vmatpush2.msra.mxu0 0.0
    %2281 = vmatprep.subr.mxu0 0.0
    %2282 = vmatpush2.msra.mxu0 0.0
    %2283 = vmatprep.subr.mxu0 0.0
    %2284 = vmatpush2.msra.mxu0 0.0
    %2285 = vmatprep.mubr.f32.mxu0 0.0
    %2286 = vmatmul.mubr.f32.gmra.mxu0 %v2148
    %v2287 = vpop.f32.mrf.mxu0
    %v2288 = vadd.f32 0.0, %v2287
    %v2289 = vpop.f32.mrf.mxu0
    %v2290 = vadd.f32 0.0, %v2289
    %2291 = vdwg.mxu0
    %v2292 = vmul.f32 %v2217, %v619
    %v2293 = vmul.f32 %v2219, %v623
    %v2294 = vmul.f32 %v2288, %v627
    %v2295 = vmul.f32 %v2290, %v631
    %v2296 = vadd.f32 %v2117, %v2292
    %v2297 = vadd.f32 %v2118, %v2293
    %v2298 = vadd.f32 %v2119, %v2294
    %v2299 = vadd.f32 %v2120, %v2295
    %2300 = vrot.lane.b32.xlu0 %v1758, 1
    %v2301 = vpop.permute.xlu0 %2300
    %2302 = vrot.lane.b32.xlu0 %v1762, 1
    %v2303 = vpop.permute.xlu0 %2302
    %2304 = vrot.lane.b32.xlu0 %v1759, 1
    %v2305 = vpop.permute.xlu0 %2304
    %2306 = vrot.lane.b32.xlu0 %v1763, 1
    %v2307 = vpop.permute.xlu0 %2306
    %2308 = vrot.lane.b32.xlu0 %v1760, 1
    %v2309 = vpop.permute.xlu0 %2308
    %2310 = vrot.lane.b32.xlu0 %v1764, 1
    %v2311 = vpop.permute.xlu0 %2310
    %2312 = vrot.lane.b32.xlu0 %v1761, 1
    %v2313 = vpop.permute.xlu0 %2312
    %2314 = vrot.lane.b32.xlu0 %v1765, 1
    %v2315 = vpop.permute.xlu0 %2314
    %v2316 = vsel %vm652, %v2309, %v2313
    %v2317 = vsel %vm652, %v2311, %v2315
    %v2318 = vsel %vm652, %v2305, %v2309
    %v2319 = vsel %vm652, %v2307, %v2311
    %v2320 = vsel %vm652, %v2301, %v2305
    %v2321 = vsel %vm652, %v2303, %v2307
    %v2322 = vsel %vm652, %v2313, %v2301
    %v2323 = vsel %vm652, %v2315, %v2303
    %s2324 = scalar_lea.vmem [#allocation3], 96
    %v2325 = vld [vmem:[%s2324] sm:$0xff]
    %v2327 = vsel %vm1792, %v2325, 0
    %2329 = vmatprep.subr.mxu0 0.0
    %2330 = vmatpush1.msra.mxu0 0.0
    %2331 = vmatprep.subr.mxu0 0.0
    %2332 = vmatpush1.msra.mxu0 0.0
    %2333 = vmatprep.subr.mxu0 0.0
    %2334 = vmatpush1.msra.mxu0 0.0
    %2335 = vmatprep.subr.mxu0 0.0
    %2336 = vmatpush1.msra.mxu0 0.0
    %2337 = vmatprep.subr.mxu0 0.0
    %2338 = vmatpush1.msra.mxu0 0.0
    %2339 = vmatprep.subr.mxu0 0.0
    %2340 = vmatpush1.msra.mxu0 0.0
    %2341 = vmatprep.subr.mxu0 0.0
    %2342 = vmatpush1.msra.mxu0 0.0
    %2343 = vmatprep.subr.mxu0 0.0
    %2344 = vmatpush1.msra.mxu0 0.0
    %2345 = vmatprep.subr.mxu0 0.0
    %2346 = vmatpush1.msra.mxu0 0.0
    %2347 = vmatprep.subr.mxu0 0.0
    %2348 = vmatpush1.msra.mxu0 0.0
    %2349 = vmatprep.subr.mxu0 0.0
    %2350 = vmatpush1.msra.mxu0 0.0
    %2351 = vmatprep.subr.mxu0 0.0
    %2352 = vmatpush1.msra.mxu0 0.0
    %2353 = vmatprep.subr.mxu0 0.0
    %2354 = vmatpush1.msra.mxu0 0.0
    %2355 = vmatprep.subr.mxu0 0.0
    %2356 = vmatpush1.msra.mxu0 0.0
    %2357 = vmatprep.subr.mxu0 %v2321
    %2358 = vmatpush1.msra.mxu0 %v2323
    %2359 = vmatprep.subr.mxu0 %v2320
    %2360 = vmatpush1.msra.mxu0 %v2322
    %2361 = vmatprep.subr.mxu0 0.0
    %2362 = vmatpush2.msra.mxu0 0.0
    %2363 = vmatprep.subr.mxu0 0.0
    %2364 = vmatpush2.msra.mxu0 0.0
    %2365 = vmatprep.subr.mxu0 0.0
    %2366 = vmatpush2.msra.mxu0 0.0
    %2367 = vmatprep.subr.mxu0 0.0
    %2368 = vmatpush2.msra.mxu0 0.0
    %2369 = vmatprep.subr.mxu0 0.0
    %2370 = vmatpush2.msra.mxu0 0.0
    %2371 = vmatprep.subr.mxu0 0.0
    %2372 = vmatpush2.msra.mxu0 0.0
    %2373 = vmatprep.subr.mxu0 0.0
    %2374 = vmatpush2.msra.mxu0 0.0
    %2375 = vmatprep.subr.mxu0 0.0
    %2376 = vmatpush2.msra.mxu0 0.0
    %2377 = vmatprep.subr.mxu0 0.0
    %2378 = vmatpush2.msra.mxu0 0.0
    %2379 = vmatprep.subr.mxu0 0.0
    %2380 = vmatpush2.msra.mxu0 0.0
    %2381 = vmatprep.subr.mxu0 0.0
    %2382 = vmatpush2.msra.mxu0 0.0
    %2383 = vmatprep.subr.mxu0 0.0
    %2384 = vmatpush2.msra.mxu0 0.0
    %2385 = vmatprep.subr.mxu0 0.0
    %2386 = vmatpush2.msra.mxu0 0.0
    %2387 = vmatprep.subr.mxu0 0.0
    %2388 = vmatpush2.msra.mxu0 0.0
    %2389 = vmatprep.subr.mxu0 0.0
    %2390 = vmatpush2.msra.mxu0 0.0
    %2391 = vmatprep.subr.mxu0 0.0
    %2392 = vmatpush2.msra.mxu0 0.0
    %2393 = vmatprep.mubr.f32.mxu0 0.0
    %2394 = vmatmul.mubr.f32.gmra.mxu0 %v2327
    %v2395 = vpop.f32.mrf.mxu0
    %v2396 = vadd.f32 0.0, %v2395
    %v2397 = vpop.f32.mrf.mxu0
    %v2398 = vadd.f32 0.0, %v2397
    %2399 = vdwg.mxu0
    %2400 = vmatprep.subr.mxu0 0.0
    %2401 = vmatpush1.msra.mxu0 0.0
    %2402 = vmatprep.subr.mxu0 0.0
    %2403 = vmatpush1.msra.mxu0 0.0
    %2404 = vmatprep.subr.mxu0 0.0
    %2405 = vmatpush1.msra.mxu0 0.0
    %2406 = vmatprep.subr.mxu0 0.0
    %2407 = vmatpush1.msra.mxu0 0.0
    %2408 = vmatprep.subr.mxu0 0.0
    %2409 = vmatpush1.msra.mxu0 0.0
    %2410 = vmatprep.subr.mxu0 0.0
    %2411 = vmatpush1.msra.mxu0 0.0
    %2412 = vmatprep.subr.mxu0 0.0
    %2413 = vmatpush1.msra.mxu0 0.0
    %2414 = vmatprep.subr.mxu0 0.0
    %2415 = vmatpush1.msra.mxu0 0.0
    %2416 = vmatprep.subr.mxu0 0.0
    %2417 = vmatpush1.msra.mxu0 0.0
    %2418 = vmatprep.subr.mxu0 0.0
    %2419 = vmatpush1.msra.mxu0 0.0
    %2420 = vmatprep.subr.mxu0 0.0
    %2421 = vmatpush1.msra.mxu0 0.0
    %2422 = vmatprep.subr.mxu0 0.0
    %2423 = vmatpush1.msra.mxu0 0.0
    %2424 = vmatprep.subr.mxu0 0.0
    %2425 = vmatpush1.msra.mxu0 0.0
    %2426 = vmatprep.subr.mxu0 0.0
    %2427 = vmatpush1.msra.mxu0 0.0
    %2428 = vmatprep.subr.mxu0 %v2317
    %2429 = vmatpush1.msra.mxu0 %v2319
    %2430 = vmatprep.subr.mxu0 %v2316
    %2431 = vmatpush1.msra.mxu0 %v2318
    %2432 = vmatprep.subr.mxu0 0.0
    %2433 = vmatpush2.msra.mxu0 0.0
    %2434 = vmatprep.subr.mxu0 0.0
    %2435 = vmatpush2.msra.mxu0 0.0
    %2436 = vmatprep.subr.mxu0 0.0
    %2437 = vmatpush2.msra.mxu0 0.0
    %2438 = vmatprep.subr.mxu0 0.0
    %2439 = vmatpush2.msra.mxu0 0.0
    %2440 = vmatprep.subr.mxu0 0.0
    %2441 = vmatpush2.msra.mxu0 0.0
    %2442 = vmatprep.subr.mxu0 0.0
    %2443 = vmatpush2.msra.mxu0 0.0
    %2444 = vmatprep.subr.mxu0 0.0
    %2445 = vmatpush2.msra.mxu0 0.0
    %2446 = vmatprep.subr.mxu0 0.0
    %2447 = vmatpush2.msra.mxu0 0.0
    %2448 = vmatprep.subr.mxu0 0.0
    %2449 = vmatpush2.msra.mxu0 0.0
    %2450 = vmatprep.subr.mxu0 0.0
    %2451 = vmatpush2.msra.mxu0 0.0
    %2452 = vmatprep.subr.mxu0 0.0
    %2453 = vmatpush2.msra.mxu0 0.0
    %2454 = vmatprep.subr.mxu0 0.0
    %2455 = vmatpush2.msra.mxu0 0.0
    %2456 = vmatprep.subr.mxu0 0.0
    %2457 = vmatpush2.msra.mxu0 0.0
    %2458 = vmatprep.subr.mxu0 0.0
    %2459 = vmatpush2.msra.mxu0 0.0
    %2460 = vmatprep.subr.mxu0 0.0
    %2461 = vmatpush2.msra.mxu0 0.0
    %2462 = vmatprep.subr.mxu0 0.0
    %2463 = vmatpush2.msra.mxu0 0.0
    %2464 = vmatprep.mubr.f32.mxu0 0.0
    %2465 = vmatmul.mubr.f32.gmra.mxu0 %v2327
    %v2466 = vpop.f32.mrf.mxu0
    %v2467 = vadd.f32 0.0, %v2466
    %v2468 = vpop.f32.mrf.mxu0
    %v2469 = vadd.f32 0.0, %v2468
    %2470 = vdwg.mxu0
    %v2471 = vmul.f32 %v2396, %v808
    %v2472 = vmul.f32 %v2398, %v812
    %v2473 = vmul.f32 %v2467, %v816
    %v2474 = vmul.f32 %v2469, %v820
    %v2475 = vadd.f32 %v2296, %v2471
    %v2476 = vadd.f32 %v2297, %v2472
    %v2477 = vadd.f32 %v2298, %v2473
    %v2478 = vadd.f32 %v2299, %v2474
    %s2479 = scalar_lea.vmem [#allocation3], 104
    %v2480 = vld [vmem:[%s2479] sm:$0xff]
    %v2482 = vsel %vm1792, %v2480, 0
    %2484 = vmatprep.subr.mxu0 0.0
    %2485 = vmatpush1.msra.mxu0 0.0
    %2486 = vmatprep.subr.mxu0 0.0
    %2487 = vmatpush1.msra.mxu0 0.0
    %2488 = vmatprep.subr.mxu0 0.0
    %2489 = vmatpush1.msra.mxu0 0.0
    %2490 = vmatprep.subr.mxu0 0.0
    %2491 = vmatpush1.msra.mxu0 0.0
    %2492 = vmatprep.subr.mxu0 0.0
    %2493 = vmatpush1.msra.mxu0 0.0
    %2494 = vmatprep.subr.mxu0 0.0
    %2495 = vmatpush1.msra.mxu0 0.0
    %2496 = vmatprep.subr.mxu0 0.0
    %2497 = vmatpush1.msra.mxu0 0.0
    %2498 = vmatprep.subr.mxu0 0.0
    %2499 = vmatpush1.msra.mxu0 0.0
    %2500 = vmatprep.subr.mxu0 0.0
    %2501 = vmatpush1.msra.mxu0 0.0
    %2502 = vmatprep.subr.mxu0 0.0
    %2503 = vmatpush1.msra.mxu0 0.0
    %2504 = vmatprep.subr.mxu0 0.0
    %2505 = vmatpush1.msra.mxu0 0.0
    %2506 = vmatprep.subr.mxu0 0.0
    %2507 = vmatpush1.msra.mxu0 0.0
    %2508 = vmatprep.subr.mxu0 0.0
    %2509 = vmatpush1.msra.mxu0 0.0
    %2510 = vmatprep.subr.mxu0 0.0
    %2511 = vmatpush1.msra.mxu0 0.0
    %2512 = vmatprep.subr.mxu0 %v1763
    %2513 = vmatpush1.msra.mxu0 %v1762
    %2514 = vmatprep.subr.mxu0 %v1759
    %2515 = vmatpush1.msra.mxu0 %v1758
    %2516 = vmatprep.subr.mxu0 0.0
    %2517 = vmatpush2.msra.mxu0 0.0
    %2518 = vmatprep.subr.mxu0 0.0
    %2519 = vmatpush2.msra.mxu0 0.0
    %2520 = vmatprep.subr.mxu0 0.0
    %2521 = vmatpush2.msra.mxu0 0.0
    %2522 = vmatprep.subr.mxu0 0.0
    %2523 = vmatpush2.msra.mxu0 0.0
    %2524 = vmatprep.subr.mxu0 0.0
    %2525 = vmatpush2.msra.mxu0 0.0
    %2526 = vmatprep.subr.mxu0 0.0
    %2527 = vmatpush2.msra.mxu0 0.0
    %2528 = vmatprep.subr.mxu0 0.0
    %2529 = vmatpush2.msra.mxu0 0.0
    %2530 = vmatprep.subr.mxu0 0.0
    %2531 = vmatpush2.msra.mxu0 0.0
    %2532 = vmatprep.subr.mxu0 0.0
    %2533 = vmatpush2.msra.mxu0 0.0
    %2534 = vmatprep.subr.mxu0 0.0
    %2535 = vmatpush2.msra.mxu0 0.0
    %2536 = vmatprep.subr.mxu0 0.0
    %2537 = vmatpush2.msra.mxu0 0.0
    %2538 = vmatprep.subr.mxu0 0.0
    %2539 = vmatpush2.msra.mxu0 0.0
    %2540 = vmatprep.subr.mxu0 0.0
    %2541 = vmatpush2.msra.mxu0 0.0
    %2542 = vmatprep.subr.mxu0 0.0
    %2543 = vmatpush2.msra.mxu0 0.0
    %2544 = vmatprep.subr.mxu0 0.0
    %2545 = vmatpush2.msra.mxu0 0.0
    %2546 = vmatprep.subr.mxu0 0.0
    %2547 = vmatpush2.msra.mxu0 0.0
    %2548 = vmatprep.mubr.f32.mxu0 0.0
    %2549 = vmatmul.mubr.f32.gmra.mxu0 %v2482
    %v2550 = vpop.f32.mrf.mxu0
    %v2551 = vadd.f32 0.0, %v2550
    %v2552 = vpop.f32.mrf.mxu0
    %v2553 = vadd.f32 0.0, %v2552
    %2554 = vdwg.mxu0
    %2555 = vmatprep.subr.mxu0 0.0
    %2556 = vmatpush1.msra.mxu0 0.0
    %2557 = vmatprep.subr.mxu0 0.0
    %2558 = vmatpush1.msra.mxu0 0.0
    %2559 = vmatprep.subr.mxu0 0.0
    %2560 = vmatpush1.msra.mxu0 0.0
    %2561 = vmatprep.subr.mxu0 0.0
    %2562 = vmatpush1.msra.mxu0 0.0
    %2563 = vmatprep.subr.mxu0 0.0
    %2564 = vmatpush1.msra.mxu0 0.0
    %2565 = vmatprep.subr.mxu0 0.0
    %2566 = vmatpush1.msra.mxu0 0.0
    %2567 = vmatprep.subr.mxu0 0.0
    %2568 = vmatpush1.msra.mxu0 0.0
    %2569 = vmatprep.subr.mxu0 0.0
    %2570 = vmatpush1.msra.mxu0 0.0
    %2571 = vmatprep.subr.mxu0 0.0
    %2572 = vmatpush1.msra.mxu0 0.0
    %2573 = vmatprep.subr.mxu0 0.0
    %2574 = vmatpush1.msra.mxu0 0.0
    %2575 = vmatprep.subr.mxu0 0.0
    %2576 = vmatpush1.msra.mxu0 0.0
    %2577 = vmatprep.subr.mxu0 0.0
    %2578 = vmatpush1.msra.mxu0 0.0
    %2579 = vmatprep.subr.mxu0 0.0
    %2580 = vmatpush1.msra.mxu0 0.0
    %2581 = vmatprep.subr.mxu0 0.0
    %2582 = vmatpush1.msra.mxu0 0.0
    %2583 = vmatprep.subr.mxu0 %v1765
    %2584 = vmatpush1.msra.mxu0 %v1764
    %2585 = vmatprep.subr.mxu0 %v1761
    %2586 = vmatpush1.msra.mxu0 %v1760
    %2587 = vmatprep.subr.mxu0 0.0
    %2588 = vmatpush2.msra.mxu0 0.0
    %2589 = vmatprep.subr.mxu0 0.0
    %2590 = vmatpush2.msra.mxu0 0.0
    %2591 = vmatprep.subr.mxu0 0.0
    %2592 = vmatpush2.msra.mxu0 0.0
    %2593 = vmatprep.subr.mxu0 0.0
    %2594 = vmatpush2.msra.mxu0 0.0
    %2595 = vmatprep.subr.mxu0 0.0
    %2596 = vmatpush2.msra.mxu0 0.0
    %2597 = vmatprep.subr.mxu0 0.0
    %2598 = vmatpush2.msra.mxu0 0.0
    %2599 = vmatprep.subr.mxu0 0.0
    %2600 = vmatpush2.msra.mxu0 0.0
    %2601 = vmatprep.subr.mxu0 0.0
    %2602 = vmatpush2.msra.mxu0 0.0
    %2603 = vmatprep.subr.mxu0 0.0
    %2604 = vmatpush2.msra.mxu0 0.0
    %2605 = vmatprep.subr.mxu0 0.0
    %2606 = vmatpush2.msra.mxu0 0.0
    %2607 = vmatprep.subr.mxu0 0.0
    %2608 = vmatpush2.msra.mxu0 0.0
    %2609 = vmatprep.subr.mxu0 0.0
    %2610 = vmatpush2.msra.mxu0 0.0
    %2611 = vmatprep.subr.mxu0 0.0
    %2612 = vmatpush2.msra.mxu0 0.0
    %2613 = vmatprep.subr.mxu0 0.0
    %2614 = vmatpush2.msra.mxu0 0.0
    %2615 = vmatprep.subr.mxu0 0.0
    %2616 = vmatpush2.msra.mxu0 0.0
    %2617 = vmatprep.subr.mxu0 0.0
    %2618 = vmatpush2.msra.mxu0 0.0
    %2619 = vmatprep.mubr.f32.mxu0 0.0
    %2620 = vmatmul.mubr.f32.gmra.mxu0 %v2482
    %v2621 = vpop.f32.mrf.mxu0
    %v2622 = vadd.f32 0.0, %v2621
    %v2623 = vpop.f32.mrf.mxu0
    %v2624 = vadd.f32 0.0, %v2623
    %2625 = vdwg.mxu0
    %v2626 = vadd.f32 %v2475, %v2551
    %v2627 = vadd.f32 %v2476, %v2553
    %v2628 = vadd.f32 %v2477, %v2622
    %v2629 = vadd.f32 %v2478, %v2624
    %2630 = vrot.lane.b32.xlu0 %v1758, 127
    %v2631 = vpop.permute.xlu0 %2630
    %2632 = vrot.lane.b32.xlu0 %v1762, 127
    %v2633 = vpop.permute.xlu0 %2632
    %2634 = vrot.lane.b32.xlu0 %v1759, 127
    %v2635 = vpop.permute.xlu0 %2634
    %2636 = vrot.lane.b32.xlu0 %v1763, 127
    %v2637 = vpop.permute.xlu0 %2636
    %2638 = vrot.lane.b32.xlu0 %v1760, 127
    %v2639 = vpop.permute.xlu0 %2638
    %2640 = vrot.lane.b32.xlu0 %v1764, 127
    %v2641 = vpop.permute.xlu0 %2640
    %2642 = vrot.lane.b32.xlu0 %v1761, 127
    %v2643 = vpop.permute.xlu0 %2642
    %2644 = vrot.lane.b32.xlu0 %v1765, 127
    %v2645 = vpop.permute.xlu0 %2644
    %v2646 = vsel %vm992, %v2639, %v2643
    %v2647 = vsel %vm992, %v2641, %v2645
    %v2648 = vsel %vm992, %v2635, %v2639
    %v2649 = vsel %vm992, %v2637, %v2641
    %v2650 = vsel %vm992, %v2631, %v2635
    %v2651 = vsel %vm992, %v2633, %v2637
    %v2652 = vsel %vm992, %v2643, %v2631
    %v2653 = vsel %vm992, %v2645, %v2633
    %s2654 = scalar_lea.vmem [#allocation3], 112
    %v2655 = vld [vmem:[%s2654] sm:$0xff]
    %v2657 = vsel %vm1792, %v2655, 0
    %2659 = vmatprep.subr.mxu0 0.0
    %2660 = vmatpush1.msra.mxu0 0.0
    %2661 = vmatprep.subr.mxu0 0.0
    %2662 = vmatpush1.msra.mxu0 0.0
    %2663 = vmatprep.subr.mxu0 0.0
    %2664 = vmatpush1.msra.mxu0 0.0
    %2665 = vmatprep.subr.mxu0 0.0
    %2666 = vmatpush1.msra.mxu0 0.0
    %2667 = vmatprep.subr.mxu0 0.0
    %2668 = vmatpush1.msra.mxu0 0.0
    %2669 = vmatprep.subr.mxu0 0.0
    %2670 = vmatpush1.msra.mxu0 0.0
    %2671 = vmatprep.subr.mxu0 0.0
    %2672 = vmatpush1.msra.mxu0 0.0
    %2673 = vmatprep.subr.mxu0 0.0
    %2674 = vmatpush1.msra.mxu0 0.0
    %2675 = vmatprep.subr.mxu0 0.0
    %2676 = vmatpush1.msra.mxu0 0.0
    %2677 = vmatprep.subr.mxu0 0.0
    %2678 = vmatpush1.msra.mxu0 0.0
    %2679 = vmatprep.subr.mxu0 0.0
    %2680 = vmatpush1.msra.mxu0 0.0
    %2681 = vmatprep.subr.mxu0 0.0
    %2682 = vmatpush1.msra.mxu0 0.0
    %2683 = vmatprep.subr.mxu0 0.0
    %2684 = vmatpush1.msra.mxu0 0.0
    %2685 = vmatprep.subr.mxu0 0.0
    %2686 = vmatpush1.msra.mxu0 0.0
    %2687 = vmatprep.subr.mxu0 %v2649
    %2688 = vmatpush1.msra.mxu0 %v2651
    %2689 = vmatprep.subr.mxu0 %v2648
    %2690 = vmatpush1.msra.mxu0 %v2650
    %2691 = vmatprep.subr.mxu0 0.0
    %2692 = vmatpush2.msra.mxu0 0.0
    %2693 = vmatprep.subr.mxu0 0.0
    %2694 = vmatpush2.msra.mxu0 0.0
    %2695 = vmatprep.subr.mxu0 0.0
    %2696 = vmatpush2.msra.mxu0 0.0
    %2697 = vmatprep.subr.mxu0 0.0
    %2698 = vmatpush2.msra.mxu0 0.0
    %2699 = vmatprep.subr.mxu0 0.0
    %2700 = vmatpush2.msra.mxu0 0.0
    %2701 = vmatprep.subr.mxu0 0.0
    %2702 = vmatpush2.msra.mxu0 0.0
    %2703 = vmatprep.subr.mxu0 0.0
    %2704 = vmatpush2.msra.mxu0 0.0
    %2705 = vmatprep.subr.mxu0 0.0
    %2706 = vmatpush2.msra.mxu0 0.0
    %2707 = vmatprep.subr.mxu0 0.0
    %2708 = vmatpush2.msra.mxu0 0.0
    %2709 = vmatprep.subr.mxu0 0.0
    %2710 = vmatpush2.msra.mxu0 0.0
    %2711 = vmatprep.subr.mxu0 0.0
    %2712 = vmatpush2.msra.mxu0 0.0
    %2713 = vmatprep.subr.mxu0 0.0
    %2714 = vmatpush2.msra.mxu0 0.0
    %2715 = vmatprep.subr.mxu0 0.0
    %2716 = vmatpush2.msra.mxu0 0.0
    %2717 = vmatprep.subr.mxu0 0.0
    %2718 = vmatpush2.msra.mxu0 0.0
    %2719 = vmatprep.subr.mxu0 0.0
    %2720 = vmatpush2.msra.mxu0 0.0
    %2721 = vmatprep.subr.mxu0 0.0
    %2722 = vmatpush2.msra.mxu0 0.0
    %2723 = vmatprep.mubr.f32.mxu0 0.0
    %2724 = vmatmul.mubr.f32.gmra.mxu0 %v2657
    %v2725 = vpop.f32.mrf.mxu0
    %v2726 = vadd.f32 0.0, %v2725
    %v2727 = vpop.f32.mrf.mxu0
    %v2728 = vadd.f32 0.0, %v2727
    %2729 = vdwg.mxu0
    %2730 = vmatprep.subr.mxu0 0.0
    %2731 = vmatpush1.msra.mxu0 0.0
    %2732 = vmatprep.subr.mxu0 0.0
    %2733 = vmatpush1.msra.mxu0 0.0
    %2734 = vmatprep.subr.mxu0 0.0
    %2735 = vmatpush1.msra.mxu0 0.0
    %2736 = vmatprep.subr.mxu0 0.0
    %2737 = vmatpush1.msra.mxu0 0.0
    %2738 = vmatprep.subr.mxu0 0.0
    %2739 = vmatpush1.msra.mxu0 0.0
    %2740 = vmatprep.subr.mxu0 0.0
    %2741 = vmatpush1.msra.mxu0 0.0
    %2742 = vmatprep.subr.mxu0 0.0
    %2743 = vmatpush1.msra.mxu0 0.0
    %2744 = vmatprep.subr.mxu0 0.0
    %2745 = vmatpush1.msra.mxu0 0.0
    %2746 = vmatprep.subr.mxu0 0.0
    %2747 = vmatpush1.msra.mxu0 0.0
    %2748 = vmatprep.subr.mxu0 0.0
    %2749 = vmatpush1.msra.mxu0 0.0
    %2750 = vmatprep.subr.mxu0 0.0
    %2751 = vmatpush1.msra.mxu0 0.0
    %2752 = vmatprep.subr.mxu0 0.0
    %2753 = vmatpush1.msra.mxu0 0.0
    %2754 = vmatprep.subr.mxu0 0.0
    %2755 = vmatpush1.msra.mxu0 0.0
    %2756 = vmatprep.subr.mxu0 0.0
    %2757 = vmatpush1.msra.mxu0 0.0
    %2758 = vmatprep.subr.mxu0 %v2653
    %2759 = vmatpush1.msra.mxu0 %v2647
    %2760 = vmatprep.subr.mxu0 %v2652
    %2761 = vmatpush1.msra.mxu0 %v2646
    %2762 = vmatprep.subr.mxu0 0.0
    %2763 = vmatpush2.msra.mxu0 0.0
    %2764 = vmatprep.subr.mxu0 0.0
    %2765 = vmatpush2.msra.mxu0 0.0
    %2766 = vmatprep.subr.mxu0 0.0
    %2767 = vmatpush2.msra.mxu0 0.0
    %2768 = vmatprep.subr.mxu0 0.0
    %2769 = vmatpush2.msra.mxu0 0.0
    %2770 = vmatprep.subr.mxu0 0.0
    %2771 = vmatpush2.msra.mxu0 0.0
    %2772 = vmatprep.subr.mxu0 0.0
    %2773 = vmatpush2.msra.mxu0 0.0
    %2774 = vmatprep.subr.mxu0 0.0
    %2775 = vmatpush2.msra.mxu0 0.0
    %2776 = vmatprep.subr.mxu0 0.0
    %2777 = vmatpush2.msra.mxu0 0.0
    %2778 = vmatprep.subr.mxu0 0.0
    %2779 = vmatpush2.msra.mxu0 0.0
    %2780 = vmatprep.subr.mxu0 0.0
    %2781 = vmatpush2.msra.mxu0 0.0
    %2782 = vmatprep.subr.mxu0 0.0
    %2783 = vmatpush2.msra.mxu0 0.0
    %2784 = vmatprep.subr.mxu0 0.0
    %2785 = vmatpush2.msra.mxu0 0.0
    %2786 = vmatprep.subr.mxu0 0.0
    %2787 = vmatpush2.msra.mxu0 0.0
    %2788 = vmatprep.subr.mxu0 0.0
    %2789 = vmatpush2.msra.mxu0 0.0
    %2790 = vmatprep.subr.mxu0 0.0
    %2791 = vmatpush2.msra.mxu0 0.0
    %2792 = vmatprep.subr.mxu0 0.0
    %2793 = vmatpush2.msra.mxu0 0.0
    %2794 = vmatprep.mubr.f32.mxu0 0.0
    %2795 = vmatmul.mubr.f32.gmra.mxu0 %v2657
    %v2796 = vpop.f32.mrf.mxu0
    %v2797 = vadd.f32 0.0, %v2796
    %v2798 = vpop.f32.mrf.mxu0
    %v2799 = vadd.f32 0.0, %v2798
    %2800 = vdwg.mxu0
    %v2801 = vmul.f32 %v2726, %v1148
    %v2802 = vmul.f32 %v2728, %v1152
    %v2803 = vmul.f32 %v2797, %v1156
    %v2804 = vmul.f32 %v2799, %v1160
    %v2805 = vadd.f32 %v2626, %v2801
    %v2806 = vadd.f32 %v2627, %v2802
    %v2807 = vadd.f32 %v2628, %v2803
    %v2808 = vadd.f32 %v2629, %v2804
    %2809 = vrot.lane.b32.xlu0 %v1758, 113
    %v2810 = vpop.permute.xlu0 %2809
    %2811 = vrot.lane.b32.xlu0 %v1762, 113
    %v2812 = vpop.permute.xlu0 %2811
    %2813 = vrot.lane.b32.xlu0 %v1759, 113
    %v2814 = vpop.permute.xlu0 %2813
    %2815 = vrot.lane.b32.xlu0 %v1763, 113
    %v2816 = vpop.permute.xlu0 %2815
    %2817 = vrot.lane.b32.xlu0 %v1760, 113
    %v2818 = vpop.permute.xlu0 %2817
    %2819 = vrot.lane.b32.xlu0 %v1764, 113
    %v2820 = vpop.permute.xlu0 %2819
    %2821 = vrot.lane.b32.xlu0 %v1761, 113
    %v2822 = vpop.permute.xlu0 %2821
    %2823 = vrot.lane.b32.xlu0 %v1765, 113
    %v2824 = vpop.permute.xlu0 %2823
    %v2825 = vsel %vm1181, %v2818, %v2822
    %v2826 = vsel %vm1181, %v2820, %v2824
    %v2827 = vsel %vm1181, %v2814, %v2818
    %v2828 = vsel %vm1181, %v2816, %v2820
    %v2829 = vsel %vm1181, %v2810, %v2814
    %v2830 = vsel %vm1181, %v2812, %v2816
    %v2831 = vsel %vm1181, %v2822, %v2810
    %v2832 = vsel %vm1181, %v2824, %v2812
    %s2833 = scalar_lea.vmem [#allocation3], 120
    %v2834 = vld [vmem:[%s2833] sm:$0xff]
    %v2836 = vsel %vm1792, %v2834, 0
    %2838 = vmatprep.subr.mxu0 0.0
    %2839 = vmatpush1.msra.mxu0 0.0
    %2840 = vmatprep.subr.mxu0 0.0
    %2841 = vmatpush1.msra.mxu0 0.0
    %2842 = vmatprep.subr.mxu0 0.0
    %2843 = vmatpush1.msra.mxu0 0.0
    %2844 = vmatprep.subr.mxu0 0.0
    %2845 = vmatpush1.msra.mxu0 0.0
    %2846 = vmatprep.subr.mxu0 0.0
    %2847 = vmatpush1.msra.mxu0 0.0
    %2848 = vmatprep.subr.mxu0 0.0
    %2849 = vmatpush1.msra.mxu0 0.0
    %2850 = vmatprep.subr.mxu0 0.0
    %2851 = vmatpush1.msra.mxu0 0.0
    %2852 = vmatprep.subr.mxu0 0.0
    %2853 = vmatpush1.msra.mxu0 0.0
    %2854 = vmatprep.subr.mxu0 0.0
    %2855 = vmatpush1.msra.mxu0 0.0
    %2856 = vmatprep.subr.mxu0 0.0
    %2857 = vmatpush1.msra.mxu0 0.0
    %2858 = vmatprep.subr.mxu0 0.0
    %2859 = vmatpush1.msra.mxu0 0.0
    %2860 = vmatprep.subr.mxu0 0.0
    %2861 = vmatpush1.msra.mxu0 0.0
    %2862 = vmatprep.subr.mxu0 0.0
    %2863 = vmatpush1.msra.mxu0 0.0
    %2864 = vmatprep.subr.mxu0 0.0
    %2865 = vmatpush1.msra.mxu0 0.0
    %2866 = vmatprep.subr.mxu0 %v2828
    %2867 = vmatpush1.msra.mxu0 %v2830
    %2868 = vmatprep.subr.mxu0 %v2827
    %2869 = vmatpush1.msra.mxu0 %v2829
    %2870 = vmatprep.subr.mxu0 0.0
    %2871 = vmatpush2.msra.mxu0 0.0
    %2872 = vmatprep.subr.mxu0 0.0
    %2873 = vmatpush2.msra.mxu0 0.0
    %2874 = vmatprep.subr.mxu0 0.0
    %2875 = vmatpush2.msra.mxu0 0.0
    %2876 = vmatprep.subr.mxu0 0.0
    %2877 = vmatpush2.msra.mxu0 0.0
    %2878 = vmatprep.subr.mxu0 0.0
    %2879 = vmatpush2.msra.mxu0 0.0
    %2880 = vmatprep.subr.mxu0 0.0
    %2881 = vmatpush2.msra.mxu0 0.0
    %2882 = vmatprep.subr.mxu0 0.0
    %2883 = vmatpush2.msra.mxu0 0.0
    %2884 = vmatprep.subr.mxu0 0.0
    %2885 = vmatpush2.msra.mxu0 0.0
    %2886 = vmatprep.subr.mxu0 0.0
    %2887 = vmatpush2.msra.mxu0 0.0
    %2888 = vmatprep.subr.mxu0 0.0
    %2889 = vmatpush2.msra.mxu0 0.0
    %2890 = vmatprep.subr.mxu0 0.0
    %2891 = vmatpush2.msra.mxu0 0.0
    %2892 = vmatprep.subr.mxu0 0.0
    %2893 = vmatpush2.msra.mxu0 0.0
    %2894 = vmatprep.subr.mxu0 0.0
    %2895 = vmatpush2.msra.mxu0 0.0
    %2896 = vmatprep.subr.mxu0 0.0
    %2897 = vmatpush2.msra.mxu0 0.0
    %2898 = vmatprep.subr.mxu0 0.0
    %2899 = vmatpush2.msra.mxu0 0.0
    %2900 = vmatprep.subr.mxu0 0.0
    %2901 = vmatpush2.msra.mxu0 0.0
    %2902 = vmatprep.mubr.f32.mxu0 0.0
    %2903 = vmatmul.mubr.f32.gmra.mxu0 %v2836
    %v2904 = vpop.f32.mrf.mxu0
    %v2905 = vadd.f32 0.0, %v2904
    %v2906 = vpop.f32.mrf.mxu0
    %v2907 = vadd.f32 0.0, %v2906
    %2908 = vdwg.mxu0
    %2909 = vmatprep.subr.mxu0 0.0
    %2910 = vmatpush1.msra.mxu0 0.0
    %2911 = vmatprep.subr.mxu0 0.0
    %2912 = vmatpush1.msra.mxu0 0.0
    %2913 = vmatprep.subr.mxu0 0.0
    %2914 = vmatpush1.msra.mxu0 0.0
    %2915 = vmatprep.subr.mxu0 0.0
    %2916 = vmatpush1.msra.mxu0 0.0
    %2917 = vmatprep.subr.mxu0 0.0
    %2918 = vmatpush1.msra.mxu0 0.0
    %2919 = vmatprep.subr.mxu0 0.0
    %2920 = vmatpush1.msra.mxu0 0.0
    %2921 = vmatprep.subr.mxu0 0.0
    %2922 = vmatpush1.msra.mxu0 0.0
    %2923 = vmatprep.subr.mxu0 0.0
    %2924 = vmatpush1.msra.mxu0 0.0
    %2925 = vmatprep.subr.mxu0 0.0
    %2926 = vmatpush1.msra.mxu0 0.0
    %2927 = vmatprep.subr.mxu0 0.0
    %2928 = vmatpush1.msra.mxu0 0.0
    %2929 = vmatprep.subr.mxu0 0.0
    %2930 = vmatpush1.msra.mxu0 0.0
    %2931 = vmatprep.subr.mxu0 0.0
    %2932 = vmatpush1.msra.mxu0 0.0
    %2933 = vmatprep.subr.mxu0 0.0
    %2934 = vmatpush1.msra.mxu0 0.0
    %2935 = vmatprep.subr.mxu0 0.0
    %2936 = vmatpush1.msra.mxu0 0.0
    %2937 = vmatprep.subr.mxu0 %v2832
    %2938 = vmatpush1.msra.mxu0 %v2826
    %2939 = vmatprep.subr.mxu0 %v2831
    %2940 = vmatpush1.msra.mxu0 %v2825
    %2941 = vmatprep.subr.mxu0 0.0
    %2942 = vmatpush2.msra.mxu0 0.0
    %2943 = vmatprep.subr.mxu0 0.0
    %2944 = vmatpush2.msra.mxu0 0.0
    %2945 = vmatprep.subr.mxu0 0.0
    %2946 = vmatpush2.msra.mxu0 0.0
    %2947 = vmatprep.subr.mxu0 0.0
    %2948 = vmatpush2.msra.mxu0 0.0
    %2949 = vmatprep.subr.mxu0 0.0
    %2950 = vmatpush2.msra.mxu0 0.0
    %2951 = vmatprep.subr.mxu0 0.0
    %2952 = vmatpush2.msra.mxu0 0.0
    %2953 = vmatprep.subr.mxu0 0.0
    %2954 = vmatpush2.msra.mxu0 0.0
    %2955 = vmatprep.subr.mxu0 0.0
    %2956 = vmatpush2.msra.mxu0 0.0
    %2957 = vmatprep.subr.mxu0 0.0
    %2958 = vmatpush2.msra.mxu0 0.0
    %2959 = vmatprep.subr.mxu0 0.0
    %2960 = vmatpush2.msra.mxu0 0.0
    %2961 = vmatprep.subr.mxu0 0.0
    %2962 = vmatpush2.msra.mxu0 0.0
    %2963 = vmatprep.subr.mxu0 0.0
    %2964 = vmatpush2.msra.mxu0 0.0
    %2965 = vmatprep.subr.mxu0 0.0
    %2966 = vmatpush2.msra.mxu0 0.0
    %2967 = vmatprep.subr.mxu0 0.0
    %2968 = vmatpush2.msra.mxu0 0.0
    %2969 = vmatprep.subr.mxu0 0.0
    %2970 = vmatpush2.msra.mxu0 0.0
    %2971 = vmatprep.subr.mxu0 0.0
    %2972 = vmatpush2.msra.mxu0 0.0
    %2973 = vmatprep.mubr.f32.mxu0 0.0
    %2974 = vmatmul.mubr.f32.gmra.mxu0 %v2836
    %v2975 = vpop.f32.mrf.mxu0
    %v2976 = vadd.f32 0.0, %v2975
    %v2977 = vpop.f32.mrf.mxu0
    %v2978 = vadd.f32 0.0, %v2977
    %2979 = vdwg.mxu0
    %v2980 = vmul.f32 %v2905, %v1337
    %v2981 = vmul.f32 %v2907, %v1341
    %v2982 = vmul.f32 %v2976, %v1345
    %v2983 = vmul.f32 %v2978, %v1349
    %v2984 = vadd.f32 %v2805, %v2980
    %v2985 = vadd.f32 %v2806, %v2981
    %v2986 = vadd.f32 %v2807, %v2982
    %v2987 = vadd.f32 %v2808, %v2983
    %2988 = vrot.lane.b32.xlu0 %v1758, 112
    %v2989 = vpop.permute.xlu0 %2988
    %2990 = vrot.lane.b32.xlu0 %v1762, 112
    %v2991 = vpop.permute.xlu0 %2990
    %2992 = vrot.lane.b32.xlu0 %v1759, 112
    %v2993 = vpop.permute.xlu0 %2992
    %2994 = vrot.lane.b32.xlu0 %v1763, 112
    %v2995 = vpop.permute.xlu0 %2994
    %2996 = vrot.lane.b32.xlu0 %v1760, 112
    %v2997 = vpop.permute.xlu0 %2996
    %2998 = vrot.lane.b32.xlu0 %v1764, 112
    %v2999 = vpop.permute.xlu0 %2998
    %3000 = vrot.lane.b32.xlu0 %v1761, 112
    %v3001 = vpop.permute.xlu0 %3000
    %3002 = vrot.lane.b32.xlu0 %v1765, 112
    %v3003 = vpop.permute.xlu0 %3002
    %v3004 = vsel %vm1370, %v2997, %v3001
    %v3005 = vsel %vm1370, %v2999, %v3003
    %v3006 = vsel %vm1370, %v2993, %v2997
    %v3007 = vsel %vm1370, %v2995, %v2999
    %v3008 = vsel %vm1370, %v2989, %v2993
    %v3009 = vsel %vm1370, %v2991, %v2995
    %v3010 = vsel %vm1370, %v3001, %v2989
    %v3011 = vsel %vm1370, %v3003, %v2991
    %s3012 = scalar_lea.vmem [#allocation3], 128
    %v3013 = vld [vmem:[%s3012] sm:$0xff]
    %v3015 = vsel %vm1792, %v3013, 0
    %3017 = vmatprep.subr.mxu0 0.0
    %3018 = vmatpush1.msra.mxu0 0.0
    %3019 = vmatprep.subr.mxu0 0.0
    %3020 = vmatpush1.msra.mxu0 0.0
    %3021 = vmatprep.subr.mxu0 0.0
    %3022 = vmatpush1.msra.mxu0 0.0
    %3023 = vmatprep.subr.mxu0 0.0
    %3024 = vmatpush1.msra.mxu0 0.0
    %3025 = vmatprep.subr.mxu0 0.0
    %3026 = vmatpush1.msra.mxu0 0.0
    %3027 = vmatprep.subr.mxu0 0.0
    %3028 = vmatpush1.msra.mxu0 0.0
    %3029 = vmatprep.subr.mxu0 0.0
    %3030 = vmatpush1.msra.mxu0 0.0
    %3031 = vmatprep.subr.mxu0 0.0
    %3032 = vmatpush1.msra.mxu0 0.0
    %3033 = vmatprep.subr.mxu0 0.0
    %3034 = vmatpush1.msra.mxu0 0.0
    %3035 = vmatprep.subr.mxu0 0.0
    %3036 = vmatpush1.msra.mxu0 0.0
    %3037 = vmatprep.subr.mxu0 0.0
    %3038 = vmatpush1.msra.mxu0 0.0
    %3039 = vmatprep.subr.mxu0 0.0
    %3040 = vmatpush1.msra.mxu0 0.0
    %3041 = vmatprep.subr.mxu0 0.0
    %3042 = vmatpush1.msra.mxu0 0.0
    %3043 = vmatprep.subr.mxu0 0.0
    %3044 = vmatpush1.msra.mxu0 0.0
    %3045 = vmatprep.subr.mxu0 %v3007
    %3046 = vmatpush1.msra.mxu0 %v3009
    %3047 = vmatprep.subr.mxu0 %v3006
    %3048 = vmatpush1.msra.mxu0 %v3008
    %3049 = vmatprep.subr.mxu0 0.0
    %3050 = vmatpush2.msra.mxu0 0.0
    %3051 = vmatprep.subr.mxu0 0.0
    %3052 = vmatpush2.msra.mxu0 0.0
    %3053 = vmatprep.subr.mxu0 0.0
    %3054 = vmatpush2.msra.mxu0 0.0
    %3055 = vmatprep.subr.mxu0 0.0
    %3056 = vmatpush2.msra.mxu0 0.0
    %3057 = vmatprep.subr.mxu0 0.0
    %3058 = vmatpush2.msra.mxu0 0.0
    %3059 = vmatprep.subr.mxu0 0.0
    %3060 = vmatpush2.msra.mxu0 0.0
    %3061 = vmatprep.subr.mxu0 0.0
    %3062 = vmatpush2.msra.mxu0 0.0
    %3063 = vmatprep.subr.mxu0 0.0
    %3064 = vmatpush2.msra.mxu0 0.0
    %3065 = vmatprep.subr.mxu0 0.0
    %3066 = vmatpush2.msra.mxu0 0.0
    %3067 = vmatprep.subr.mxu0 0.0
    %3068 = vmatpush2.msra.mxu0 0.0
    %3069 = vmatprep.subr.mxu0 0.0
    %3070 = vmatpush2.msra.mxu0 0.0
    %3071 = vmatprep.subr.mxu0 0.0
    %3072 = vmatpush2.msra.mxu0 0.0
    %3073 = vmatprep.subr.mxu0 0.0
    %3074 = vmatpush2.msra.mxu0 0.0
    %3075 = vmatprep.subr.mxu0 0.0
    %3076 = vmatpush2.msra.mxu0 0.0
    %3077 = vmatprep.subr.mxu0 0.0
    %3078 = vmatpush2.msra.mxu0 0.0
    %3079 = vmatprep.subr.mxu0 0.0
    %3080 = vmatpush2.msra.mxu0 0.0
    %3081 = vmatprep.mubr.f32.mxu0 0.0
    %3082 = vmatmul.mubr.f32.gmra.mxu0 %v3015
    %v3083 = vpop.f32.mrf.mxu0
    %v3084 = vadd.f32 0.0, %v3083
    %v3085 = vpop.f32.mrf.mxu0
    %v3086 = vadd.f32 0.0, %v3085
    %3087 = vdwg.mxu0
    %3088 = vmatprep.subr.mxu0 0.0
    %3089 = vmatpush1.msra.mxu0 0.0
    %3090 = vmatprep.subr.mxu0 0.0
    %3091 = vmatpush1.msra.mxu0 0.0
    %3092 = vmatprep.subr.mxu0 0.0
    %3093 = vmatpush1.msra.mxu0 0.0
    %3094 = vmatprep.subr.mxu0 0.0
    %3095 = vmatpush1.msra.mxu0 0.0
    %3096 = vmatprep.subr.mxu0 0.0
    %3097 = vmatpush1.msra.mxu0 0.0
    %3098 = vmatprep.subr.mxu0 0.0
    %3099 = vmatpush1.msra.mxu0 0.0
    %3100 = vmatprep.subr.mxu0 0.0
    %3101 = vmatpush1.msra.mxu0 0.0
    %3102 = vmatprep.subr.mxu0 0.0
    %3103 = vmatpush1.msra.mxu0 0.0
    %3104 = vmatprep.subr.mxu0 0.0
    %3105 = vmatpush1.msra.mxu0 0.0
    %3106 = vmatprep.subr.mxu0 0.0
    %3107 = vmatpush1.msra.mxu0 0.0
    %3108 = vmatprep.subr.mxu0 0.0
    %3109 = vmatpush1.msra.mxu0 0.0
    %3110 = vmatprep.subr.mxu0 0.0
    %3111 = vmatpush1.msra.mxu0 0.0
    %3112 = vmatprep.subr.mxu0 0.0
    %3113 = vmatpush1.msra.mxu0 0.0
    %3114 = vmatprep.subr.mxu0 0.0
    %3115 = vmatpush1.msra.mxu0 0.0
    %3116 = vmatprep.subr.mxu0 %v3011
    %3117 = vmatpush1.msra.mxu0 %v3005
    %3118 = vmatprep.subr.mxu0 %v3010
    %3119 = vmatpush1.msra.mxu0 %v3004
    %3120 = vmatprep.subr.mxu0 0.0
    %3121 = vmatpush2.msra.mxu0 0.0
    %3122 = vmatprep.subr.mxu0 0.0
    %3123 = vmatpush2.msra.mxu0 0.0
    %3124 = vmatprep.subr.mxu0 0.0
    %3125 = vmatpush2.msra.mxu0 0.0
    %3126 = vmatprep.subr.mxu0 0.0
    %3127 = vmatpush2.msra.mxu0 0.0
    %3128 = vmatprep.subr.mxu0 0.0
    %3129 = vmatpush2.msra.mxu0 0.0
    %3130 = vmatprep.subr.mxu0 0.0
    %3131 = vmatpush2.msra.mxu0 0.0
    %3132 = vmatprep.subr.mxu0 0.0
    %3133 = vmatpush2.msra.mxu0 0.0
    %3134 = vmatprep.subr.mxu0 0.0
    %3135 = vmatpush2.msra.mxu0 0.0
    %3136 = vmatprep.subr.mxu0 0.0
    %3137 = vmatpush2.msra.mxu0 0.0
    %3138 = vmatprep.subr.mxu0 0.0
    %3139 = vmatpush2.msra.mxu0 0.0
    %3140 = vmatprep.subr.mxu0 0.0
    %3141 = vmatpush2.msra.mxu0 0.0
    %3142 = vmatprep.subr.mxu0 0.0
    %3143 = vmatpush2.msra.mxu0 0.0
    %3144 = vmatprep.subr.mxu0 0.0
    %3145 = vmatpush2.msra.mxu0 0.0
    %3146 = vmatprep.subr.mxu0 0.0
    %3147 = vmatpush2.msra.mxu0 0.0
    %3148 = vmatprep.subr.mxu0 0.0
    %3149 = vmatpush2.msra.mxu0 0.0
    %3150 = vmatprep.subr.mxu0 0.0
    %3151 = vmatpush2.msra.mxu0 0.0
    %3152 = vmatprep.mubr.f32.mxu0 0.0
    %3153 = vmatmul.mubr.f32.gmra.mxu0 %v3015
    %v3154 = vpop.f32.mrf.mxu0
    %v3155 = vadd.f32 0.0, %v3154
    %v3156 = vpop.f32.mrf.mxu0
    %v3157 = vadd.f32 0.0, %v3156
    %3158 = vdwg.mxu0
    %v3159 = vmul.f32 %v3084, %v1526
    %v3160 = vmul.f32 %v3086, %v1530
    %v3161 = vmul.f32 %v3155, %v1534
    %v3162 = vmul.f32 %v3157, %v1538
    %v3163 = vadd.f32 %v2984, %v3159
    %v3164 = vadd.f32 %v2985, %v3160
    %v3165 = vadd.f32 %v2986, %v3161
    %v3166 = vadd.f32 %v2987, %v3162
    %3167 = vrot.lane.b32.xlu0 %v1758, 111
    %v3168 = vpop.permute.xlu0 %3167
    %3169 = vrot.lane.b32.xlu0 %v1762, 111
    %v3170 = vpop.permute.xlu0 %3169
    %3171 = vrot.lane.b32.xlu0 %v1759, 111
    %v3172 = vpop.permute.xlu0 %3171
    %3173 = vrot.lane.b32.xlu0 %v1763, 111
    %v3174 = vpop.permute.xlu0 %3173
    %3175 = vrot.lane.b32.xlu0 %v1760, 111
    %v3176 = vpop.permute.xlu0 %3175
    %3177 = vrot.lane.b32.xlu0 %v1764, 111
    %v3178 = vpop.permute.xlu0 %3177
    %3179 = vrot.lane.b32.xlu0 %v1761, 111
    %v3180 = vpop.permute.xlu0 %3179
    %3181 = vrot.lane.b32.xlu0 %v1765, 111
    %v3182 = vpop.permute.xlu0 %3181
    %v3183 = vsel %vm1559, %v3176, %v3180
    %v3184 = vsel %vm1559, %v3178, %v3182
    %v3185 = vsel %vm1559, %v3172, %v3176
    %v3186 = vsel %vm1559, %v3174, %v3178
    %v3187 = vsel %vm1559, %v3168, %v3172
    %v3188 = vsel %vm1559, %v3170, %v3174
    %v3189 = vsel %vm1559, %v3180, %v3168
    %v3190 = vsel %vm1559, %v3182, %v3170
    %s3191 = scalar_lea.vmem [#allocation3], 136
    %v3192 = vld [vmem:[%s3191] sm:$0xff]
    %v3194 = vsel %vm1792, %v3192, 0
    %3196 = vmatprep.subr.mxu0 0.0
    %3197 = vmatpush1.msra.mxu0 0.0
    %3198 = vmatprep.subr.mxu0 0.0
    %3199 = vmatpush1.msra.mxu0 0.0
    %3200 = vmatprep.subr.mxu0 0.0
    %3201 = vmatpush1.msra.mxu0 0.0
    %3202 = vmatprep.subr.mxu0 0.0
    %3203 = vmatpush1.msra.mxu0 0.0
    %3204 = vmatprep.subr.mxu0 0.0
    %3205 = vmatpush1.msra.mxu0 0.0
    %3206 = vmatprep.subr.mxu0 0.0
    %3207 = vmatpush1.msra.mxu0 0.0
    %3208 = vmatprep.subr.mxu0 0.0
    %3209 = vmatpush1.msra.mxu0 0.0
    %3210 = vmatprep.subr.mxu0 0.0
    %3211 = vmatpush1.msra.mxu0 0.0
    %3212 = vmatprep.subr.mxu0 0.0
    %3213 = vmatpush1.msra.mxu0 0.0
    %3214 = vmatprep.subr.mxu0 0.0
    %3215 = vmatpush1.msra.mxu0 0.0
    %3216 = vmatprep.subr.mxu0 0.0
    %3217 = vmatpush1.msra.mxu0 0.0
    %3218 = vmatprep.subr.mxu0 0.0
    %3219 = vmatpush1.msra.mxu0 0.0
    %3220 = vmatprep.subr.mxu0 0.0
    %3221 = vmatpush1.msra.mxu0 0.0
    %3222 = vmatprep.subr.mxu0 0.0
    %3223 = vmatpush1.msra.mxu0 0.0
    %3224 = vmatprep.subr.mxu0 %v3186
    %3225 = vmatpush1.msra.mxu0 %v3188
    %3226 = vmatprep.subr.mxu0 %v3185
    %3227 = vmatpush1.msra.mxu0 %v3187
    %3228 = vmatprep.subr.mxu0 0.0
    %3229 = vmatpush2.msra.mxu0 0.0
    %3230 = vmatprep.subr.mxu0 0.0
    %3231 = vmatpush2.msra.mxu0 0.0
    %3232 = vmatprep.subr.mxu0 0.0
    %3233 = vmatpush2.msra.mxu0 0.0
    %3234 = vmatprep.subr.mxu0 0.0
    %3235 = vmatpush2.msra.mxu0 0.0
    %3236 = vmatprep.subr.mxu0 0.0
    %3237 = vmatpush2.msra.mxu0 0.0
    %3238 = vmatprep.subr.mxu0 0.0
    %3239 = vmatpush2.msra.mxu0 0.0
    %3240 = vmatprep.subr.mxu0 0.0
    %3241 = vmatpush2.msra.mxu0 0.0
    %3242 = vmatprep.subr.mxu0 0.0
    %3243 = vmatpush2.msra.mxu0 0.0
    %3244 = vmatprep.subr.mxu0 0.0
    %3245 = vmatpush2.msra.mxu0 0.0
    %3246 = vmatprep.subr.mxu0 0.0
    %3247 = vmatpush2.msra.mxu0 0.0
    %3248 = vmatprep.subr.mxu0 0.0
    %3249 = vmatpush2.msra.mxu0 0.0
    %3250 = vmatprep.subr.mxu0 0.0
    %3251 = vmatpush2.msra.mxu0 0.0
    %3252 = vmatprep.subr.mxu0 0.0
    %3253 = vmatpush2.msra.mxu0 0.0
    %3254 = vmatprep.subr.mxu0 0.0
    %3255 = vmatpush2.msra.mxu0 0.0
    %3256 = vmatprep.subr.mxu0 0.0
    %3257 = vmatpush2.msra.mxu0 0.0
    %3258 = vmatprep.subr.mxu0 0.0
    %3259 = vmatpush2.msra.mxu0 0.0
    %3260 = vmatprep.mubr.f32.mxu0 0.0
    %3261 = vmatmul.mubr.f32.gmra.mxu0 %v3194
    %v3262 = vpop.f32.mrf.mxu0
    %v3263 = vadd.f32 0.0, %v3262
    %v3264 = vpop.f32.mrf.mxu0
    %v3265 = vadd.f32 0.0, %v3264
    %3266 = vdwg.mxu0
    %3267 = vmatprep.subr.mxu0 0.0
    %3268 = vmatpush1.msra.mxu0 0.0
    %3269 = vmatprep.subr.mxu0 0.0
    %3270 = vmatpush1.msra.mxu0 0.0
    %3271 = vmatprep.subr.mxu0 0.0
    %3272 = vmatpush1.msra.mxu0 0.0
    %3273 = vmatprep.subr.mxu0 0.0
    %3274 = vmatpush1.msra.mxu0 0.0
    %3275 = vmatprep.subr.mxu0 0.0
    %3276 = vmatpush1.msra.mxu0 0.0
    %3277 = vmatprep.subr.mxu0 0.0
    %3278 = vmatpush1.msra.mxu0 0.0
    %3279 = vmatprep.subr.mxu0 0.0
    %3280 = vmatpush1.msra.mxu0 0.0
    %3281 = vmatprep.subr.mxu0 0.0
    %3282 = vmatpush1.msra.mxu0 0.0
    %3283 = vmatprep.subr.mxu0 0.0
    %3284 = vmatpush1.msra.mxu0 0.0
    %3285 = vmatprep.subr.mxu0 0.0
    %3286 = vmatpush1.msra.mxu0 0.0
    %3287 = vmatprep.subr.mxu0 0.0
    %3288 = vmatpush1.msra.mxu0 0.0
    %3289 = vmatprep.subr.mxu0 0.0
    %3290 = vmatpush1.msra.mxu0 0.0
    %3291 = vmatprep.subr.mxu0 0.0
    %3292 = vmatpush1.msra.mxu0 0.0
    %3293 = vmatprep.subr.mxu0 0.0
    %3294 = vmatpush1.msra.mxu0 0.0
    %3295 = vmatprep.subr.mxu0 %v3190
    %3296 = vmatpush1.msra.mxu0 %v3184
    %3297 = vmatprep.subr.mxu0 %v3189
    %3298 = vmatpush1.msra.mxu0 %v3183
    %3299 = vmatprep.subr.mxu0 0.0
    %3300 = vmatpush2.msra.mxu0 0.0
    %3301 = vmatprep.subr.mxu0 0.0
    %3302 = vmatpush2.msra.mxu0 0.0
    %3303 = vmatprep.subr.mxu0 0.0
    %3304 = vmatpush2.msra.mxu0 0.0
    %3305 = vmatprep.subr.mxu0 0.0
    %3306 = vmatpush2.msra.mxu0 0.0
    %3307 = vmatprep.subr.mxu0 0.0
    %3308 = vmatpush2.msra.mxu0 0.0
    %3309 = vmatprep.subr.mxu0 0.0
    %3310 = vmatpush2.msra.mxu0 0.0
    %3311 = vmatprep.subr.mxu0 0.0
    %3312 = vmatpush2.msra.mxu0 0.0
    %3313 = vmatprep.subr.mxu0 0.0
    %3314 = vmatpush2.msra.mxu0 0.0
    %3315 = vmatprep.subr.mxu0 0.0
    %3316 = vmatpush2.msra.mxu0 0.0
    %3317 = vmatprep.subr.mxu0 0.0
    %3318 = vmatpush2.msra.mxu0 0.0
    %3319 = vmatprep.subr.mxu0 0.0
    %3320 = vmatpush2.msra.mxu0 0.0
    %3321 = vmatprep.subr.mxu0 0.0
    %3322 = vmatpush2.msra.mxu0 0.0
    %3323 = vmatprep.subr.mxu0 0.0
    %3324 = vmatpush2.msra.mxu0 0.0
    %3325 = vmatprep.subr.mxu0 0.0
    %3326 = vmatpush2.msra.mxu0 0.0
    %3327 = vmatprep.subr.mxu0 0.0
    %3328 = vmatpush2.msra.mxu0 0.0
    %3329 = vmatprep.subr.mxu0 0.0
    %3330 = vmatpush2.msra.mxu0 0.0
    %3331 = vmatprep.mubr.f32.mxu0 0.0
    %3332 = vmatmul.mubr.f32.gmra.mxu0 %v3194
    %v3333 = vpop.f32.mrf.mxu0
    %v3334 = vadd.f32 0.0, %v3333
    %v3335 = vpop.f32.mrf.mxu0
    %v3336 = vadd.f32 0.0, %v3335
    %3337 = vdwg.mxu0
    %v3338 = vmul.f32 %v3263, %v1715
    %v3339 = vmul.f32 %v3265, %v1719
    %v3340 = vmul.f32 %v3334, %v1723
    %v3341 = vmul.f32 %v3336, %v1727
    %v3342 = vadd.f32 %v3163, %v3338
    %v3343 = vadd.f32 %v3164, %v3339
    %v3344 = vadd.f32 %v3165, %v3340
    %v3345 = vadd.f32 %v3166, %v3341
    %s3346 = scalar_lea.vmem %s2, 8
    %v3347 = vld [vmem:[%s3346] sm:$0xff]
    %3349 = vset.pattern.permute.xlu0 0
    %3350 = vperm.xlu0 %3349, %v3347
    %v3351 = vpop.permute.xlu0 %3350
    %v3353 = vadd.f32 %v3342, %v3351
    %v3354 = vadd.f32 %v3343, %v3351
    %v3355 = vadd.f32 %v3344, %v3351
    %v3356 = vadd.f32 %v3345, %v3351
    %v3357 = vmax.f32 %v3353, 0.0
    %v3358 = vmax.f32 %v3354, 0.0
    %v3359 = vmax.f32 %v3355, 0.0
    %v3360 = vmax.f32 %v3356, 0.0
    %3361 = vst [vmem:[#allocation2 + $0x40] sm:$0xff] %v3357
    %3362 = vst [vmem:[#allocation2 + $0x48] sm:$0xff] %v3358
    %3363 = vst [vmem:[#allocation2 + $0x50] sm:$0xff] %v3359
    %3364 = vst [vmem:[#allocation2 + $0x58] sm:$0xff] %v3360
    %v3365 = vld [vmem:[#allocation2] sm:$0xff]
    %v3366 = vld [vmem:[#allocation2 + $0x8] sm:$0xff]
    %v3367 = vld [vmem:[#allocation2 + $0x10] sm:$0xff]
    %v3368 = vld [vmem:[#allocation2 + $0x18] sm:$0xff]
    %v3369 = vld [vmem:[#allocation2 + $0x20] sm:$0xff]
    %v3370 = vld [vmem:[#allocation2 + $0x28] sm:$0xff]
    %v3371 = vld [vmem:[#allocation2 + $0x30] sm:$0xff]
    %v3372 = vld [vmem:[#allocation2 + $0x38] sm:$0xff]
    %v3373 = vld [vmem:[#allocation2 + $0x40] sm:$0xff]
    %v3374 = vld [vmem:[#allocation2 + $0x48] sm:$0xff]
    %v3375 = vld [vmem:[#allocation2 + $0x50] sm:$0xff]
    %v3376 = vld [vmem:[#allocation2 + $0x58] sm:$0xff]
    %3377 = vrot.lane.b32.xlu0 %v3365, 17
    %v3378 = vpop.permute.xlu0 %3377
    %3379 = vrot.lane.b32.xlu0 %v3369, 17
    %v3380 = vpop.permute.xlu0 %3379
    %3381 = vrot.lane.b32.xlu0 %v3373, 17
    %v3382 = vpop.permute.xlu0 %3381
    %3383 = vrot.lane.b32.xlu0 %v3366, 17
    %v3384 = vpop.permute.xlu0 %3383
    %3385 = vrot.lane.b32.xlu0 %v3370, 17
    %v3386 = vpop.permute.xlu0 %3385
    %3387 = vrot.lane.b32.xlu0 %v3374, 17
    %v3388 = vpop.permute.xlu0 %3387
    %3389 = vrot.lane.b32.xlu0 %v3367, 17
    %v3390 = vpop.permute.xlu0 %3389
    %3391 = vrot.lane.b32.xlu0 %v3371, 17
    %v3392 = vpop.permute.xlu0 %3391
    %3393 = vrot.lane.b32.xlu0 %v3375, 17
    %v3394 = vpop.permute.xlu0 %3393
    %3395 = vrot.lane.b32.xlu0 %v3368, 17
    %v3396 = vpop.permute.xlu0 %3395
    %3397 = vrot.lane.b32.xlu0 %v3372, 17
    %v3398 = vpop.permute.xlu0 %3397
    %3399 = vrot.lane.b32.xlu0 %v3376, 17
    %v3400 = vpop.permute.xlu0 %3399
    %v3401 = vsel %vm89, %v3390, %v3396
    %v3402 = vsel %vm89, %v3392, %v3398
    %v3403 = vsel %vm89, %v3394, %v3400
    %v3404 = vsel %vm89, %v3384, %v3390
    %v3405 = vsel %vm89, %v3386, %v3392
    %v3406 = vsel %vm89, %v3388, %v3394
    %v3407 = vsel %vm89, %v3378, %v3384
    %v3408 = vsel %vm89, %v3380, %v3386
    %v3409 = vsel %vm89, %v3382, %v3388
    %v3410 = vsel %vm89, %v3396, %v3378
    %v3411 = vsel %vm89, %v3398, %v3380
    %v3412 = vsel %vm89, %v3400, %v3382
    %s3413 = scalar_lea.vmem [#allocation3], 144
    %v3414 = vld [vmem:[%s3413] sm:$0xff]
    %vm3415 = vcmask 195584
    %v3417 = vsel %vm3415, %v3414, 0
    %3419 = vmatprep.subr.mxu0 0.0
    %3420 = vmatpush1.msra.mxu0 0.0
    %3421 = vmatprep.subr.mxu0 0.0
    %3422 = vmatpush1.msra.mxu0 0.0
    %3423 = vmatprep.subr.mxu0 0.0
    %3424 = vmatpush1.msra.mxu0 0.0
    %3425 = vmatprep.subr.mxu0 0.0
    %3426 = vmatpush1.msra.mxu0 0.0
    %3427 = vmatprep.subr.mxu0 0.0
    %3428 = vmatpush1.msra.mxu0 0.0
    %3429 = vmatprep.subr.mxu0 0.0
    %3430 = vmatpush1.msra.mxu0 0.0
    %3431 = vmatprep.subr.mxu0 0.0
    %3432 = vmatpush1.msra.mxu0 0.0
    %3433 = vmatprep.subr.mxu0 0.0
    %3434 = vmatpush1.msra.mxu0 0.0
    %3435 = vmatprep.subr.mxu0 0.0
    %3436 = vmatpush1.msra.mxu0 0.0
    %3437 = vmatprep.subr.mxu0 0.0
    %3438 = vmatpush1.msra.mxu0 0.0
    %3439 = vmatprep.subr.mxu0 0.0
    %3440 = vmatpush1.msra.mxu0 0.0
    %3441 = vmatprep.subr.mxu0 0.0
    %3442 = vmatpush1.msra.mxu0 0.0
    %3443 = vmatprep.subr.mxu0 0.0
    %3444 = vmatpush1.msra.mxu0 0.0
    %3445 = vmatprep.subr.mxu0 %v3409
    %3446 = vmatpush1.msra.mxu0 %v3412
    %3447 = vmatprep.subr.mxu0 %v3408
    %3448 = vmatpush1.msra.mxu0 %v3411
    %3449 = vmatprep.subr.mxu0 %v3407
    %3450 = vmatpush1.msra.mxu0 %v3410
    %3451 = vmatprep.subr.mxu0 0.0
    %3452 = vmatpush2.msra.mxu0 0.0
    %3453 = vmatprep.subr.mxu0 0.0
    %3454 = vmatpush2.msra.mxu0 0.0
    %3455 = vmatprep.subr.mxu0 0.0
    %3456 = vmatpush2.msra.mxu0 0.0
    %3457 = vmatprep.subr.mxu0 0.0
    %3458 = vmatpush2.msra.mxu0 0.0
    %3459 = vmatprep.subr.mxu0 0.0
    %3460 = vmatpush2.msra.mxu0 0.0
    %3461 = vmatprep.subr.mxu0 0.0
    %3462 = vmatpush2.msra.mxu0 0.0
    %3463 = vmatprep.subr.mxu0 0.0
    %3464 = vmatpush2.msra.mxu0 0.0
    %3465 = vmatprep.subr.mxu0 0.0
    %3466 = vmatpush2.msra.mxu0 0.0
    %3467 = vmatprep.subr.mxu0 0.0
    %3468 = vmatpush2.msra.mxu0 0.0
    %3469 = vmatprep.subr.mxu0 0.0
    %3470 = vmatpush2.msra.mxu0 0.0
    %3471 = vmatprep.subr.mxu0 0.0
    %3472 = vmatpush2.msra.mxu0 0.0
    %3473 = vmatprep.subr.mxu0 0.0
    %3474 = vmatpush2.msra.mxu0 0.0
    %3475 = vmatprep.subr.mxu0 0.0
    %3476 = vmatpush2.msra.mxu0 0.0
    %3477 = vmatprep.subr.mxu0 0.0
    %3478 = vmatpush2.msra.mxu0 0.0
    %3479 = vmatprep.subr.mxu0 0.0
    %3480 = vmatpush2.msra.mxu0 0.0
    %3481 = vmatprep.subr.mxu0 0.0
    %3482 = vmatpush2.msra.mxu0 0.0
    %3483 = vmatprep.mubr.f32.mxu0 0.0
    %3484 = vmatmul.mubr.f32.gmra.mxu0 %v3417
    %v3485 = vpop.f32.mrf.mxu0
    %v3486 = vadd.f32 0.0, %v3485
    %v3487 = vpop.f32.mrf.mxu0
    %v3488 = vadd.f32 0.0, %v3487
    %3489 = vdwg.mxu0
    %3490 = vmatprep.subr.mxu0 0.0
    %3491 = vmatpush1.msra.mxu0 0.0
    %3492 = vmatprep.subr.mxu0 0.0
    %3493 = vmatpush1.msra.mxu0 0.0
    %3494 = vmatprep.subr.mxu0 0.0
    %3495 = vmatpush1.msra.mxu0 0.0
    %3496 = vmatprep.subr.mxu0 0.0
    %3497 = vmatpush1.msra.mxu0 0.0
    %3498 = vmatprep.subr.mxu0 0.0
    %3499 = vmatpush1.msra.mxu0 0.0
    %3500 = vmatprep.subr.mxu0 0.0
    %3501 = vmatpush1.msra.mxu0 0.0
    %3502 = vmatprep.subr.mxu0 0.0
    %3503 = vmatpush1.msra.mxu0 0.0
    %3504 = vmatprep.subr.mxu0 0.0
    %3505 = vmatpush1.msra.mxu0 0.0
    %3506 = vmatprep.subr.mxu0 0.0
    %3507 = vmatpush1.msra.mxu0 0.0
    %3508 = vmatprep.subr.mxu0 0.0
    %3509 = vmatpush1.msra.mxu0 0.0
    %3510 = vmatprep.subr.mxu0 0.0
    %3511 = vmatpush1.msra.mxu0 0.0
    %3512 = vmatprep.subr.mxu0 0.0
    %3513 = vmatpush1.msra.mxu0 0.0
    %3514 = vmatprep.subr.mxu0 0.0
    %3515 = vmatpush1.msra.mxu0 0.0
    %3516 = vmatprep.subr.mxu0 %v3403
    %3517 = vmatpush1.msra.mxu0 %v3406
    %3518 = vmatprep.subr.mxu0 %v3402
    %3519 = vmatpush1.msra.mxu0 %v3405
    %3520 = vmatprep.subr.mxu0 %v3401
    %3521 = vmatpush1.msra.mxu0 %v3404
    %3522 = vmatprep.subr.mxu0 0.0
    %3523 = vmatpush2.msra.mxu0 0.0
    %3524 = vmatprep.subr.mxu0 0.0
    %3525 = vmatpush2.msra.mxu0 0.0
    %3526 = vmatprep.subr.mxu0 0.0
    %3527 = vmatpush2.msra.mxu0 0.0
    %3528 = vmatprep.subr.mxu0 0.0
    %3529 = vmatpush2.msra.mxu0 0.0
    %3530 = vmatprep.subr.mxu0 0.0
    %3531 = vmatpush2.msra.mxu0 0.0
    %3532 = vmatprep.subr.mxu0 0.0
    %3533 = vmatpush2.msra.mxu0 0.0
    %3534 = vmatprep.subr.mxu0 0.0
    %3535 = vmatpush2.msra.mxu0 0.0
    %3536 = vmatprep.subr.mxu0 0.0
    %3537 = vmatpush2.msra.mxu0 0.0
    %3538 = vmatprep.subr.mxu0 0.0
    %3539 = vmatpush2.msra.mxu0 0.0
    %3540 = vmatprep.subr.mxu0 0.0
    %3541 = vmatpush2.msra.mxu0 0.0
    %3542 = vmatprep.subr.mxu0 0.0
    %3543 = vmatpush2.msra.mxu0 0.0
    %3544 = vmatprep.subr.mxu0 0.0
    %3545 = vmatpush2.msra.mxu0 0.0
    %3546 = vmatprep.subr.mxu0 0.0
    %3547 = vmatpush2.msra.mxu0 0.0
    %3548 = vmatprep.subr.mxu0 0.0
    %3549 = vmatpush2.msra.mxu0 0.0
    %3550 = vmatprep.subr.mxu0 0.0
    %3551 = vmatpush2.msra.mxu0 0.0
    %3552 = vmatprep.subr.mxu0 0.0
    %3553 = vmatpush2.msra.mxu0 0.0
    %3554 = vmatprep.mubr.f32.mxu0 0.0
    %3555 = vmatmul.mubr.f32.gmra.mxu0 %v3417
    %v3556 = vpop.f32.mrf.mxu0
    %v3557 = vadd.f32 0.0, %v3556
    %v3558 = vpop.f32.mrf.mxu0
    %v3559 = vadd.f32 0.0, %v3558
    %3560 = vdwg.mxu0
    %v3561 = vmul.f32 %v3486, %v245
    %v3562 = vmul.f32 %v3488, %v249
    %v3563 = vmul.f32 %v3557, %v253
    %v3564 = vmul.f32 %v3559, %v257
    %3565 = vrot.lane.b32.xlu0 %v3365, 16
    %v3566 = vpop.permute.xlu0 %3565
    %3567 = vrot.lane.b32.xlu0 %v3369, 16
    %v3568 = vpop.permute.xlu0 %3567
    %3569 = vrot.lane.b32.xlu0 %v3373, 16
    %v3570 = vpop.permute.xlu0 %3569
    %3571 = vrot.lane.b32.xlu0 %v3366, 16
    %v3572 = vpop.permute.xlu0 %3571
    %3573 = vrot.lane.b32.xlu0 %v3370, 16
    %v3574 = vpop.permute.xlu0 %3573
    %3575 = vrot.lane.b32.xlu0 %v3374, 16
    %v3576 = vpop.permute.xlu0 %3575
    %3577 = vrot.lane.b32.xlu0 %v3367, 16
    %v3578 = vpop.permute.xlu0 %3577
    %3579 = vrot.lane.b32.xlu0 %v3371, 16
    %v3580 = vpop.permute.xlu0 %3579
    %3581 = vrot.lane.b32.xlu0 %v3375, 16
    %v3582 = vpop.permute.xlu0 %3581
    %3583 = vrot.lane.b32.xlu0 %v3368, 16
    %v3584 = vpop.permute.xlu0 %3583
    %3585 = vrot.lane.b32.xlu0 %v3372, 16
    %v3586 = vpop.permute.xlu0 %3585
    %3587 = vrot.lane.b32.xlu0 %v3376, 16
    %v3588 = vpop.permute.xlu0 %3587
    %v3589 = vsel %vm274, %v3578, %v3584
    %v3590 = vsel %vm274, %v3580, %v3586
    %v3591 = vsel %vm274, %v3582, %v3588
    %v3592 = vsel %vm274, %v3572, %v3578
    %v3593 = vsel %vm274, %v3574, %v3580
    %v3594 = vsel %vm274, %v3576, %v3582
    %v3595 = vsel %vm274, %v3566, %v3572
    %v3596 = vsel %vm274, %v3568, %v3574
    %v3597 = vsel %vm274, %v3570, %v3576
    %v3598 = vsel %vm274, %v3584, %v3566
    %v3599 = vsel %vm274, %v3586, %v3568
    %v3600 = vsel %vm274, %v3588, %v3570
    %s3601 = scalar_lea.vmem [#allocation3], 152
    %v3602 = vld [vmem:[%s3601] sm:$0xff]
    %v3604 = vsel %vm3415, %v3602, 0
    %3606 = vmatprep.subr.mxu0 0.0
    %3607 = vmatpush1.msra.mxu0 0.0
    %3608 = vmatprep.subr.mxu0 0.0
    %3609 = vmatpush1.msra.mxu0 0.0
    %3610 = vmatprep.subr.mxu0 0.0
    %3611 = vmatpush1.msra.mxu0 0.0
    %3612 = vmatprep.subr.mxu0 0.0
    %3613 = vmatpush1.msra.mxu0 0.0
    %3614 = vmatprep.subr.mxu0 0.0
    %3615 = vmatpush1.msra.mxu0 0.0
    %3616 = vmatprep.subr.mxu0 0.0
    %3617 = vmatpush1.msra.mxu0 0.0
    %3618 = vmatprep.subr.mxu0 0.0
    %3619 = vmatpush1.msra.mxu0 0.0
    %3620 = vmatprep.subr.mxu0 0.0
    %3621 = vmatpush1.msra.mxu0 0.0
    %3622 = vmatprep.subr.mxu0 0.0
    %3623 = vmatpush1.msra.mxu0 0.0
    %3624 = vmatprep.subr.mxu0 0.0
    %3625 = vmatpush1.msra.mxu0 0.0
    %3626 = vmatprep.subr.mxu0 0.0
    %3627 = vmatpush1.msra.mxu0 0.0
    %3628 = vmatprep.subr.mxu0 0.0
    %3629 = vmatpush1.msra.mxu0 0.0
    %3630 = vmatprep.subr.mxu0 0.0
    %3631 = vmatpush1.msra.mxu0 0.0
    %3632 = vmatprep.subr.mxu0 %v3597
    %3633 = vmatpush1.msra.mxu0 %v3600
    %3634 = vmatprep.subr.mxu0 %v3596
    %3635 = vmatpush1.msra.mxu0 %v3599
    %3636 = vmatprep.subr.mxu0 %v3595
    %3637 = vmatpush1.msra.mxu0 %v3598
    %3638 = vmatprep.subr.mxu0 0.0
    %3639 = vmatpush2.msra.mxu0 0.0
    %3640 = vmatprep.subr.mxu0 0.0
    %3641 = vmatpush2.msra.mxu0 0.0
    %3642 = vmatprep.subr.mxu0 0.0
    %3643 = vmatpush2.msra.mxu0 0.0
    %3644 = vmatprep.subr.mxu0 0.0
    %3645 = vmatpush2.msra.mxu0 0.0
    %3646 = vmatprep.subr.mxu0 0.0
    %3647 = vmatpush2.msra.mxu0 0.0
    %3648 = vmatprep.subr.mxu0 0.0
    %3649 = vmatpush2.msra.mxu0 0.0
    %3650 = vmatprep.subr.mxu0 0.0
    %3651 = vmatpush2.msra.mxu0 0.0
    %3652 = vmatprep.subr.mxu0 0.0
    %3653 = vmatpush2.msra.mxu0 0.0
    %3654 = vmatprep.subr.mxu0 0.0
    %3655 = vmatpush2.msra.mxu0 0.0
    %3656 = vmatprep.subr.mxu0 0.0
    %3657 = vmatpush2.msra.mxu0 0.0
    %3658 = vmatprep.subr.mxu0 0.0
    %3659 = vmatpush2.msra.mxu0 0.0
    %3660 = vmatprep.subr.mxu0 0.0
    %3661 = vmatpush2.msra.mxu0 0.0
    %3662 = vmatprep.subr.mxu0 0.0
    %3663 = vmatpush2.msra.mxu0 0.0
    %3664 = vmatprep.subr.mxu0 0.0
    %3665 = vmatpush2.msra.mxu0 0.0
    %3666 = vmatprep.subr.mxu0 0.0
    %3667 = vmatpush2.msra.mxu0 0.0
    %3668 = vmatprep.subr.mxu0 0.0
    %3669 = vmatpush2.msra.mxu0 0.0
    %3670 = vmatprep.mubr.f32.mxu0 0.0
    %3671 = vmatmul.mubr.f32.gmra.mxu0 %v3604
    %v3672 = vpop.f32.mrf.mxu0
    %v3673 = vadd.f32 0.0, %v3672
    %v3674 = vpop.f32.mrf.mxu0
    %v3675 = vadd.f32 0.0, %v3674
    %3676 = vdwg.mxu0
    %3677 = vmatprep.subr.mxu0 0.0
    %3678 = vmatpush1.msra.mxu0 0.0
    %3679 = vmatprep.subr.mxu0 0.0
    %3680 = vmatpush1.msra.mxu0 0.0
    %3681 = vmatprep.subr.mxu0 0.0
    %3682 = vmatpush1.msra.mxu0 0.0
    %3683 = vmatprep.subr.mxu0 0.0
    %3684 = vmatpush1.msra.mxu0 0.0
    %3685 = vmatprep.subr.mxu0 0.0
    %3686 = vmatpush1.msra.mxu0 0.0
    %3687 = vmatprep.subr.mxu0 0.0
    %3688 = vmatpush1.msra.mxu0 0.0
    %3689 = vmatprep.subr.mxu0 0.0
    %3690 = vmatpush1.msra.mxu0 0.0
    %3691 = vmatprep.subr.mxu0 0.0
    %3692 = vmatpush1.msra.mxu0 0.0
    %3693 = vmatprep.subr.mxu0 0.0
    %3694 = vmatpush1.msra.mxu0 0.0
    %3695 = vmatprep.subr.mxu0 0.0
    %3696 = vmatpush1.msra.mxu0 0.0
    %3697 = vmatprep.subr.mxu0 0.0
    %3698 = vmatpush1.msra.mxu0 0.0
    %3699 = vmatprep.subr.mxu0 0.0
    %3700 = vmatpush1.msra.mxu0 0.0
    %3701 = vmatprep.subr.mxu0 0.0
    %3702 = vmatpush1.msra.mxu0 0.0
    %3703 = vmatprep.subr.mxu0 %v3591
    %3704 = vmatpush1.msra.mxu0 %v3594
    %3705 = vmatprep.subr.mxu0 %v3590
    %3706 = vmatpush1.msra.mxu0 %v3593
    %3707 = vmatprep.subr.mxu0 %v3589
    %3708 = vmatpush1.msra.mxu0 %v3592
    %3709 = vmatprep.subr.mxu0 0.0
    %3710 = vmatpush2.msra.mxu0 0.0
    %3711 = vmatprep.subr.mxu0 0.0
    %3712 = vmatpush2.msra.mxu0 0.0
    %3713 = vmatprep.subr.mxu0 0.0
    %3714 = vmatpush2.msra.mxu0 0.0
    %3715 = vmatprep.subr.mxu0 0.0
    %3716 = vmatpush2.msra.mxu0 0.0
    %3717 = vmatprep.subr.mxu0 0.0
    %3718 = vmatpush2.msra.mxu0 0.0
    %3719 = vmatprep.subr.mxu0 0.0
    %3720 = vmatpush2.msra.mxu0 0.0
    %3721 = vmatprep.subr.mxu0 0.0
    %3722 = vmatpush2.msra.mxu0 0.0
    %3723 = vmatprep.subr.mxu0 0.0
    %3724 = vmatpush2.msra.mxu0 0.0
    %3725 = vmatprep.subr.mxu0 0.0
    %3726 = vmatpush2.msra.mxu0 0.0
    %3727 = vmatprep.subr.mxu0 0.0
    %3728 = vmatpush2.msra.mxu0 0.0
    %3729 = vmatprep.subr.mxu0 0.0
    %3730 = vmatpush2.msra.mxu0 0.0
    %3731 = vmatprep.subr.mxu0 0.0
    %3732 = vmatpush2.msra.mxu0 0.0
    %3733 = vmatprep.subr.mxu0 0.0
    %3734 = vmatpush2.msra.mxu0 0.0
    %3735 = vmatprep.subr.mxu0 0.0
    %3736 = vmatpush2.msra.mxu0 0.0
    %3737 = vmatprep.subr.mxu0 0.0
    %3738 = vmatpush2.msra.mxu0 0.0
    %3739 = vmatprep.subr.mxu0 0.0
    %3740 = vmatpush2.msra.mxu0 0.0
    %3741 = vmatprep.mubr.f32.mxu0 0.0
    %3742 = vmatmul.mubr.f32.gmra.mxu0 %v3604
    %v3743 = vpop.f32.mrf.mxu0
    %v3744 = vadd.f32 0.0, %v3743
    %v3745 = vpop.f32.mrf.mxu0
    %v3746 = vadd.f32 0.0, %v3745
    %3747 = vdwg.mxu0
    %v3748 = vmul.f32 %v3673, %v430
    %v3749 = vmul.f32 %v3675, %v434
    %v3750 = vmul.f32 %v3744, %v438
    %v3751 = vmul.f32 %v3746, %v442
    %v3752 = vadd.f32 %v3561, %v3748
    %v3753 = vadd.f32 %v3562, %v3749
    %v3754 = vadd.f32 %v3563, %v3750
    %v3755 = vadd.f32 %v3564, %v3751
    %3756 = vrot.lane.b32.xlu0 %v3365, 15
    %v3757 = vpop.permute.xlu0 %3756
    %3758 = vrot.lane.b32.xlu0 %v3369, 15
    %v3759 = vpop.permute.xlu0 %3758
    %3760 = vrot.lane.b32.xlu0 %v3373, 15
    %v3761 = vpop.permute.xlu0 %3760
    %3762 = vrot.lane.b32.xlu0 %v3366, 15
    %v3763 = vpop.permute.xlu0 %3762
    %3764 = vrot.lane.b32.xlu0 %v3370, 15
    %v3765 = vpop.permute.xlu0 %3764
    %3766 = vrot.lane.b32.xlu0 %v3374, 15
    %v3767 = vpop.permute.xlu0 %3766
    %3768 = vrot.lane.b32.xlu0 %v3367, 15
    %v3769 = vpop.permute.xlu0 %3768
    %3770 = vrot.lane.b32.xlu0 %v3371, 15
    %v3771 = vpop.permute.xlu0 %3770
    %3772 = vrot.lane.b32.xlu0 %v3375, 15
    %v3773 = vpop.permute.xlu0 %3772
    %3774 = vrot.lane.b32.xlu0 %v3368, 15
    %v3775 = vpop.permute.xlu0 %3774
    %3776 = vrot.lane.b32.xlu0 %v3372, 15
    %v3777 = vpop.permute.xlu0 %3776
    %3778 = vrot.lane.b32.xlu0 %v3376, 15
    %v3779 = vpop.permute.xlu0 %3778
    %v3780 = vsel %vm463, %v3769, %v3775
    %v3781 = vsel %vm463, %v3771, %v3777
    %v3782 = vsel %vm463, %v3773, %v3779
    %v3783 = vsel %vm463, %v3763, %v3769
    %v3784 = vsel %vm463, %v3765, %v3771
    %v3785 = vsel %vm463, %v3767, %v3773
    %v3786 = vsel %vm463, %v3757, %v3763
    %v3787 = vsel %vm463, %v3759, %v3765
    %v3788 = vsel %vm463, %v3761, %v3767
    %v3789 = vsel %vm463, %v3775, %v3757
    %v3790 = vsel %vm463, %v3777, %v3759
    %v3791 = vsel %vm463, %v3779, %v3761
    %s3792 = scalar_lea.vmem [#allocation3], 160
    %v3793 = vld [vmem:[%s3792] sm:$0xff]
    %v3795 = vsel %vm3415, %v3793, 0
    %3797 = vmatprep.subr.mxu0 0.0
    %3798 = vmatpush1.msra.mxu0 0.0
    %3799 = vmatprep.subr.mxu0 0.0
    %3800 = vmatpush1.msra.mxu0 0.0
    %3801 = vmatprep.subr.mxu0 0.0
    %3802 = vmatpush1.msra.mxu0 0.0
    %3803 = vmatprep.subr.mxu0 0.0
    %3804 = vmatpush1.msra.mxu0 0.0
    %3805 = vmatprep.subr.mxu0 0.0
    %3806 = vmatpush1.msra.mxu0 0.0
    %3807 = vmatprep.subr.mxu0 0.0
    %3808 = vmatpush1.msra.mxu0 0.0
    %3809 = vmatprep.subr.mxu0 0.0
    %3810 = vmatpush1.msra.mxu0 0.0
    %3811 = vmatprep.subr.mxu0 0.0
    %3812 = vmatpush1.msra.mxu0 0.0
    %3813 = vmatprep.subr.mxu0 0.0
    %3814 = vmatpush1.msra.mxu0 0.0
    %3815 = vmatprep.subr.mxu0 0.0
    %3816 = vmatpush1.msra.mxu0 0.0
    %3817 = vmatprep.subr.mxu0 0.0
    %3818 = vmatpush1.msra.mxu0 0.0
    %3819 = vmatprep.subr.mxu0 0.0
    %3820 = vmatpush1.msra.mxu0 0.0
    %3821 = vmatprep.subr.mxu0 0.0
    %3822 = vmatpush1.msra.mxu0 0.0
    %3823 = vmatprep.subr.mxu0 %v3788
    %3824 = vmatpush1.msra.mxu0 %v3791
    %3825 = vmatprep.subr.mxu0 %v3787
    %3826 = vmatpush1.msra.mxu0 %v3790
    %3827 = vmatprep.subr.mxu0 %v3786
    %3828 = vmatpush1.msra.mxu0 %v3789
    %3829 = vmatprep.subr.mxu0 0.0
    %3830 = vmatpush2.msra.mxu0 0.0
    %3831 = vmatprep.subr.mxu0 0.0
    %3832 = vmatpush2.msra.mxu0 0.0
    %3833 = vmatprep.subr.mxu0 0.0
    %3834 = vmatpush2.msra.mxu0 0.0
    %3835 = vmatprep.subr.mxu0 0.0
    %3836 = vmatpush2.msra.mxu0 0.0
    %3837 = vmatprep.subr.mxu0 0.0
    %3838 = vmatpush2.msra.mxu0 0.0
    %3839 = vmatprep.subr.mxu0 0.0
    %3840 = vmatpush2.msra.mxu0 0.0
    %3841 = vmatprep.subr.mxu0 0.0
    %3842 = vmatpush2.msra.mxu0 0.0
    %3843 = vmatprep.subr.mxu0 0.0
    %3844 = vmatpush2.msra.mxu0 0.0
    %3845 = vmatprep.subr.mxu0 0.0
    %3846 = vmatpush2.msra.mxu0 0.0
    %3847 = vmatprep.subr.mxu0 0.0
    %3848 = vmatpush2.msra.mxu0 0.0
    %3849 = vmatprep.subr.mxu0 0.0
    %3850 = vmatpush2.msra.mxu0 0.0
    %3851 = vmatprep.subr.mxu0 0.0
    %3852 = vmatpush2.msra.mxu0 0.0
    %3853 = vmatprep.subr.mxu0 0.0
    %3854 = vmatpush2.msra.mxu0 0.0
    %3855 = vmatprep.subr.mxu0 0.0
    %3856 = vmatpush2.msra.mxu0 0.0
    %3857 = vmatprep.subr.mxu0 0.0
    %3858 = vmatpush2.msra.mxu0 0.0
    %3859 = vmatprep.subr.mxu0 0.0
    %3860 = vmatpush2.msra.mxu0 0.0
    %3861 = vmatprep.mubr.f32.mxu0 0.0
    %3862 = vmatmul.mubr.f32.gmra.mxu0 %v3795
    %v3863 = vpop.f32.mrf.mxu0
    %v3864 = vadd.f32 0.0, %v3863
    %v3865 = vpop.f32.mrf.mxu0
    %v3866 = vadd.f32 0.0, %v3865
    %3867 = vdwg.mxu0
    %3868 = vmatprep.subr.mxu0 0.0
    %3869 = vmatpush1.msra.mxu0 0.0
    %3870 = vmatprep.subr.mxu0 0.0
    %3871 = vmatpush1.msra.mxu0 0.0
    %3872 = vmatprep.subr.mxu0 0.0
    %3873 = vmatpush1.msra.mxu0 0.0
    %3874 = vmatprep.subr.mxu0 0.0
    %3875 = vmatpush1.msra.mxu0 0.0
    %3876 = vmatprep.subr.mxu0 0.0
    %3877 = vmatpush1.msra.mxu0 0.0
    %3878 = vmatprep.subr.mxu0 0.0
    %3879 = vmatpush1.msra.mxu0 0.0
    %3880 = vmatprep.subr.mxu0 0.0
    %3881 = vmatpush1.msra.mxu0 0.0
    %3882 = vmatprep.subr.mxu0 0.0
    %3883 = vmatpush1.msra.mxu0 0.0
    %3884 = vmatprep.subr.mxu0 0.0
    %3885 = vmatpush1.msra.mxu0 0.0
    %3886 = vmatprep.subr.mxu0 0.0
    %3887 = vmatpush1.msra.mxu0 0.0
    %3888 = vmatprep.subr.mxu0 0.0
    %3889 = vmatpush1.msra.mxu0 0.0
    %3890 = vmatprep.subr.mxu0 0.0
    %3891 = vmatpush1.msra.mxu0 0.0
    %3892 = vmatprep.subr.mxu0 0.0
    %3893 = vmatpush1.msra.mxu0 0.0
    %3894 = vmatprep.subr.mxu0 %v3782
    %3895 = vmatpush1.msra.mxu0 %v3785
    %3896 = vmatprep.subr.mxu0 %v3781
    %3897 = vmatpush1.msra.mxu0 %v3784
    %3898 = vmatprep.subr.mxu0 %v3780
    %3899 = vmatpush1.msra.mxu0 %v3783
    %3900 = vmatprep.subr.mxu0 0.0
    %3901 = vmatpush2.msra.mxu0 0.0
    %3902 = vmatprep.subr.mxu0 0.0
    %3903 = vmatpush2.msra.mxu0 0.0
    %3904 = vmatprep.subr.mxu0 0.0
    %3905 = vmatpush2.msra.mxu0 0.0
    %3906 = vmatprep.subr.mxu0 0.0
    %3907 = vmatpush2.msra.mxu0 0.0
    %3908 = vmatprep.subr.mxu0 0.0
    %3909 = vmatpush2.msra.mxu0 0.0
    %3910 = vmatprep.subr.mxu0 0.0
    %3911 = vmatpush2.msra.mxu0 0.0
    %3912 = vmatprep.subr.mxu0 0.0
    %3913 = vmatpush2.msra.mxu0 0.0
    %3914 = vmatprep.subr.mxu0 0.0
    %3915 = vmatpush2.msra.mxu0 0.0
    %3916 = vmatprep.subr.mxu0 0.0
    %3917 = vmatpush2.msra.mxu0 0.0
    %3918 = vmatprep.subr.mxu0 0.0
    %3919 = vmatpush2.msra.mxu0 0.0
    %3920 = vmatprep.subr.mxu0 0.0
    %3921 = vmatpush2.msra.mxu0 0.0
    %3922 = vmatprep.subr.mxu0 0.0
    %3923 = vmatpush2.msra.mxu0 0.0
    %3924 = vmatprep.subr.mxu0 0.0
    %3925 = vmatpush2.msra.mxu0 0.0
    %3926 = vmatprep.subr.mxu0 0.0
    %3927 = vmatpush2.msra.mxu0 0.0
    %3928 = vmatprep.subr.mxu0 0.0
    %3929 = vmatpush2.msra.mxu0 0.0
    %3930 = vmatprep.subr.mxu0 0.0
    %3931 = vmatpush2.msra.mxu0 0.0
    %3932 = vmatprep.mubr.f32.mxu0 0.0
    %3933 = vmatmul.mubr.f32.gmra.mxu0 %v3795
    %v3934 = vpop.f32.mrf.mxu0
    %v3935 = vadd.f32 0.0, %v3934
    %v3936 = vpop.f32.mrf.mxu0
    %v3937 = vadd.f32 0.0, %v3936
    %3938 = vdwg.mxu0
    %v3939 = vmul.f32 %v3864, %v619
    %v3940 = vmul.f32 %v3866, %v623
    %v3941 = vmul.f32 %v3935, %v627
    %v3942 = vmul.f32 %v3937, %v631
    %v3943 = vadd.f32 %v3752, %v3939
    %v3944 = vadd.f32 %v3753, %v3940
    %v3945 = vadd.f32 %v3754, %v3941
    %v3946 = vadd.f32 %v3755, %v3942
    %3947 = vrot.lane.b32.xlu0 %v3365, 1
    %v3948 = vpop.permute.xlu0 %3947
    %3949 = vrot.lane.b32.xlu0 %v3369, 1
    %v3950 = vpop.permute.xlu0 %3949
    %3951 = vrot.lane.b32.xlu0 %v3373, 1
    %v3952 = vpop.permute.xlu0 %3951
    %3953 = vrot.lane.b32.xlu0 %v3366, 1
    %v3954 = vpop.permute.xlu0 %3953
    %3955 = vrot.lane.b32.xlu0 %v3370, 1
    %v3956 = vpop.permute.xlu0 %3955
    %3957 = vrot.lane.b32.xlu0 %v3374, 1
    %v3958 = vpop.permute.xlu0 %3957
    %3959 = vrot.lane.b32.xlu0 %v3367, 1
    %v3960 = vpop.permute.xlu0 %3959
    %3961 = vrot.lane.b32.xlu0 %v3371, 1
    %v3962 = vpop.permute.xlu0 %3961
    %3963 = vrot.lane.b32.xlu0 %v3375, 1
    %v3964 = vpop.permute.xlu0 %3963
    %3965 = vrot.lane.b32.xlu0 %v3368, 1
    %v3966 = vpop.permute.xlu0 %3965
    %3967 = vrot.lane.b32.xlu0 %v3372, 1
    %v3968 = vpop.permute.xlu0 %3967
    %3969 = vrot.lane.b32.xlu0 %v3376, 1
    %v3970 = vpop.permute.xlu0 %3969
    %v3971 = vsel %vm652, %v3960, %v3966
    %v3972 = vsel %vm652, %v3962, %v3968
    %v3973 = vsel %vm652, %v3964, %v3970
    %v3974 = vsel %vm652, %v3954, %v3960
    %v3975 = vsel %vm652, %v3956, %v3962
    %v3976 = vsel %vm652, %v3958, %v3964
    %v3977 = vsel %vm652, %v3948, %v3954
    %v3978 = vsel %vm652, %v3950, %v3956
    %v3979 = vsel %vm652, %v3952, %v3958
    %v3980 = vsel %vm652, %v3966, %v3948
    %v3981 = vsel %vm652, %v3968, %v3950
    %v3982 = vsel %vm652, %v3970, %v3952
    %s3983 = scalar_lea.vmem [#allocation3], 168
    %v3984 = vld [vmem:[%s3983] sm:$0xff]
    %v3986 = vsel %vm3415, %v3984, 0
    %3988 = vmatprep.subr.mxu0 0.0
    %3989 = vmatpush1.msra.mxu0 0.0
    %3990 = vmatprep.subr.mxu0 0.0
    %3991 = vmatpush1.msra.mxu0 0.0
    %3992 = vmatprep.subr.mxu0 0.0
    %3993 = vmatpush1.msra.mxu0 0.0
    %3994 = vmatprep.subr.mxu0 0.0
    %3995 = vmatpush1.msra.mxu0 0.0
    %3996 = vmatprep.subr.mxu0 0.0
    %3997 = vmatpush1.msra.mxu0 0.0
    %3998 = vmatprep.subr.mxu0 0.0
    %3999 = vmatpush1.msra.mxu0 0.0
    %4000 = vmatprep.subr.mxu0 0.0
    %4001 = vmatpush1.msra.mxu0 0.0
    %4002 = vmatprep.subr.mxu0 0.0
    %4003 = vmatpush1.msra.mxu0 0.0
    %4004 = vmatprep.subr.mxu0 0.0
    %4005 = vmatpush1.msra.mxu0 0.0
    %4006 = vmatprep.subr.mxu0 0.0
    %4007 = vmatpush1.msra.mxu0 0.0
    %4008 = vmatprep.subr.mxu0 0.0
    %4009 = vmatpush1.msra.mxu0 0.0
    %4010 = vmatprep.subr.mxu0 0.0
    %4011 = vmatpush1.msra.mxu0 0.0
    %4012 = vmatprep.subr.mxu0 0.0
    %4013 = vmatpush1.msra.mxu0 0.0
    %4014 = vmatprep.subr.mxu0 %v3979
    %4015 = vmatpush1.msra.mxu0 %v3982
    %4016 = vmatprep.subr.mxu0 %v3978
    %4017 = vmatpush1.msra.mxu0 %v3981
    %4018 = vmatprep.subr.mxu0 %v3977
    %4019 = vmatpush1.msra.mxu0 %v3980
    %4020 = vmatprep.subr.mxu0 0.0
    %4021 = vmatpush2.msra.mxu0 0.0
    %4022 = vmatprep.subr.mxu0 0.0
    %4023 = vmatpush2.msra.mxu0 0.0
    %4024 = vmatprep.subr.mxu0 0.0
    %4025 = vmatpush2.msra.mxu0 0.0
    %4026 = vmatprep.subr.mxu0 0.0
    %4027 = vmatpush2.msra.mxu0 0.0
    %4028 = vmatprep.subr.mxu0 0.0
    %4029 = vmatpush2.msra.mxu0 0.0
    %4030 = vmatprep.subr.mxu0 0.0
    %4031 = vmatpush2.msra.mxu0 0.0
    %4032 = vmatprep.subr.mxu0 0.0
    %4033 = vmatpush2.msra.mxu0 0.0
    %4034 = vmatprep.subr.mxu0 0.0
    %4035 = vmatpush2.msra.mxu0 0.0
    %4036 = vmatprep.subr.mxu0 0.0
    %4037 = vmatpush2.msra.mxu0 0.0
    %4038 = vmatprep.subr.mxu0 0.0
    %4039 = vmatpush2.msra.mxu0 0.0
    %4040 = vmatprep.subr.mxu0 0.0
    %4041 = vmatpush2.msra.mxu0 0.0
    %4042 = vmatprep.subr.mxu0 0.0
    %4043 = vmatpush2.msra.mxu0 0.0
    %4044 = vmatprep.subr.mxu0 0.0
    %4045 = vmatpush2.msra.mxu0 0.0
    %4046 = vmatprep.subr.mxu0 0.0
    %4047 = vmatpush2.msra.mxu0 0.0
    %4048 = vmatprep.subr.mxu0 0.0
    %4049 = vmatpush2.msra.mxu0 0.0
    %4050 = vmatprep.subr.mxu0 0.0
    %4051 = vmatpush2.msra.mxu0 0.0
    %4052 = vmatprep.mubr.f32.mxu0 0.0
    %4053 = vmatmul.mubr.f32.gmra.mxu0 %v3986
    %v4054 = vpop.f32.mrf.mxu0
    %v4055 = vadd.f32 0.0, %v4054
    %v4056 = vpop.f32.mrf.mxu0
    %v4057 = vadd.f32 0.0, %v4056
    %4058 = vdwg.mxu0
    %4059 = vmatprep.subr.mxu0 0.0
    %4060 = vmatpush1.msra.mxu0 0.0
    %4061 = vmatprep.subr.mxu0 0.0
    %4062 = vmatpush1.msra.mxu0 0.0
    %4063 = vmatprep.subr.mxu0 0.0
    %4064 = vmatpush1.msra.mxu0 0.0
    %4065 = vmatprep.subr.mxu0 0.0
    %4066 = vmatpush1.msra.mxu0 0.0
    %4067 = vmatprep.subr.mxu0 0.0
    %4068 = vmatpush1.msra.mxu0 0.0
    %4069 = vmatprep.subr.mxu0 0.0
    %4070 = vmatpush1.msra.mxu0 0.0
    %4071 = vmatprep.subr.mxu0 0.0
    %4072 = vmatpush1.msra.mxu0 0.0
    %4073 = vmatprep.subr.mxu0 0.0
    %4074 = vmatpush1.msra.mxu0 0.0
    %4075 = vmatprep.subr.mxu0 0.0
    %4076 = vmatpush1.msra.mxu0 0.0
    %4077 = vmatprep.subr.mxu0 0.0
    %4078 = vmatpush1.msra.mxu0 0.0
    %4079 = vmatprep.subr.mxu0 0.0
    %4080 = vmatpush1.msra.mxu0 0.0
    %4081 = vmatprep.subr.mxu0 0.0
    %4082 = vmatpush1.msra.mxu0 0.0
    %4083 = vmatprep.subr.mxu0 0.0
    %4084 = vmatpush1.msra.mxu0 0.0
    %4085 = vmatprep.subr.mxu0 %v3973
    %4086 = vmatpush1.msra.mxu0 %v3976
    %4087 = vmatprep.subr.mxu0 %v3972
    %4088 = vmatpush1.msra.mxu0 %v3975
    %4089 = vmatprep.subr.mxu0 %v3971
    %4090 = vmatpush1.msra.mxu0 %v3974
    %4091 = vmatprep.subr.mxu0 0.0
    %4092 = vmatpush2.msra.mxu0 0.0
    %4093 = vmatprep.subr.mxu0 0.0
    %4094 = vmatpush2.msra.mxu0 0.0
    %4095 = vmatprep.subr.mxu0 0.0
    %4096 = vmatpush2.msra.mxu0 0.0
    %4097 = vmatprep.subr.mxu0 0.0
    %4098 = vmatpush2.msra.mxu0 0.0
    %4099 = vmatprep.subr.mxu0 0.0
    %4100 = vmatpush2.msra.mxu0 0.0
    %4101 = vmatprep.subr.mxu0 0.0
    %4102 = vmatpush2.msra.mxu0 0.0
    %4103 = vmatprep.subr.mxu0 0.0
    %4104 = vmatpush2.msra.mxu0 0.0
    %4105 = vmatprep.subr.mxu0 0.0
    %4106 = vmatpush2.msra.mxu0 0.0
    %4107 = vmatprep.subr.mxu0 0.0
    %4108 = vmatpush2.msra.mxu0 0.0
    %4109 = vmatprep.subr.mxu0 0.0
    %4110 = vmatpush2.msra.mxu0 0.0
    %4111 = vmatprep.subr.mxu0 0.0
    %4112 = vmatpush2.msra.mxu0 0.0
    %4113 = vmatprep.subr.mxu0 0.0
    %4114 = vmatpush2.msra.mxu0 0.0
    %4115 = vmatprep.subr.mxu0 0.0
    %4116 = vmatpush2.msra.mxu0 0.0
    %4117 = vmatprep.subr.mxu0 0.0
    %4118 = vmatpush2.msra.mxu0 0.0
    %4119 = vmatprep.subr.mxu0 0.0
    %4120 = vmatpush2.msra.mxu0 0.0
    %4121 = vmatprep.subr.mxu0 0.0
    %4122 = vmatpush2.msra.mxu0 0.0
    %4123 = vmatprep.mubr.f32.mxu0 0.0
    %4124 = vmatmul.mubr.f32.gmra.mxu0 %v3986
    %v4125 = vpop.f32.mrf.mxu0
    %v4126 = vadd.f32 0.0, %v4125
    %v4127 = vpop.f32.mrf.mxu0
    %v4128 = vadd.f32 0.0, %v4127
    %4129 = vdwg.mxu0
    %v4130 = vmul.f32 %v4055, %v808
    %v4131 = vmul.f32 %v4057, %v812
    %v4132 = vmul.f32 %v4126, %v816
    %v4133 = vmul.f32 %v4128, %v820
    %v4134 = vadd.f32 %v3943, %v4130
    %v4135 = vadd.f32 %v3944, %v4131
    %v4136 = vadd.f32 %v3945, %v4132
    %v4137 = vadd.f32 %v3946, %v4133
    %s4138 = scalar_lea.vmem [#allocation3], 176
    %v4139 = vld [vmem:[%s4138] sm:$0xff]
    %v4141 = vsel %vm3415, %v4139, 0
    %4143 = vmatprep.subr.mxu0 0.0
    %4144 = vmatpush1.msra.mxu0 0.0
    %4145 = vmatprep.subr.mxu0 0.0
    %4146 = vmatpush1.msra.mxu0 0.0
    %4147 = vmatprep.subr.mxu0 0.0
    %4148 = vmatpush1.msra.mxu0 0.0
    %4149 = vmatprep.subr.mxu0 0.0
    %4150 = vmatpush1.msra.mxu0 0.0
    %4151 = vmatprep.subr.mxu0 0.0
    %4152 = vmatpush1.msra.mxu0 0.0
    %4153 = vmatprep.subr.mxu0 0.0
    %4154 = vmatpush1.msra.mxu0 0.0
    %4155 = vmatprep.subr.mxu0 0.0
    %4156 = vmatpush1.msra.mxu0 0.0
    %4157 = vmatprep.subr.mxu0 0.0
    %4158 = vmatpush1.msra.mxu0 0.0
    %4159 = vmatprep.subr.mxu0 0.0
    %4160 = vmatpush1.msra.mxu0 0.0
    %4161 = vmatprep.subr.mxu0 0.0
    %4162 = vmatpush1.msra.mxu0 0.0
    %4163 = vmatprep.subr.mxu0 0.0
    %4164 = vmatpush1.msra.mxu0 0.0
    %4165 = vmatprep.subr.mxu0 0.0
    %4166 = vmatpush1.msra.mxu0 0.0
    %4167 = vmatprep.subr.mxu0 0.0
    %4168 = vmatpush1.msra.mxu0 0.0
    %4169 = vmatprep.subr.mxu0 %v3374
    %4170 = vmatpush1.msra.mxu0 %v3373
    %4171 = vmatprep.subr.mxu0 %v3370
    %4172 = vmatpush1.msra.mxu0 %v3369
    %4173 = vmatprep.subr.mxu0 %v3366
    %4174 = vmatpush1.msra.mxu0 %v3365
    %4175 = vmatprep.subr.mxu0 0.0
    %4176 = vmatpush2.msra.mxu0 0.0
    %4177 = vmatprep.subr.mxu0 0.0
    %4178 = vmatpush2.msra.mxu0 0.0
    %4179 = vmatprep.subr.mxu0 0.0
    %4180 = vmatpush2.msra.mxu0 0.0
    %4181 = vmatprep.subr.mxu0 0.0
    %4182 = vmatpush2.msra.mxu0 0.0
    %4183 = vmatprep.subr.mxu0 0.0
    %4184 = vmatpush2.msra.mxu0 0.0
    %4185 = vmatprep.subr.mxu0 0.0
    %4186 = vmatpush2.msra.mxu0 0.0
    %4187 = vmatprep.subr.mxu0 0.0
    %4188 = vmatpush2.msra.mxu0 0.0
    %4189 = vmatprep.subr.mxu0 0.0
    %4190 = vmatpush2.msra.mxu0 0.0
    %4191 = vmatprep.subr.mxu0 0.0
    %4192 = vmatpush2.msra.mxu0 0.0
    %4193 = vmatprep.subr.mxu0 0.0
    %4194 = vmatpush2.msra.mxu0 0.0
    %4195 = vmatprep.subr.mxu0 0.0
    %4196 = vmatpush2.msra.mxu0 0.0
    %4197 = vmatprep.subr.mxu0 0.0
    %4198 = vmatpush2.msra.mxu0 0.0
    %4199 = vmatprep.subr.mxu0 0.0
    %4200 = vmatpush2.msra.mxu0 0.0
    %4201 = vmatprep.subr.mxu0 0.0
    %4202 = vmatpush2.msra.mxu0 0.0
    %4203 = vmatprep.subr.mxu0 0.0
    %4204 = vmatpush2.msra.mxu0 0.0
    %4205 = vmatprep.subr.mxu0 0.0
    %4206 = vmatpush2.msra.mxu0 0.0
    %4207 = vmatprep.mubr.f32.mxu0 0.0
    %4208 = vmatmul.mubr.f32.gmra.mxu0 %v4141
    %v4209 = vpop.f32.mrf.mxu0
    %v4210 = vadd.f32 0.0, %v4209
    %v4211 = vpop.f32.mrf.mxu0
    %v4212 = vadd.f32 0.0, %v4211
    %4213 = vdwg.mxu0
    %4214 = vmatprep.subr.mxu0 0.0
    %4215 = vmatpush1.msra.mxu0 0.0
    %4216 = vmatprep.subr.mxu0 0.0
    %4217 = vmatpush1.msra.mxu0 0.0
    %4218 = vmatprep.subr.mxu0 0.0
    %4219 = vmatpush1.msra.mxu0 0.0
    %4220 = vmatprep.subr.mxu0 0.0
    %4221 = vmatpush1.msra.mxu0 0.0
    %4222 = vmatprep.subr.mxu0 0.0
    %4223 = vmatpush1.msra.mxu0 0.0
    %4224 = vmatprep.subr.mxu0 0.0
    %4225 = vmatpush1.msra.mxu0 0.0
    %4226 = vmatprep.subr.mxu0 0.0
    %4227 = vmatpush1.msra.mxu0 0.0
    %4228 = vmatprep.subr.mxu0 0.0
    %4229 = vmatpush1.msra.mxu0 0.0
    %4230 = vmatprep.subr.mxu0 0.0
    %4231 = vmatpush1.msra.mxu0 0.0
    %4232 = vmatprep.subr.mxu0 0.0
    %4233 = vmatpush1.msra.mxu0 0.0
    %4234 = vmatprep.subr.mxu0 0.0
    %4235 = vmatpush1.msra.mxu0 0.0
    %4236 = vmatprep.subr.mxu0 0.0
    %4237 = vmatpush1.msra.mxu0 0.0
    %4238 = vmatprep.subr.mxu0 0.0
    %4239 = vmatpush1.msra.mxu0 0.0
    %4240 = vmatprep.subr.mxu0 %v3376
    %4241 = vmatpush1.msra.mxu0 %v3375
    %4242 = vmatprep.subr.mxu0 %v3372
    %4243 = vmatpush1.msra.mxu0 %v3371
    %4244 = vmatprep.subr.mxu0 %v3368
    %4245 = vmatpush1.msra.mxu0 %v3367
    %4246 = vmatprep.subr.mxu0 0.0
    %4247 = vmatpush2.msra.mxu0 0.0
    %4248 = vmatprep.subr.mxu0 0.0
    %4249 = vmatpush2.msra.mxu0 0.0
    %4250 = vmatprep.subr.mxu0 0.0
    %4251 = vmatpush2.msra.mxu0 0.0
    %4252 = vmatprep.subr.mxu0 0.0
    %4253 = vmatpush2.msra.mxu0 0.0
    %4254 = vmatprep.subr.mxu0 0.0
    %4255 = vmatpush2.msra.mxu0 0.0
    %4256 = vmatprep.subr.mxu0 0.0
    %4257 = vmatpush2.msra.mxu0 0.0
    %4258 = vmatprep.subr.mxu0 0.0
    %4259 = vmatpush2.msra.mxu0 0.0
    %4260 = vmatprep.subr.mxu0 0.0
    %4261 = vmatpush2.msra.mxu0 0.0
    %4262 = vmatprep.subr.mxu0 0.0
    %4263 = vmatpush2.msra.mxu0 0.0
    %4264 = vmatprep.subr.mxu0 0.0
    %4265 = vmatpush2.msra.mxu0 0.0
    %4266 = vmatprep.subr.mxu0 0.0
    %4267 = vmatpush2.msra.mxu0 0.0
    %4268 = vmatprep.subr.mxu0 0.0
    %4269 = vmatpush2.msra.mxu0 0.0
    %4270 = vmatprep.subr.mxu0 0.0
    %4271 = vmatpush2.msra.mxu0 0.0
    %4272 = vmatprep.subr.mxu0 0.0
    %4273 = vmatpush2.msra.mxu0 0.0
    %4274 = vmatprep.subr.mxu0 0.0
    %4275 = vmatpush2.msra.mxu0 0.0
    %4276 = vmatprep.subr.mxu0 0.0
    %4277 = vmatpush2.msra.mxu0 0.0
    %4278 = vmatprep.mubr.f32.mxu0 0.0
    %4279 = vmatmul.mubr.f32.gmra.mxu0 %v4141
    %v4280 = vpop.f32.mrf.mxu0
    %v4281 = vadd.f32 0.0, %v4280
    %v4282 = vpop.f32.mrf.mxu0
    %v4283 = vadd.f32 0.0, %v4282
    %4284 = vdwg.mxu0
    %v4285 = vadd.f32 %v4134, %v4210
    %v4286 = vadd.f32 %v4135, %v4212
    %v4287 = vadd.f32 %v4136, %v4281
    %v4288 = vadd.f32 %v4137, %v4283
    %4289 = vrot.lane.b32.xlu0 %v3365, 127
    %v4290 = vpop.permute.xlu0 %4289
    %4291 = vrot.lane.b32.xlu0 %v3369, 127
    %v4292 = vpop.permute.xlu0 %4291
    %4293 = vrot.lane.b32.xlu0 %v3373, 127
    %v4294 = vpop.permute.xlu0 %4293
    %4295 = vrot.lane.b32.xlu0 %v3366, 127
    %v4296 = vpop.permute.xlu0 %4295
    %4297 = vrot.lane.b32.xlu0 %v3370, 127
    %v4298 = vpop.permute.xlu0 %4297
    %4299 = vrot.lane.b32.xlu0 %v3374, 127
    %v4300 = vpop.permute.xlu0 %4299
    %4301 = vrot.lane.b32.xlu0 %v3367, 127
    %v4302 = vpop.permute.xlu0 %4301
    %4303 = vrot.lane.b32.xlu0 %v3371, 127
    %v4304 = vpop.permute.xlu0 %4303
    %4305 = vrot.lane.b32.xlu0 %v3375, 127
    %v4306 = vpop.permute.xlu0 %4305
    %4307 = vrot.lane.b32.xlu0 %v3368, 127
    %v4308 = vpop.permute.xlu0 %4307
    %4309 = vrot.lane.b32.xlu0 %v3372, 127
    %v4310 = vpop.permute.xlu0 %4309
    %4311 = vrot.lane.b32.xlu0 %v3376, 127
    %v4312 = vpop.permute.xlu0 %4311
    %v4313 = vsel %vm992, %v4302, %v4308
    %v4314 = vsel %vm992, %v4304, %v4310
    %v4315 = vsel %vm992, %v4306, %v4312
    %v4316 = vsel %vm992, %v4296, %v4302
    %v4317 = vsel %vm992, %v4298, %v4304
    %v4318 = vsel %vm992, %v4300, %v4306
    %v4319 = vsel %vm992, %v4290, %v4296
    %v4320 = vsel %vm992, %v4292, %v4298
    %v4321 = vsel %vm992, %v4294, %v4300
    %v4322 = vsel %vm992, %v4308, %v4290
    %v4323 = vsel %vm992, %v4310, %v4292
    %v4324 = vsel %vm992, %v4312, %v4294
    %s4325 = scalar_lea.vmem [#allocation3], 184
    %v4326 = vld [vmem:[%s4325] sm:$0xff]
    %v4328 = vsel %vm3415, %v4326, 0
    %4330 = vmatprep.subr.mxu0 0.0
    %4331 = vmatpush1.msra.mxu0 0.0
    %4332 = vmatprep.subr.mxu0 0.0
    %4333 = vmatpush1.msra.mxu0 0.0
    %4334 = vmatprep.subr.mxu0 0.0
    %4335 = vmatpush1.msra.mxu0 0.0
    %4336 = vmatprep.subr.mxu0 0.0
    %4337 = vmatpush1.msra.mxu0 0.0
    %4338 = vmatprep.subr.mxu0 0.0
    %4339 = vmatpush1.msra.mxu0 0.0
    %4340 = vmatprep.subr.mxu0 0.0
    %4341 = vmatpush1.msra.mxu0 0.0
    %4342 = vmatprep.subr.mxu0 0.0
    %4343 = vmatpush1.msra.mxu0 0.0
    %4344 = vmatprep.subr.mxu0 0.0
    %4345 = vmatpush1.msra.mxu0 0.0
    %4346 = vmatprep.subr.mxu0 0.0
    %4347 = vmatpush1.msra.mxu0 0.0
    %4348 = vmatprep.subr.mxu0 0.0
    %4349 = vmatpush1.msra.mxu0 0.0
    %4350 = vmatprep.subr.mxu0 0.0
    %4351 = vmatpush1.msra.mxu0 0.0
    %4352 = vmatprep.subr.mxu0 0.0
    %4353 = vmatpush1.msra.mxu0 0.0
    %4354 = vmatprep.subr.mxu0 0.0
    %4355 = vmatpush1.msra.mxu0 0.0
    %4356 = vmatprep.subr.mxu0 %v4318
    %4357 = vmatpush1.msra.mxu0 %v4321
    %4358 = vmatprep.subr.mxu0 %v4317
    %4359 = vmatpush1.msra.mxu0 %v4320
    %4360 = vmatprep.subr.mxu0 %v4316
    %4361 = vmatpush1.msra.mxu0 %v4319
    %4362 = vmatprep.subr.mxu0 0.0
    %4363 = vmatpush2.msra.mxu0 0.0
    %4364 = vmatprep.subr.mxu0 0.0
    %4365 = vmatpush2.msra.mxu0 0.0
    %4366 = vmatprep.subr.mxu0 0.0
    %4367 = vmatpush2.msra.mxu0 0.0
    %4368 = vmatprep.subr.mxu0 0.0
    %4369 = vmatpush2.msra.mxu0 0.0
    %4370 = vmatprep.subr.mxu0 0.0
    %4371 = vmatpush2.msra.mxu0 0.0
    %4372 = vmatprep.subr.mxu0 0.0
    %4373 = vmatpush2.msra.mxu0 0.0
    %4374 = vmatprep.subr.mxu0 0.0
    %4375 = vmatpush2.msra.mxu0 0.0
    %4376 = vmatprep.subr.mxu0 0.0
    %4377 = vmatpush2.msra.mxu0 0.0
    %4378 = vmatprep.subr.mxu0 0.0
    %4379 = vmatpush2.msra.mxu0 0.0
    %4380 = vmatprep.subr.mxu0 0.0
    %4381 = vmatpush2.msra.mxu0 0.0
    %4382 = vmatprep.subr.mxu0 0.0
    %4383 = vmatpush2.msra.mxu0 0.0
    %4384 = vmatprep.subr.mxu0 0.0
    %4385 = vmatpush2.msra.mxu0 0.0
    %4386 = vmatprep.subr.mxu0 0.0
    %4387 = vmatpush2.msra.mxu0 0.0
    %4388 = vmatprep.subr.mxu0 0.0
    %4389 = vmatpush2.msra.mxu0 0.0
    %4390 = vmatprep.subr.mxu0 0.0
    %4391 = vmatpush2.msra.mxu0 0.0
    %4392 = vmatprep.subr.mxu0 0.0
    %4393 = vmatpush2.msra.mxu0 0.0
    %4394 = vmatprep.mubr.f32.mxu0 0.0
    %4395 = vmatmul.mubr.f32.gmra.mxu0 %v4328
    %v4396 = vpop.f32.mrf.mxu0
    %v4397 = vadd.f32 0.0, %v4396
    %v4398 = vpop.f32.mrf.mxu0
    %v4399 = vadd.f32 0.0, %v4398
    %4400 = vdwg.mxu0
    %4401 = vmatprep.subr.mxu0 0.0
    %4402 = vmatpush1.msra.mxu0 0.0
    %4403 = vmatprep.subr.mxu0 0.0
    %4404 = vmatpush1.msra.mxu0 0.0
    %4405 = vmatprep.subr.mxu0 0.0
    %4406 = vmatpush1.msra.mxu0 0.0
    %4407 = vmatprep.subr.mxu0 0.0
    %4408 = vmatpush1.msra.mxu0 0.0
    %4409 = vmatprep.subr.mxu0 0.0
    %4410 = vmatpush1.msra.mxu0 0.0
    %4411 = vmatprep.subr.mxu0 0.0
    %4412 = vmatpush1.msra.mxu0 0.0
    %4413 = vmatprep.subr.mxu0 0.0
    %4414 = vmatpush1.msra.mxu0 0.0
    %4415 = vmatprep.subr.mxu0 0.0
    %4416 = vmatpush1.msra.mxu0 0.0
    %4417 = vmatprep.subr.mxu0 0.0
    %4418 = vmatpush1.msra.mxu0 0.0
    %4419 = vmatprep.subr.mxu0 0.0
    %4420 = vmatpush1.msra.mxu0 0.0
    %4421 = vmatprep.subr.mxu0 0.0
    %4422 = vmatpush1.msra.mxu0 0.0
    %4423 = vmatprep.subr.mxu0 0.0
    %4424 = vmatpush1.msra.mxu0 0.0
    %4425 = vmatprep.subr.mxu0 0.0
    %4426 = vmatpush1.msra.mxu0 0.0
    %4427 = vmatprep.subr.mxu0 %v4324
    %4428 = vmatpush1.msra.mxu0 %v4315
    %4429 = vmatprep.subr.mxu0 %v4323
    %4430 = vmatpush1.msra.mxu0 %v4314
    %4431 = vmatprep.subr.mxu0 %v4322
    %4432 = vmatpush1.msra.mxu0 %v4313
    %4433 = vmatprep.subr.mxu0 0.0
    %4434 = vmatpush2.msra.mxu0 0.0
    %4435 = vmatprep.subr.mxu0 0.0
    %4436 = vmatpush2.msra.mxu0 0.0
    %4437 = vmatprep.subr.mxu0 0.0
    %4438 = vmatpush2.msra.mxu0 0.0
    %4439 = vmatprep.subr.mxu0 0.0
    %4440 = vmatpush2.msra.mxu0 0.0
    %4441 = vmatprep.subr.mxu0 0.0
    %4442 = vmatpush2.msra.mxu0 0.0
    %4443 = vmatprep.subr.mxu0 0.0
    %4444 = vmatpush2.msra.mxu0 0.0
    %4445 = vmatprep.subr.mxu0 0.0
    %4446 = vmatpush2.msra.mxu0 0.0
    %4447 = vmatprep.subr.mxu0 0.0
    %4448 = vmatpush2.msra.mxu0 0.0
    %4449 = vmatprep.subr.mxu0 0.0
    %4450 = vmatpush2.msra.mxu0 0.0
    %4451 = vmatprep.subr.mxu0 0.0
    %4452 = vmatpush2.msra.mxu0 0.0
    %4453 = vmatprep.subr.mxu0 0.0
    %4454 = vmatpush2.msra.mxu0 0.0
    %4455 = vmatprep.subr.mxu0 0.0
    %4456 = vmatpush2.msra.mxu0 0.0
    %4457 = vmatprep.subr.mxu0 0.0
    %4458 = vmatpush2.msra.mxu0 0.0
    %4459 = vmatprep.subr.mxu0 0.0
    %4460 = vmatpush2.msra.mxu0 0.0
    %4461 = vmatprep.subr.mxu0 0.0
    %4462 = vmatpush2.msra.mxu0 0.0
    %4463 = vmatprep.subr.mxu0 0.0
    %4464 = vmatpush2.msra.mxu0 0.0
    %4465 = vmatprep.mubr.f32.mxu0 0.0
    %4466 = vmatmul.mubr.f32.gmra.mxu0 %v4328
    %v4467 = vpop.f32.mrf.mxu0
    %v4468 = vadd.f32 0.0, %v4467
    %v4469 = vpop.f32.mrf.mxu0
    %v4470 = vadd.f32 0.0, %v4469
    %4471 = vdwg.mxu0
    %v4472 = vmul.f32 %v4397, %v1148
    %v4473 = vmul.f32 %v4399, %v1152
    %v4474 = vmul.f32 %v4468, %v1156
    %v4475 = vmul.f32 %v4470, %v1160
    %v4476 = vadd.f32 %v4285, %v4472
    %v4477 = vadd.f32 %v4286, %v4473
    %v4478 = vadd.f32 %v4287, %v4474
    %v4479 = vadd.f32 %v4288, %v4475
    %4480 = vrot.lane.b32.xlu0 %v3365, 113
    %v4481 = vpop.permute.xlu0 %4480
    %4482 = vrot.lane.b32.xlu0 %v3369, 113
    %v4483 = vpop.permute.xlu0 %4482
    %4484 = vrot.lane.b32.xlu0 %v3373, 113
    %v4485 = vpop.permute.xlu0 %4484
    %4486 = vrot.lane.b32.xlu0 %v3366, 113
    %v4487 = vpop.permute.xlu0 %4486
    %4488 = vrot.lane.b32.xlu0 %v3370, 113
    %v4489 = vpop.permute.xlu0 %4488
    %4490 = vrot.lane.b32.xlu0 %v3374, 113
    %v4491 = vpop.permute.xlu0 %4490
    %4492 = vrot.lane.b32.xlu0 %v3367, 113
    %v4493 = vpop.permute.xlu0 %4492
    %4494 = vrot.lane.b32.xlu0 %v3371, 113
    %v4495 = vpop.permute.xlu0 %4494
    %4496 = vrot.lane.b32.xlu0 %v3375, 113
    %v4497 = vpop.permute.xlu0 %4496
    %4498 = vrot.lane.b32.xlu0 %v3368, 113
    %v4499 = vpop.permute.xlu0 %4498
    %4500 = vrot.lane.b32.xlu0 %v3372, 113
    %v4501 = vpop.permute.xlu0 %4500
    %4502 = vrot.lane.b32.xlu0 %v3376, 113
    %v4503 = vpop.permute.xlu0 %4502
    %v4504 = vsel %vm1181, %v4493, %v4499
    %v4505 = vsel %vm1181, %v4495, %v4501
    %v4506 = vsel %vm1181, %v4497, %v4503
    %v4507 = vsel %vm1181, %v4487, %v4493
    %v4508 = vsel %vm1181, %v4489, %v4495
    %v4509 = vsel %vm1181, %v4491, %v4497
    %v4510 = vsel %vm1181, %v4481, %v4487
    %v4511 = vsel %vm1181, %v4483, %v4489
    %v4512 = vsel %vm1181, %v4485, %v4491
    %v4513 = vsel %vm1181, %v4499, %v4481
    %v4514 = vsel %vm1181, %v4501, %v4483
    %v4515 = vsel %vm1181, %v4503, %v4485
    %s4516 = scalar_lea.vmem [#allocation3], 192
    %v4517 = vld [vmem:[%s4516] sm:$0xff]
    %v4519 = vsel %vm3415, %v4517, 0
    %4521 = vmatprep.subr.mxu0 0.0
    %4522 = vmatpush1.msra.mxu0 0.0
    %4523 = vmatprep.subr.mxu0 0.0
    %4524 = vmatpush1.msra.mxu0 0.0
    %4525 = vmatprep.subr.mxu0 0.0
    %4526 = vmatpush1.msra.mxu0 0.0
    %4527 = vmatprep.subr.mxu0 0.0
    %4528 = vmatpush1.msra.mxu0 0.0
    %4529 = vmatprep.subr.mxu0 0.0
    %4530 = vmatpush1.msra.mxu0 0.0
    %4531 = vmatprep.subr.mxu0 0.0
    %4532 = vmatpush1.msra.mxu0 0.0
    %4533 = vmatprep.subr.mxu0 0.0
    %4534 = vmatpush1.msra.mxu0 0.0
    %4535 = vmatprep.subr.mxu0 0.0
    %4536 = vmatpush1.msra.mxu0 0.0
    %4537 = vmatprep.subr.mxu0 0.0
    %4538 = vmatpush1.msra.mxu0 0.0
    %4539 = vmatprep.subr.mxu0 0.0
    %4540 = vmatpush1.msra.mxu0 0.0
    %4541 = vmatprep.subr.mxu0 0.0
    %4542 = vmatpush1.msra.mxu0 0.0
    %4543 = vmatprep.subr.mxu0 0.0
    %4544 = vmatpush1.msra.mxu0 0.0
    %4545 = vmatprep.subr.mxu0 0.0
    %4546 = vmatpush1.msra.mxu0 0.0
    %4547 = vmatprep.subr.mxu0 %v4509
    %4548 = vmatpush1.msra.mxu0 %v4512
    %4549 = vmatprep.subr.mxu0 %v4508
    %4550 = vmatpush1.msra.mxu0 %v4511
    %4551 = vmatprep.subr.mxu0 %v4507
    %4552 = vmatpush1.msra.mxu0 %v4510
    %4553 = vmatprep.subr.mxu0 0.0
    %4554 = vmatpush2.msra.mxu0 0.0
    %4555 = vmatprep.subr.mxu0 0.0
    %4556 = vmatpush2.msra.mxu0 0.0
    %4557 = vmatprep.subr.mxu0 0.0
    %4558 = vmatpush2.msra.mxu0 0.0
    %4559 = vmatprep.subr.mxu0 0.0
    %4560 = vmatpush2.msra.mxu0 0.0
    %4561 = vmatprep.subr.mxu0 0.0
    %4562 = vmatpush2.msra.mxu0 0.0
    %4563 = vmatprep.subr.mxu0 0.0
    %4564 = vmatpush2.msra.mxu0 0.0
    %4565 = vmatprep.subr.mxu0 0.0
    %4566 = vmatpush2.msra.mxu0 0.0
    %4567 = vmatprep.subr.mxu0 0.0
    %4568 = vmatpush2.msra.mxu0 0.0
    %4569 = vmatprep.subr.mxu0 0.0
    %4570 = vmatpush2.msra.mxu0 0.0
    %4571 = vmatprep.subr.mxu0 0.0
    %4572 = vmatpush2.msra.mxu0 0.0
    %4573 = vmatprep.subr.mxu0 0.0
    %4574 = vmatpush2.msra.mxu0 0.0
    %4575 = vmatprep.subr.mxu0 0.0
    %4576 = vmatpush2.msra.mxu0 0.0
    %4577 = vmatprep.subr.mxu0 0.0
    %4578 = vmatpush2.msra.mxu0 0.0
    %4579 = vmatprep.subr.mxu0 0.0
    %4580 = vmatpush2.msra.mxu0 0.0
    %4581 = vmatprep.subr.mxu0 0.0
    %4582 = vmatpush2.msra.mxu0 0.0
    %4583 = vmatprep.subr.mxu0 0.0
    %4584 = vmatpush2.msra.mxu0 0.0
    %4585 = vmatprep.mubr.f32.mxu0 0.0
    %4586 = vmatmul.mubr.f32.gmra.mxu0 %v4519
    %v4587 = vpop.f32.mrf.mxu0
    %v4588 = vadd.f32 0.0, %v4587
    %v4589 = vpop.f32.mrf.mxu0
    %v4590 = vadd.f32 0.0, %v4589
    %4591 = vdwg.mxu0
    %4592 = vmatprep.subr.mxu0 0.0
    %4593 = vmatpush1.msra.mxu0 0.0
    %4594 = vmatprep.subr.mxu0 0.0
    %4595 = vmatpush1.msra.mxu0 0.0
    %4596 = vmatprep.subr.mxu0 0.0
    %4597 = vmatpush1.msra.mxu0 0.0
    %4598 = vmatprep.subr.mxu0 0.0
    %4599 = vmatpush1.msra.mxu0 0.0
    %4600 = vmatprep.subr.mxu0 0.0
    %4601 = vmatpush1.msra.mxu0 0.0
    %4602 = vmatprep.subr.mxu0 0.0
    %4603 = vmatpush1.msra.mxu0 0.0
    %4604 = vmatprep.subr.mxu0 0.0
    %4605 = vmatpush1.msra.mxu0 0.0
    %4606 = vmatprep.subr.mxu0 0.0
    %4607 = vmatpush1.msra.mxu0 0.0
    %4608 = vmatprep.subr.mxu0 0.0
    %4609 = vmatpush1.msra.mxu0 0.0
    %4610 = vmatprep.subr.mxu0 0.0
    %4611 = vmatpush1.msra.mxu0 0.0
    %4612 = vmatprep.subr.mxu0 0.0
    %4613 = vmatpush1.msra.mxu0 0.0
    %4614 = vmatprep.subr.mxu0 0.0
    %4615 = vmatpush1.msra.mxu0 0.0
    %4616 = vmatprep.subr.mxu0 0.0
    %4617 = vmatpush1.msra.mxu0 0.0
    %4618 = vmatprep.subr.mxu0 %v4515
    %4619 = vmatpush1.msra.mxu0 %v4506
    %4620 = vmatprep.subr.mxu0 %v4514
    %4621 = vmatpush1.msra.mxu0 %v4505
    %4622 = vmatprep.subr.mxu0 %v4513
    %4623 = vmatpush1.msra.mxu0 %v4504
    %4624 = vmatprep.subr.mxu0 0.0
    %4625 = vmatpush2.msra.mxu0 0.0
    %4626 = vmatprep.subr.mxu0 0.0
    %4627 = vmatpush2.msra.mxu0 0.0
    %4628 = vmatprep.subr.mxu0 0.0
    %4629 = vmatpush2.msra.mxu0 0.0
    %4630 = vmatprep.subr.mxu0 0.0
    %4631 = vmatpush2.msra.mxu0 0.0
    %4632 = vmatprep.subr.mxu0 0.0
    %4633 = vmatpush2.msra.mxu0 0.0
    %4634 = vmatprep.subr.mxu0 0.0
    %4635 = vmatpush2.msra.mxu0 0.0
    %4636 = vmatprep.subr.mxu0 0.0
    %4637 = vmatpush2.msra.mxu0 0.0
    %4638 = vmatprep.subr.mxu0 0.0
    %4639 = vmatpush2.msra.mxu0 0.0
    %4640 = vmatprep.subr.mxu0 0.0
    %4641 = vmatpush2.msra.mxu0 0.0
    %4642 = vmatprep.subr.mxu0 0.0
    %4643 = vmatpush2.msra.mxu0 0.0
    %4644 = vmatprep.subr.mxu0 0.0
    %4645 = vmatpush2.msra.mxu0 0.0
    %4646 = vmatprep.subr.mxu0 0.0
    %4647 = vmatpush2.msra.mxu0 0.0
    %4648 = vmatprep.subr.mxu0 0.0
    %4649 = vmatpush2.msra.mxu0 0.0
    %4650 = vmatprep.subr.mxu0 0.0
    %4651 = vmatpush2.msra.mxu0 0.0
    %4652 = vmatprep.subr.mxu0 0.0
    %4653 = vmatpush2.msra.mxu0 0.0
    %4654 = vmatprep.subr.mxu0 0.0
    %4655 = vmatpush2.msra.mxu0 0.0
    %4656 = vmatprep.mubr.f32.mxu0 0.0
    %4657 = vmatmul.mubr.f32.gmra.mxu0 %v4519
    %v4658 = vpop.f32.mrf.mxu0
    %v4659 = vadd.f32 0.0, %v4658
    %v4660 = vpop.f32.mrf.mxu0
    %v4661 = vadd.f32 0.0, %v4660
    %4662 = vdwg.mxu0
    %v4663 = vmul.f32 %v4588, %v1337
    %v4664 = vmul.f32 %v4590, %v1341
    %v4665 = vmul.f32 %v4659, %v1345
    %v4666 = vmul.f32 %v4661, %v1349
    %v4667 = vadd.f32 %v4476, %v4663
    %v4668 = vadd.f32 %v4477, %v4664
    %v4669 = vadd.f32 %v4478, %v4665
    %v4670 = vadd.f32 %v4479, %v4666
    %4671 = vrot.lane.b32.xlu0 %v3365, 112
    %v4672 = vpop.permute.xlu0 %4671
    %4673 = vrot.lane.b32.xlu0 %v3369, 112
    %v4674 = vpop.permute.xlu0 %4673
    %4675 = vrot.lane.b32.xlu0 %v3373, 112
    %v4676 = vpop.permute.xlu0 %4675
    %4677 = vrot.lane.b32.xlu0 %v3366, 112
    %v4678 = vpop.permute.xlu0 %4677
    %4679 = vrot.lane.b32.xlu0 %v3370, 112
    %v4680 = vpop.permute.xlu0 %4679
    %4681 = vrot.lane.b32.xlu0 %v3374, 112
    %v4682 = vpop.permute.xlu0 %4681
    %4683 = vrot.lane.b32.xlu0 %v3367, 112
    %v4684 = vpop.permute.xlu0 %4683
    %4685 = vrot.lane.b32.xlu0 %v3371, 112
    %v4686 = vpop.permute.xlu0 %4685
    %4687 = vrot.lane.b32.xlu0 %v3375, 112
    %v4688 = vpop.permute.xlu0 %4687
    %4689 = vrot.lane.b32.xlu0 %v3368, 112
    %v4690 = vpop.permute.xlu0 %4689
    %4691 = vrot.lane.b32.xlu0 %v3372, 112
    %v4692 = vpop.permute.xlu0 %4691
    %4693 = vrot.lane.b32.xlu0 %v3376, 112
    %v4694 = vpop.permute.xlu0 %4693
    %v4695 = vsel %vm1370, %v4684, %v4690
    %v4696 = vsel %vm1370, %v4686, %v4692
    %v4697 = vsel %vm1370, %v4688, %v4694
    %v4698 = vsel %vm1370, %v4678, %v4684
    %v4699 = vsel %vm1370, %v4680, %v4686
    %v4700 = vsel %vm1370, %v4682, %v4688
    %v4701 = vsel %vm1370, %v4672, %v4678
    %v4702 = vsel %vm1370, %v4674, %v4680
    %v4703 = vsel %vm1370, %v4676, %v4682
    %v4704 = vsel %vm1370, %v4690, %v4672
    %v4705 = vsel %vm1370, %v4692, %v4674
    %v4706 = vsel %vm1370, %v4694, %v4676
    %s4707 = scalar_lea.vmem [#allocation3], 200
    %v4708 = vld [vmem:[%s4707] sm:$0xff]
    %v4710 = vsel %vm3415, %v4708, 0
    %4712 = vmatprep.subr.mxu0 0.0
    %4713 = vmatpush1.msra.mxu0 0.0
    %4714 = vmatprep.subr.mxu0 0.0
    %4715 = vmatpush1.msra.mxu0 0.0
    %4716 = vmatprep.subr.mxu0 0.0
    %4717 = vmatpush1.msra.mxu0 0.0
    %4718 = vmatprep.subr.mxu0 0.0
    %4719 = vmatpush1.msra.mxu0 0.0
    %4720 = vmatprep.subr.mxu0 0.0
    %4721 = vmatpush1.msra.mxu0 0.0
    %4722 = vmatprep.subr.mxu0 0.0
    %4723 = vmatpush1.msra.mxu0 0.0
    %4724 = vmatprep.subr.mxu0 0.0
    %4725 = vmatpush1.msra.mxu0 0.0
    %4726 = vmatprep.subr.mxu0 0.0
    %4727 = vmatpush1.msra.mxu0 0.0
    %4728 = vmatprep.subr.mxu0 0.0
    %4729 = vmatpush1.msra.mxu0 0.0
    %4730 = vmatprep.subr.mxu0 0.0
    %4731 = vmatpush1.msra.mxu0 0.0
    %4732 = vmatprep.subr.mxu0 0.0
    %4733 = vmatpush1.msra.mxu0 0.0
    %4734 = vmatprep.subr.mxu0 0.0
    %4735 = vmatpush1.msra.mxu0 0.0
    %4736 = vmatprep.subr.mxu0 0.0
    %4737 = vmatpush1.msra.mxu0 0.0
    %4738 = vmatprep.subr.mxu0 %v4700
    %4739 = vmatpush1.msra.mxu0 %v4703
    %4740 = vmatprep.subr.mxu0 %v4699
    %4741 = vmatpush1.msra.mxu0 %v4702
    %4742 = vmatprep.subr.mxu0 %v4698
    %4743 = vmatpush1.msra.mxu0 %v4701
    %4744 = vmatprep.subr.mxu0 0.0
    %4745 = vmatpush2.msra.mxu0 0.0
    %4746 = vmatprep.subr.mxu0 0.0
    %4747 = vmatpush2.msra.mxu0 0.0
    %4748 = vmatprep.subr.mxu0 0.0
    %4749 = vmatpush2.msra.mxu0 0.0
    %4750 = vmatprep.subr.mxu0 0.0
    %4751 = vmatpush2.msra.mxu0 0.0
    %4752 = vmatprep.subr.mxu0 0.0
    %4753 = vmatpush2.msra.mxu0 0.0
    %4754 = vmatprep.subr.mxu0 0.0
    %4755 = vmatpush2.msra.mxu0 0.0
    %4756 = vmatprep.subr.mxu0 0.0
    %4757 = vmatpush2.msra.mxu0 0.0
    %4758 = vmatprep.subr.mxu0 0.0
    %4759 = vmatpush2.msra.mxu0 0.0
    %4760 = vmatprep.subr.mxu0 0.0
    %4761 = vmatpush2.msra.mxu0 0.0
    %4762 = vmatprep.subr.mxu0 0.0
    %4763 = vmatpush2.msra.mxu0 0.0
    %4764 = vmatprep.subr.mxu0 0.0
    %4765 = vmatpush2.msra.mxu0 0.0
    %4766 = vmatprep.subr.mxu0 0.0
    %4767 = vmatpush2.msra.mxu0 0.0
    %4768 = vmatprep.subr.mxu0 0.0
    %4769 = vmatpush2.msra.mxu0 0.0
    %4770 = vmatprep.subr.mxu0 0.0
    %4771 = vmatpush2.msra.mxu0 0.0
    %4772 = vmatprep.subr.mxu0 0.0
    %4773 = vmatpush2.msra.mxu0 0.0
    %4774 = vmatprep.subr.mxu0 0.0
    %4775 = vmatpush2.msra.mxu0 0.0
    %4776 = vmatprep.mubr.f32.mxu0 0.0
    %4777 = vmatmul.mubr.f32.gmra.mxu0 %v4710
    %v4778 = vpop.f32.mrf.mxu0
    %v4779 = vadd.f32 0.0, %v4778
    %v4780 = vpop.f32.mrf.mxu0
    %v4781 = vadd.f32 0.0, %v4780
    %4782 = vdwg.mxu0
    %4783 = vmatprep.subr.mxu0 0.0
    %4784 = vmatpush1.msra.mxu0 0.0
    %4785 = vmatprep.subr.mxu0 0.0
    %4786 = vmatpush1.msra.mxu0 0.0
    %4787 = vmatprep.subr.mxu0 0.0
    %4788 = vmatpush1.msra.mxu0 0.0
    %4789 = vmatprep.subr.mxu0 0.0
    %4790 = vmatpush1.msra.mxu0 0.0
    %4791 = vmatprep.subr.mxu0 0.0
    %4792 = vmatpush1.msra.mxu0 0.0
    %4793 = vmatprep.subr.mxu0 0.0
    %4794 = vmatpush1.msra.mxu0 0.0
    %4795 = vmatprep.subr.mxu0 0.0
    %4796 = vmatpush1.msra.mxu0 0.0
    %4797 = vmatprep.subr.mxu0 0.0
    %4798 = vmatpush1.msra.mxu0 0.0
    %4799 = vmatprep.subr.mxu0 0.0
    %4800 = vmatpush1.msra.mxu0 0.0
    %4801 = vmatprep.subr.mxu0 0.0
    %4802 = vmatpush1.msra.mxu0 0.0
    %4803 = vmatprep.subr.mxu0 0.0
    %4804 = vmatpush1.msra.mxu0 0.0
    %4805 = vmatprep.subr.mxu0 0.0
    %4806 = vmatpush1.msra.mxu0 0.0
    %4807 = vmatprep.subr.mxu0 0.0
    %4808 = vmatpush1.msra.mxu0 0.0
    %4809 = vmatprep.subr.mxu0 %v4706
    %4810 = vmatpush1.msra.mxu0 %v4697
    %4811 = vmatprep.subr.mxu0 %v4705
    %4812 = vmatpush1.msra.mxu0 %v4696
    %4813 = vmatprep.subr.mxu0 %v4704
    %4814 = vmatpush1.msra.mxu0 %v4695
    %4815 = vmatprep.subr.mxu0 0.0
    %4816 = vmatpush2.msra.mxu0 0.0
    %4817 = vmatprep.subr.mxu0 0.0
    %4818 = vmatpush2.msra.mxu0 0.0
    %4819 = vmatprep.subr.mxu0 0.0
    %4820 = vmatpush2.msra.mxu0 0.0
    %4821 = vmatprep.subr.mxu0 0.0
    %4822 = vmatpush2.msra.mxu0 0.0
    %4823 = vmatprep.subr.mxu0 0.0
    %4824 = vmatpush2.msra.mxu0 0.0
    %4825 = vmatprep.subr.mxu0 0.0
    %4826 = vmatpush2.msra.mxu0 0.0
    %4827 = vmatprep.subr.mxu0 0.0
    %4828 = vmatpush2.msra.mxu0 0.0
    %4829 = vmatprep.subr.mxu0 0.0
    %4830 = vmatpush2.msra.mxu0 0.0
    %4831 = vmatprep.subr.mxu0 0.0
    %4832 = vmatpush2.msra.mxu0 0.0
    %4833 = vmatprep.subr.mxu0 0.0
    %4834 = vmatpush2.msra.mxu0 0.0
    %4835 = vmatprep.subr.mxu0 0.0
    %4836 = vmatpush2.msra.mxu0 0.0
    %4837 = vmatprep.subr.mxu0 0.0
    %4838 = vmatpush2.msra.mxu0 0.0
    %4839 = vmatprep.subr.mxu0 0.0
    %4840 = vmatpush2.msra.mxu0 0.0
    %4841 = vmatprep.subr.mxu0 0.0
    %4842 = vmatpush2.msra.mxu0 0.0
    %4843 = vmatprep.subr.mxu0 0.0
    %4844 = vmatpush2.msra.mxu0 0.0
    %4845 = vmatprep.subr.mxu0 0.0
    %4846 = vmatpush2.msra.mxu0 0.0
    %4847 = vmatprep.mubr.f32.mxu0 0.0
    %4848 = vmatmul.mubr.f32.gmra.mxu0 %v4710
    %v4849 = vpop.f32.mrf.mxu0
    %v4850 = vadd.f32 0.0, %v4849
    %v4851 = vpop.f32.mrf.mxu0
    %v4852 = vadd.f32 0.0, %v4851
    %4853 = vdwg.mxu0
    %v4854 = vmul.f32 %v4779, %v1526
    %v4855 = vmul.f32 %v4781, %v1530
    %v4856 = vmul.f32 %v4850, %v1534
    %v4857 = vmul.f32 %v4852, %v1538
    %v4858 = vadd.f32 %v4667, %v4854
    %v4859 = vadd.f32 %v4668, %v4855
    %v4860 = vadd.f32 %v4669, %v4856
    %v4861 = vadd.f32 %v4670, %v4857
    %4862 = vrot.lane.b32.xlu0 %v3365, 111
    %v4863 = vpop.permute.xlu0 %4862
    %4864 = vrot.lane.b32.xlu0 %v3369, 111
    %v4865 = vpop.permute.xlu0 %4864
    %4866 = vrot.lane.b32.xlu0 %v3373, 111
    %v4867 = vpop.permute.xlu0 %4866
    %4868 = vrot.lane.b32.xlu0 %v3366, 111
    %v4869 = vpop.permute.xlu0 %4868
    %4870 = vrot.lane.b32.xlu0 %v3370, 111
    %v4871 = vpop.permute.xlu0 %4870
    %4872 = vrot.lane.b32.xlu0 %v3374, 111
    %v4873 = vpop.permute.xlu0 %4872
    %4874 = vrot.lane.b32.xlu0 %v3367, 111
    %v4875 = vpop.permute.xlu0 %4874
    %4876 = vrot.lane.b32.xlu0 %v3371, 111
    %v4877 = vpop.permute.xlu0 %4876
    %4878 = vrot.lane.b32.xlu0 %v3375, 111
    %v4879 = vpop.permute.xlu0 %4878
    %4880 = vrot.lane.b32.xlu0 %v3368, 111
    %v4881 = vpop.permute.xlu0 %4880
    %4882 = vrot.lane.b32.xlu0 %v3372, 111
    %v4883 = vpop.permute.xlu0 %4882
    %4884 = vrot.lane.b32.xlu0 %v3376, 111
    %v4885 = vpop.permute.xlu0 %4884
    %v4886 = vsel %vm1559, %v4875, %v4881
    %v4887 = vsel %vm1559, %v4877, %v4883
    %v4888 = vsel %vm1559, %v4879, %v4885
    %v4889 = vsel %vm1559, %v4869, %v4875
    %v4890 = vsel %vm1559, %v4871, %v4877
    %v4891 = vsel %vm1559, %v4873, %v4879
    %v4892 = vsel %vm1559, %v4863, %v4869
    %v4893 = vsel %vm1559, %v4865, %v4871
    %v4894 = vsel %vm1559, %v4867, %v4873
    %v4895 = vsel %vm1559, %v4881, %v4863
    %v4896 = vsel %vm1559, %v4883, %v4865
    %v4897 = vsel %vm1559, %v4885, %v4867
    %s4898 = scalar_lea.vmem [#allocation3], 208
    %v4899 = vld [vmem:[%s4898] sm:$0xff]
    %v4901 = vsel %vm3415, %v4899, 0
    %4903 = vmatprep.subr.mxu0 0.0
    %4904 = vmatpush1.msra.mxu0 0.0
    %4905 = vmatprep.subr.mxu0 0.0
    %4906 = vmatpush1.msra.mxu0 0.0
    %4907 = vmatprep.subr.mxu0 0.0
    %4908 = vmatpush1.msra.mxu0 0.0
    %4909 = vmatprep.subr.mxu0 0.0
    %4910 = vmatpush1.msra.mxu0 0.0
    %4911 = vmatprep.subr.mxu0 0.0
    %4912 = vmatpush1.msra.mxu0 0.0
    %4913 = vmatprep.subr.mxu0 0.0
    %4914 = vmatpush1.msra.mxu0 0.0
    %4915 = vmatprep.subr.mxu0 0.0
    %4916 = vmatpush1.msra.mxu0 0.0
    %4917 = vmatprep.subr.mxu0 0.0
    %4918 = vmatpush1.msra.mxu0 0.0
    %4919 = vmatprep.subr.mxu0 0.0
    %4920 = vmatpush1.msra.mxu0 0.0
    %4921 = vmatprep.subr.mxu0 0.0
    %4922 = vmatpush1.msra.mxu0 0.0
    %4923 = vmatprep.subr.mxu0 0.0
    %4924 = vmatpush1.msra.mxu0 0.0
    %4925 = vmatprep.subr.mxu0 0.0
    %4926 = vmatpush1.msra.mxu0 0.0
    %4927 = vmatprep.subr.mxu0 0.0
    %4928 = vmatpush1.msra.mxu0 0.0
    %4929 = vmatprep.subr.mxu0 %v4891
    %4930 = vmatpush1.msra.mxu0 %v4894
    %4931 = vmatprep.subr.mxu0 %v4890
    %4932 = vmatpush1.msra.mxu0 %v4893
    %4933 = vmatprep.subr.mxu0 %v4889
    %4934 = vmatpush1.msra.mxu0 %v4892
    %4935 = vmatprep.subr.mxu0 0.0
    %4936 = vmatpush2.msra.mxu0 0.0
    %4937 = vmatprep.subr.mxu0 0.0
    %4938 = vmatpush2.msra.mxu0 0.0
    %4939 = vmatprep.subr.mxu0 0.0
    %4940 = vmatpush2.msra.mxu0 0.0
    %4941 = vmatprep.subr.mxu0 0.0
    %4942 = vmatpush2.msra.mxu0 0.0
    %4943 = vmatprep.subr.mxu0 0.0
    %4944 = vmatpush2.msra.mxu0 0.0
    %4945 = vmatprep.subr.mxu0 0.0
    %4946 = vmatpush2.msra.mxu0 0.0
    %4947 = vmatprep.subr.mxu0 0.0
    %4948 = vmatpush2.msra.mxu0 0.0
    %4949 = vmatprep.subr.mxu0 0.0
    %4950 = vmatpush2.msra.mxu0 0.0
    %4951 = vmatprep.subr.mxu0 0.0
    %4952 = vmatpush2.msra.mxu0 0.0
    %4953 = vmatprep.subr.mxu0 0.0
    %4954 = vmatpush2.msra.mxu0 0.0
    %4955 = vmatprep.subr.mxu0 0.0
    %4956 = vmatpush2.msra.mxu0 0.0
    %4957 = vmatprep.subr.mxu0 0.0
    %4958 = vmatpush2.msra.mxu0 0.0
    %4959 = vmatprep.subr.mxu0 0.0
    %4960 = vmatpush2.msra.mxu0 0.0
    %4961 = vmatprep.subr.mxu0 0.0
    %4962 = vmatpush2.msra.mxu0 0.0
    %4963 = vmatprep.subr.mxu0 0.0
    %4964 = vmatpush2.msra.mxu0 0.0
    %4965 = vmatprep.subr.mxu0 0.0
    %4966 = vmatpush2.msra.mxu0 0.0
    %4967 = vmatprep.mubr.f32.mxu0 0.0
    %4968 = vmatmul.mubr.f32.gmra.mxu0 %v4901
    %v4969 = vpop.f32.mrf.mxu0
    %v4970 = vadd.f32 0.0, %v4969
    %v4971 = vpop.f32.mrf.mxu0
    %v4972 = vadd.f32 0.0, %v4971
    %4973 = vdwg.mxu0
    %4974 = vmatprep.subr.mxu0 0.0
    %4975 = vmatpush1.msra.mxu0 0.0
    %4976 = vmatprep.subr.mxu0 0.0
    %4977 = vmatpush1.msra.mxu0 0.0
    %4978 = vmatprep.subr.mxu0 0.0
    %4979 = vmatpush1.msra.mxu0 0.0
    %4980 = vmatprep.subr.mxu0 0.0
    %4981 = vmatpush1.msra.mxu0 0.0
    %4982 = vmatprep.subr.mxu0 0.0
    %4983 = vmatpush1.msra.mxu0 0.0
    %4984 = vmatprep.subr.mxu0 0.0
    %4985 = vmatpush1.msra.mxu0 0.0
    %4986 = vmatprep.subr.mxu0 0.0
    %4987 = vmatpush1.msra.mxu0 0.0
    %4988 = vmatprep.subr.mxu0 0.0
    %4989 = vmatpush1.msra.mxu0 0.0
    %4990 = vmatprep.subr.mxu0 0.0
    %4991 = vmatpush1.msra.mxu0 0.0
    %4992 = vmatprep.subr.mxu0 0.0
    %4993 = vmatpush1.msra.mxu0 0.0
    %4994 = vmatprep.subr.mxu0 0.0
    %4995 = vmatpush1.msra.mxu0 0.0
    %4996 = vmatprep.subr.mxu0 0.0
    %4997 = vmatpush1.msra.mxu0 0.0
    %4998 = vmatprep.subr.mxu0 0.0
    %4999 = vmatpush1.msra.mxu0 0.0
    %5000 = vmatprep.subr.mxu0 %v4897
    %5001 = vmatpush1.msra.mxu0 %v4888
    %5002 = vmatprep.subr.mxu0 %v4896
    %5003 = vmatpush1.msra.mxu0 %v4887
    %5004 = vmatprep.subr.mxu0 %v4895
    %5005 = vmatpush1.msra.mxu0 %v4886
    %5006 = vmatprep.subr.mxu0 0.0
    %5007 = vmatpush2.msra.mxu0 0.0
    %5008 = vmatprep.subr.mxu0 0.0
    %5009 = vmatpush2.msra.mxu0 0.0
    %5010 = vmatprep.subr.mxu0 0.0
    %5011 = vmatpush2.msra.mxu0 0.0
    %5012 = vmatprep.subr.mxu0 0.0
    %5013 = vmatpush2.msra.mxu0 0.0
    %5014 = vmatprep.subr.mxu0 0.0
    %5015 = vmatpush2.msra.mxu0 0.0
    %5016 = vmatprep.subr.mxu0 0.0
    %5017 = vmatpush2.msra.mxu0 0.0
    %5018 = vmatprep.subr.mxu0 0.0
    %5019 = vmatpush2.msra.mxu0 0.0
    %5020 = vmatprep.subr.mxu0 0.0
    %5021 = vmatpush2.msra.mxu0 0.0
    %5022 = vmatprep.subr.mxu0 0.0
    %5023 = vmatpush2.msra.mxu0 0.0
    %5024 = vmatprep.subr.mxu0 0.0
    %5025 = vmatpush2.msra.mxu0 0.0
    %5026 = vmatprep.subr.mxu0 0.0
    %5027 = vmatpush2.msra.mxu0 0.0
    %5028 = vmatprep.subr.mxu0 0.0
    %5029 = vmatpush2.msra.mxu0 0.0
    %5030 = vmatprep.subr.mxu0 0.0
    %5031 = vmatpush2.msra.mxu0 0.0
    %5032 = vmatprep.subr.mxu0 0.0
    %5033 = vmatpush2.msra.mxu0 0.0
    %5034 = vmatprep.subr.mxu0 0.0
    %5035 = vmatpush2.msra.mxu0 0.0
    %5036 = vmatprep.subr.mxu0 0.0
    %5037 = vmatpush2.msra.mxu0 0.0
    %5038 = vmatprep.mubr.f32.mxu0 0.0
    %5039 = vmatmul.mubr.f32.gmra.mxu0 %v4901
    %v5040 = vpop.f32.mrf.mxu0
    %v5041 = vadd.f32 0.0, %v5040
    %v5042 = vpop.f32.mrf.mxu0
    %v5043 = vadd.f32 0.0, %v5042
    %5044 = vdwg.mxu0
    %v5045 = vmul.f32 %v4970, %v1715
    %v5046 = vmul.f32 %v4972, %v1719
    %v5047 = vmul.f32 %v5041, %v1723
    %v5048 = vmul.f32 %v5043, %v1727
    %v5049 = vadd.f32 %v4858, %v5045
    %v5050 = vadd.f32 %v4859, %v5046
    %v5051 = vadd.f32 %v4860, %v5047
    %v5052 = vadd.f32 %v4861, %v5048
    %s5053 = scalar_lea.vmem %s2, 16
    %v5054 = vld [vmem:[%s5053] sm:$0xff]
    %5056 = vset.pattern.permute.xlu0 0
    %5057 = vperm.xlu0 %5056, %v5054
    %v5058 = vpop.permute.xlu0 %5057
    %v5060 = vadd.f32 %v5049, %v5058
    %v5061 = vadd.f32 %v5050, %v5058
    %v5062 = vadd.f32 %v5051, %v5058
    %v5063 = vadd.f32 %v5052, %v5058
    %v5064 = vmax.f32 %v5060, 0.0
    %v5065 = vmax.f32 %v5061, 0.0
    %v5066 = vmax.f32 %v5062, 0.0
    %v5067 = vmax.f32 %v5063, 0.0
    %5068 = vst [vmem:[#allocation2 + $0x60] sm:$0xff] %v5064
    %5069 = vst [vmem:[#allocation2 + $0x68] sm:$0xff] %v5065
    %5070 = vst [vmem:[#allocation2 + $0x70] sm:$0xff] %v5066
    %5071 = vst [vmem:[#allocation2 + $0x78] sm:$0xff] %v5067
    %v5072 = vld [vmem:[%s3] sm:$0xff]
    %v5073 = vld [vmem:[#allocation2] sm:$0xff]
    %v5074 = vld [vmem:[#allocation2 + $0x8] sm:$0xff]
    %v5075 = vld [vmem:[#allocation2 + $0x10] sm:$0xff]
    %v5076 = vld [vmem:[#allocation2 + $0x18] sm:$0xff]
    %v5077 = vld [vmem:[#allocation2 + $0x20] sm:$0xff]
    %v5078 = vld [vmem:[#allocation2 + $0x28] sm:$0xff]
    %v5079 = vld [vmem:[#allocation2 + $0x30] sm:$0xff]
    %v5080 = vld [vmem:[#allocation2 + $0x38] sm:$0xff]
    %v5081 = vld [vmem:[#allocation2 + $0x40] sm:$0xff]
    %v5082 = vld [vmem:[#allocation2 + $0x48] sm:$0xff]
    %v5083 = vld [vmem:[#allocation2 + $0x50] sm:$0xff]
    %v5084 = vld [vmem:[#allocation2 + $0x58] sm:$0xff]
    %v5085 = vld [vmem:[#allocation2 + $0x60] sm:$0xff]
    %v5086 = vld [vmem:[#allocation2 + $0x68] sm:$0xff]
    %v5087 = vld [vmem:[#allocation2 + $0x70] sm:$0xff]
    %v5088 = vld [vmem:[#allocation2 + $0x78] sm:$0xff]
    %v5089 = vld [vmem:[%s4] sm:$0xff]
    %5091 = vset.pattern.permute.xlu0 0
    %5092 = vperm.xlu0 %5091, %v5089
    %v5093 = vpop.permute.xlu0 %5092
    %vm5095 = vcmask 261120
    %v5097 = vsel %vm5095, %v5072, 0
    %5099 = vmatprep.subr.mxu0 0.0
    %5100 = vmatpush1.msra.mxu0 0.0
    %5101 = vmatprep.subr.mxu0 0.0
    %5102 = vmatpush1.msra.mxu0 0.0
    %5103 = vmatprep.subr.mxu0 0.0
    %5104 = vmatpush1.msra.mxu0 0.0
    %5105 = vmatprep.subr.mxu0 0.0
    %5106 = vmatpush1.msra.mxu0 0.0
    %5107 = vmatprep.subr.mxu0 0.0
    %5108 = vmatpush1.msra.mxu0 0.0
    %5109 = vmatprep.subr.mxu0 0.0
    %5110 = vmatpush1.msra.mxu0 0.0
    %5111 = vmatprep.subr.mxu0 0.0
    %5112 = vmatpush1.msra.mxu0 0.0
    %5113 = vmatprep.subr.mxu0 0.0
    %5114 = vmatpush1.msra.mxu0 0.0
    %5115 = vmatprep.subr.mxu0 0.0
    %5116 = vmatpush1.msra.mxu0 0.0
    %5117 = vmatprep.subr.mxu0 0.0
    %5118 = vmatpush1.msra.mxu0 0.0
    %5119 = vmatprep.subr.mxu0 0.0
    %5120 = vmatpush1.msra.mxu0 0.0
    %5121 = vmatprep.subr.mxu0 0.0
    %5122 = vmatpush1.msra.mxu0 0.0
    %5123 = vmatprep.subr.mxu0 %v5086
    %5124 = vmatpush1.msra.mxu0 %v5085
    %5125 = vmatprep.subr.mxu0 %v5082
    %5126 = vmatpush1.msra.mxu0 %v5081
    %5127 = vmatprep.subr.mxu0 %v5078
    %5128 = vmatpush1.msra.mxu0 %v5077
    %5129 = vmatprep.subr.mxu0 %v5074
    %5130 = vmatpush1.msra.mxu0 %v5073
    %5131 = vmatprep.subr.mxu0 0.0
    %5132 = vmatpush2.msra.mxu0 0.0
    %5133 = vmatprep.subr.mxu0 0.0
    %5134 = vmatpush2.msra.mxu0 0.0
    %5135 = vmatprep.subr.mxu0 0.0
    %5136 = vmatpush2.msra.mxu0 0.0
    %5137 = vmatprep.subr.mxu0 0.0
    %5138 = vmatpush2.msra.mxu0 0.0
    %5139 = vmatprep.subr.mxu0 0.0
    %5140 = vmatpush2.msra.mxu0 0.0
    %5141 = vmatprep.subr.mxu0 0.0
    %5142 = vmatpush2.msra.mxu0 0.0
    %5143 = vmatprep.subr.mxu0 0.0
    %5144 = vmatpush2.msra.mxu0 0.0
    %5145 = vmatprep.subr.mxu0 0.0
    %5146 = vmatpush2.msra.mxu0 0.0
    %5147 = vmatprep.subr.mxu0 0.0
    %5148 = vmatpush2.msra.mxu0 0.0
    %5149 = vmatprep.subr.mxu0 0.0
    %5150 = vmatpush2.msra.mxu0 0.0
    %5151 = vmatprep.subr.mxu0 0.0
    %5152 = vmatpush2.msra.mxu0 0.0
    %5153 = vmatprep.subr.mxu0 0.0
    %5154 = vmatpush2.msra.mxu0 0.0
    %5155 = vmatprep.subr.mxu0 0.0
    %5156 = vmatpush2.msra.mxu0 0.0
    %5157 = vmatprep.subr.mxu0 0.0
    %5158 = vmatpush2.msra.mxu0 0.0
    %5159 = vmatprep.subr.mxu0 0.0
    %5160 = vmatpush2.msra.mxu0 0.0
    %5161 = vmatprep.subr.mxu0 0.0
    %5162 = vmatpush2.msra.mxu0 0.0
    %5163 = vmatprep.mubr.f32.mxu0 0.0
    %5164 = vmatmul.mubr.f32.gmra.mxu0 %v5097
    %v5165 = vpop.f32.mrf.mxu0
    %v5166 = vadd.f32 %v5093, %v5165
    %v5167 = vpop.f32.mrf.mxu0
    %v5168 = vadd.f32 %v5093, %v5167
    %5169 = vdwg.mxu0
    %5170 = vmatprep.subr.mxu0 0.0
    %5171 = vmatpush1.msra.mxu0 0.0
    %5172 = vmatprep.subr.mxu0 0.0
    %5173 = vmatpush1.msra.mxu0 0.0
    %5174 = vmatprep.subr.mxu0 0.0
    %5175 = vmatpush1.msra.mxu0 0.0
    %5176 = vmatprep.subr.mxu0 0.0
    %5177 = vmatpush1.msra.mxu0 0.0
    %5178 = vmatprep.subr.mxu0 0.0
    %5179 = vmatpush1.msra.mxu0 0.0
    %5180 = vmatprep.subr.mxu0 0.0
    %5181 = vmatpush1.msra.mxu0 0.0
    %5182 = vmatprep.subr.mxu0 0.0
    %5183 = vmatpush1.msra.mxu0 0.0
    %5184 = vmatprep.subr.mxu0 0.0
    %5185 = vmatpush1.msra.mxu0 0.0
    %5186 = vmatprep.subr.mxu0 0.0
    %5187 = vmatpush1.msra.mxu0 0.0
    %5188 = vmatprep.subr.mxu0 0.0
    %5189 = vmatpush1.msra.mxu0 0.0
    %5190 = vmatprep.subr.mxu0 0.0
    %5191 = vmatpush1.msra.mxu0 0.0
    %5192 = vmatprep.subr.mxu0 0.0
    %5193 = vmatpush1.msra.mxu0 0.0
    %5194 = vmatprep.subr.mxu0 %v5088
    %5195 = vmatpush1.msra.mxu0 %v5087
    %5196 = vmatprep.subr.mxu0 %v5084
    %5197 = vmatpush1.msra.mxu0 %v5083
    %5198 = vmatprep.subr.mxu0 %v5080
    %5199 = vmatpush1.msra.mxu0 %v5079
    %5200 = vmatprep.subr.mxu0 %v5076
    %5201 = vmatpush1.msra.mxu0 %v5075
    %5202 = vmatprep.subr.mxu0 0.0
    %5203 = vmatpush2.msra.mxu0 0.0
    %5204 = vmatprep.subr.mxu0 0.0
    %5205 = vmatpush2.msra.mxu0 0.0
    %5206 = vmatprep.subr.mxu0 0.0
    %5207 = vmatpush2.msra.mxu0 0.0
    %5208 = vmatprep.subr.mxu0 0.0
    %5209 = vmatpush2.msra.mxu0 0.0
    %5210 = vmatprep.subr.mxu0 0.0
    %5211 = vmatpush2.msra.mxu0 0.0
    %5212 = vmatprep.subr.mxu0 0.0
    %5213 = vmatpush2.msra.mxu0 0.0
    %5214 = vmatprep.subr.mxu0 0.0
    %5215 = vmatpush2.msra.mxu0 0.0
    %5216 = vmatprep.subr.mxu0 0.0
    %5217 = vmatpush2.msra.mxu0 0.0
    %5218 = vmatprep.subr.mxu0 0.0
    %5219 = vmatpush2.msra.mxu0 0.0
    %5220 = vmatprep.subr.mxu0 0.0
    %5221 = vmatpush2.msra.mxu0 0.0
    %5222 = vmatprep.subr.mxu0 0.0
    %5223 = vmatpush2.msra.mxu0 0.0
    %5224 = vmatprep.subr.mxu0 0.0
    %5225 = vmatpush2.msra.mxu0 0.0
    %5226 = vmatprep.subr.mxu0 0.0
    %5227 = vmatpush2.msra.mxu0 0.0
    %5228 = vmatprep.subr.mxu0 0.0
    %5229 = vmatpush2.msra.mxu0 0.0
    %5230 = vmatprep.subr.mxu0 0.0
    %5231 = vmatpush2.msra.mxu0 0.0
    %5232 = vmatprep.subr.mxu0 0.0
    %5233 = vmatpush2.msra.mxu0 0.0
    %5234 = vmatprep.mubr.f32.mxu0 0.0
    %5235 = vmatmul.mubr.f32.gmra.mxu0 %v5097
    %v5236 = vpop.f32.mrf.mxu0
    %v5237 = vadd.f32 %v5093, %v5236
    %v5238 = vpop.f32.mrf.mxu0
    %v5239 = vadd.f32 %v5093, %v5238
    %5240 = vdwg.mxu0
    %v5241 = vadd.f32 %v5166, %v52
    %v5242 = vadd.f32 %v5168, %v53
    %v5243 = vadd.f32 %v5237, %v54
    %v5244 = vadd.f32 %v5239, %v55
    %5245 = vst [vmem:[#allocation8] sm:$0xff] %v5241
    %5246 = vst [vmem:[#allocation8 + $0x8] sm:$0xff] %v5242
    %5247 = vst [vmem:[#allocation8 + $0x10] sm:$0xff] %v5243
    %5248 = vst [vmem:[#allocation8 + $0x18] sm:$0xff] %v5244
    // Predicated region
    $region34: #{tpu_custom_call.1} parent=1 // pred_check
      _
    $region35: #{tpu_custom_call.1} parent=1 // pred_check_branch
      %5250 = sbr.rel (0) target = $region37
    $region36: #{tpu_custom_call.1} parent=1 // pred_region
      %s5252 = ssub.s32 512, 512
      %5253 = vsyncadd [#allocation5], %s5252
      %s5255 = sshll.u32 [#allocation8], 4
      %s5256 = int_to_ptr.vmem [resolvable:$true] %s5255
      %5258 = dma.vmem_to_hbm [thread:$0]  %s5256, 512, %s6, [#allocation5]
    $region37: #{tpu_custom_call.1} parent=1 // pred_fallthru
      _
    // Predicated region
    $region38: #{tpu_custom_call.1} parent=1 // pred_check
      _
    $region39: #{tpu_custom_call.1} parent=1 // pred_check_branch
      %5260 = sbr.rel (0) target = $region41
    $region40: #{tpu_custom_call.1} parent=1 // pred_region
      %5261 = dma.done [#allocation5], 512
    $region41: #{tpu_custom_call.1} parent=1 // pred_fallthru
      _
    %5262 = vsyncpa [#allocation4], 1
    %5263 = vsyncpa [#allocation7], 1
    %5264 = vsyncpa [#allocation5], 1

</llo_original>
